<compile_context>
chip_gen: v6e
topology: v6e:2x2x1
jax: 0.10.0
libtpu: 0.0.40
codegen_flags: <defaults>
</compile_context>

<pallas_src>
import jax
import jax.numpy as jnp
import numpy as np
from jax.experimental import pallas as pl
from jax.experimental.pallas import tpu as pltpu  # noqa: F401  (kept for TPU-specific tuning hooks)


# ----------------------------------------------------------------------------
# Fused bidirectional-GRU + FC + Sigmoid kernel (grid-less: body runs once).
# ----------------------------------------------------------------------------
def _bigru_classifier_kernel(len_ref, x_ref, wih_ref, whh_ref, bih_ref, bhh_ref,
                             wfc_ref, bfc_ref, out_ref):
    T, B, H = x_ref.shape

    lengths = len_ref[...]                       # (B, 1) int32
    x = x_ref[...]                               # (T, B, H) f32, time-major
    xf = x.reshape(T * B, H)                     # row = t*B + b (contiguous reshape)

    def split3(a):                               # split last dim 3H -> 3 x (.., H)
        return a[:, :H], a[:, H:2 * H], a[:, 2 * H:]

    # ---- hoisted input projection: one batched MXU op per direction ----------
    def input_proj(d):
        gi = jnp.dot(xf, wih_ref[d], preferred_element_type=jnp.float32) + bih_ref[d]
        i_r, i_z, i_n = split3(gi)               # (T*B, H) each, sliced ONCE
        return (i_r.reshape(T, B, H), i_z.reshape(T, B, H), i_n.reshape(T, B, H))

    ir_f, iz_f, in_f = input_proj(0)             # forward direction
    ir_b, iz_b, in_b = input_proj(1)             # backward direction

    # ---- recurrent weights / biases, split per gate once ---------------------
    def rec_params(d):
        return split3(whh_ref[d]), split3(bhh_ref[d])

    (w_hr_f, w_hz_f, w_hn_f), (b_hr_f, b_hz_f, b_hn_f) = rec_params(0)
    (w_hr_b, w_hz_b, w_hn_b), (b_hr_b, b_hz_b, b_hn_b) = rec_params(1)

    def gru_step(h, i_r, i_z, i_n, w_hr, w_hz, w_hn, b_hr, b_hz, b_hn, valid):
        r = jax.nn.sigmoid(
            i_r + jnp.dot(h, w_hr, preferred_element_type=jnp.float32) + b_hr)
        z = jax.nn.sigmoid(
            i_z + jnp.dot(h, w_hz, preferred_element_type=jnp.float32) + b_hz)
        n = jnp.tanh(
            i_n + r * (jnp.dot(h, w_hn, preferred_element_type=jnp.float32) + b_hn))
        h_new = (1.0 - z) * n + z * h
        # pack_padded_sequence semantics: only rows whose sequence is still valid update.
        return jnp.where(valid, h_new, h)

    h_f = jnp.zeros((B, H), jnp.float32)
    h_b = jnp.zeros((B, H), jnp.float32)

    # T is a small compile-time constant -> fully unrolled recurrence; both
    # directions advance each step (forward reads t, backward reads T-1-t).
    for t in range(T):
        tb = T - 1 - t
        h_f = gru_step(h_f, ir_f[t], iz_f[t], in_f[t],
                       w_hr_f, w_hz_f, w_hn_f, b_hr_f, b_hz_f, b_hn_f,
                       t < lengths)
        h_b = gru_step(h_b, ir_b[tb], iz_b[tb], in_b[tb],
                       w_hr_b, w_hz_b, w_hn_b, b_hr_b, b_hz_b, b_hn_b,
                       tb < lengths)

    # PyTorch: hidden_cat = cat([hidden[-1] (backward), hidden[-2] (forward)], dim=1)
    hcat = jnp.concatenate([h_b, h_f], axis=1)   # (B, 2H)
    y = jnp.dot(hcat, wfc_ref[...], preferred_element_type=jnp.float32) + bfc_ref[...]
    out_ref[...] = jax.nn.sigmoid(y)


# ----------------------------------------------------------------------------
# Full forward pass (embedding lookup stays in plain JAX as glue).
# ----------------------------------------------------------------------------
def rnn_classifier_forward(params, tokens_bt, seq_lengths):
    # Transpose the tiny (B, T) int token matrix, then gather -> (T, B, H) directly
    # (no transpose of the H-wide embedded activations anywhere).
    x = params["embedding"][tokens_bt.T].astype(jnp.float32)      # (T, B, H)
    B = tokens_bt.shape[0]
    O = params["w_fc_t"].shape[1]
    lengths = seq_lengths.astype(jnp.int32).reshape(B, 1)

    return pl.pallas_call(
        _bigru_classifier_kernel,
        out_shape=jax.ShapeDtypeStruct((B, O), jnp.float32),
    )(lengths, x, params["w_ih_t"], params["w_hh_t"],
      params["b_ih"], params["b_hh"], params["w_fc_t"], params["b_fc"])


# ----------------------------------------------------------------------------
# Pure-JAX reference (same math) for a correctness check.
# ----------------------------------------------------------------------------
def _ref_gru_dir(x_tbh, lengths, w_ih_t, w_hh_t, b_ih, b_hh, reverse):
    T, B, H = x_tbh.shape
    h = jnp.zeros((B, H), jnp.float32)
    order = range(T - 1, -1, -1) if reverse else range(T)
    for t in order:
        xt = x_tbh[t]
        gi = xt @ w_ih_t + b_ih
        gh = h @ w_hh_t + b_hh
        r = jax.nn.sigmoid(gi[:, :H] + gh[:, :H])
        z = jax.nn.sigmoid(gi[:, H:2 * H] + gh[:, H:2 * H])
        n = jnp.tanh(gi[:, 2 * H:] + r * gh[:, 2 * H:])
        h_new = (1.0 - z) * n + z * h
        valid = (t < lengths).reshape(-1, 1)
        h = jnp.where(valid, h_new, h)
    return h


def ref_forward(params, tokens_bt, seq_lengths):
    x = params["embedding"][tokens_bt.T].astype(jnp.float32)
    lengths = seq_lengths.astype(jnp.int32)
    h_fwd = _ref_gru_dir(x, lengths, params["w_ih_t"][0], params["w_hh_t"][0],
                         params["b_ih"][0], params["b_hh"][0], reverse=False)
    h_bwd = _ref_gru_dir(x, lengths, params["w_ih_t"][1], params["w_hh_t"][1],
                         params["b_ih"][1], params["b_hh"][1], reverse=True)
    hidden_cat = jnp.concatenate([h_bwd, h_fwd], axis=1)
    return jax.nn.sigmoid(hidden_cat @ params["w_fc_t"] + params["b_fc"])


# ----------------------------------------------------------------------------
# Deterministic parameter init (PyTorch-style uniform(-1/sqrt(H), 1/sqrt(H))).
# ----------------------------------------------------------------------------
def init_params(key, vocab_size, hidden_size, output_size):
    H, O = hidden_size, output_size
    k = 1.0 / np.sqrt(H)
    keys = jax.random.split(key, 8)

    def u(kk, shape, bound):
        return jax.random.uniform(kk, shape, jnp.float32, -bound, bound)

    return {
        "embedding": jax.random.normal(keys[0], (vocab_size, H), jnp.float32),
        # GRU weights stacked over direction [forward, backward], stored pre-transposed
        # as (H, 3H) so the kernel computes x @ W; gate order [r, z, n].
        "w_ih_t": u(keys[1], (2, H, 3 * H), k),
        "w_hh_t": u(keys[2], (2, H, 3 * H), k),
        "b_ih":   u(keys[3], (2, 1, 3 * H), k),
        "b_hh":   u(keys[4], (2, 1, 3 * H), k),
        # fc: Linear(2H -> O), stored transposed (2H, O)
        "w_fc_t": u(keys[5], (2 * H, O), 1.0 / np.sqrt(2 * H)),
        "b_fc":   u(keys[6], (1, O), 1.0 / np.sqrt(2 * H)),
    }


if __name__ == "__main__":
    VOCAB = 32      # input_size (embedding rows)
    HIDDEN = 32     # hidden_size
    OUTPUT = 4      # output_size (number of classes)
    BATCH = 8
    SEQ = 8

    key = jax.random.PRNGKey(0)
    pkey, tkey = jax.random.split(key)
    params = init_params(pkey, VOCAB, HIDDEN, OUTPUT)

    # tokens: (B, T) int32, padded sequences; lengths sorted descending
    # (pack_padded_sequence convention).
    tokens = jax.random.randint(tkey, (BATCH, SEQ), 1, VOCAB, dtype=jnp.int32)
    seq_lengths = jnp.array([8, 7, 6, 5, 4, 3, 2, 1], dtype=jnp.int32)

    out = jax.block_until_ready(rnn_classifier_forward(params, tokens, seq_lengths))
    ref = jax.block_until_ready(ref_forward(params, tokens, seq_lengths))

    np.testing.assert_allclose(np.asarray(out), np.asarray(ref), atol=1e-2, rtol=1e-2)
    assert out.shape == (BATCH, OUTPUT)
    print("KERNEL_OK")
</pallas_src>

<mosaic_0001>
module attributes {stable_mosaic.version = 11 : i64} {
  func.func @_bigru_classifier_kernel(%arg0: memref<8x1xi32, #tpu.memory_space<vmem>>, %arg1: memref<8x8x32xf32, #tpu.memory_space<vmem>>, %arg2: memref<2x32x96xf32, #tpu.memory_space<vmem>>, %arg3: memref<2x32x96xf32, #tpu.memory_space<vmem>>, %arg4: memref<2x1x96xf32, #tpu.memory_space<vmem>>, %arg5: memref<2x1x96xf32, #tpu.memory_space<vmem>>, %arg6: memref<64x4xf32, #tpu.memory_space<vmem>>, %arg7: memref<1x4xf32, #tpu.memory_space<vmem>>, %arg8: memref<8x4xf32, #tpu.memory_space<vmem>>) attributes {dimension_semantics = [], scalar_prefetch = 0 : i64, scratch_operands = 0 : i64, tpu.core_type = #tpu.core_type<tc>} {
    %c0 = arith.constant 0 : index
    %c0_0 = arith.constant 0 : index
    %0 = vector.load %arg0[%c0, %c0_0] : memref<8x1xi32, #tpu.memory_space<vmem>>, vector<8x1xi32>
    %c0_1 = arith.constant 0 : index
    %c0_2 = arith.constant 0 : index
    %c0_3 = arith.constant 0 : index
    %1 = vector.load %arg1[%c0_1, %c0_2, %c0_3] : memref<8x8x32xf32, #tpu.memory_space<vmem>>, vector<8x8x32xf32>
    %2 = vector.shape_cast %1 : vector<8x8x32xf32> to vector<64x32xf32>
    %c0_4 = arith.constant 0 : index
    %c0_5 = arith.constant 0 : index
    %c0_6 = arith.constant 0 : index
    %3 = vector.load %arg2[%c0_4, %c0_5, %c0_6] : memref<2x32x96xf32, #tpu.memory_space<vmem>>, vector<1x32x96xf32>
    %4 = vector.shape_cast %3 : vector<1x32x96xf32> to vector<32x96xf32>
    %cst = arith.constant dense<0.000000e+00> : vector<64x96xf32>
    %5 = tpu.matmul %2, %4, %cst {dimension_numbers = #tpu.dot_dimension_numbers<[1], [0], [0], [1], [0, 0, 1, 1], [], []>} : vector<64x32xf32>, vector<32x96xf32>, vector<64x96xf32> -> vector<64x96xf32>
    %c0_7 = arith.constant 0 : index
    %c0_8 = arith.constant 0 : index
    %c0_9 = arith.constant 0 : index
    %6 = vector.load %arg4[%c0_7, %c0_8, %c0_9] : memref<2x1x96xf32, #tpu.memory_space<vmem>>, vector<1x1x96xf32>
    %7 = vector.shape_cast %6 : vector<1x1x96xf32> to vector<1x96xf32>
    %8 = vector.broadcast %7 : vector<1x96xf32> to vector<64x96xf32>
    %9 = arith.addf %5, %8 : vector<64x96xf32>
    %10 = vector.extract_strided_slice %9 {offsets = [0, 0], sizes = [64, 32], strides = [1, 1]} : vector<64x96xf32> to vector<64x32xf32>
    %11 = vector.extract_strided_slice %9 {offsets = [0, 32], sizes = [64, 32], strides = [1, 1]} : vector<64x96xf32> to vector<64x32xf32>
    %12 = vector.extract_strided_slice %9 {offsets = [0, 64], sizes = [64, 32], strides = [1, 1]} : vector<64x96xf32> to vector<64x32xf32>
    %13 = vector.shape_cast %10 : vector<64x32xf32> to vector<8x8x32xf32>
    %14 = vector.shape_cast %11 : vector<64x32xf32> to vector<8x8x32xf32>
    %15 = vector.shape_cast %12 : vector<64x32xf32> to vector<8x8x32xf32>
    %c1 = arith.constant 1 : index
    %c0_10 = arith.constant 0 : index
    %c0_11 = arith.constant 0 : index
    %16 = vector.load %arg2[%c1, %c0_10, %c0_11] : memref<2x32x96xf32, #tpu.memory_space<vmem>>, vector<1x32x96xf32>
    %17 = vector.shape_cast %16 : vector<1x32x96xf32> to vector<32x96xf32>
    %cst_12 = arith.constant dense<0.000000e+00> : vector<64x96xf32>
    %18 = tpu.matmul %2, %17, %cst_12 {dimension_numbers = #tpu.dot_dimension_numbers<[1], [0], [0], [1], [0, 0, 1, 1], [], []>} : vector<64x32xf32>, vector<32x96xf32>, vector<64x96xf32> -> vector<64x96xf32>
    %c1_13 = arith.constant 1 : index
    %c0_14 = arith.constant 0 : index
    %c0_15 = arith.constant 0 : index
    %19 = vector.load %arg4[%c1_13, %c0_14, %c0_15] : memref<2x1x96xf32, #tpu.memory_space<vmem>>, vector<1x1x96xf32>
    %20 = vector.shape_cast %19 : vector<1x1x96xf32> to vector<1x96xf32>
    %21 = vector.broadcast %20 : vector<1x96xf32> to vector<64x96xf32>
    %22 = arith.addf %18, %21 : vector<64x96xf32>
    %23 = vector.extract_strided_slice %22 {offsets = [0, 0], sizes = [64, 32], strides = [1, 1]} : vector<64x96xf32> to vector<64x32xf32>
    %24 = vector.extract_strided_slice %22 {offsets = [0, 32], sizes = [64, 32], strides = [1, 1]} : vector<64x96xf32> to vector<64x32xf32>
    %25 = vector.extract_strided_slice %22 {offsets = [0, 64], sizes = [64, 32], strides = [1, 1]} : vector<64x96xf32> to vector<64x32xf32>
    %26 = vector.shape_cast %23 : vector<64x32xf32> to vector<8x8x32xf32>
    %27 = vector.shape_cast %24 : vector<64x32xf32> to vector<8x8x32xf32>
    %28 = vector.shape_cast %25 : vector<64x32xf32> to vector<8x8x32xf32>
    %c0_16 = arith.constant 0 : index
    %c0_17 = arith.constant 0 : index
    %c0_18 = arith.constant 0 : index
    %29 = vector.load %arg3[%c0_16, %c0_17, %c0_18] : memref<2x32x96xf32, #tpu.memory_space<vmem>>, vector<1x32x96xf32>
    %30 = vector.shape_cast %29 : vector<1x32x96xf32> to vector<32x96xf32>
    %31 = vector.extract_strided_slice %30 {offsets = [0, 0], sizes = [32, 32], strides = [1, 1]} : vector<32x96xf32> to vector<32x32xf32>
    %32 = vector.extract_strided_slice %30 {offsets = [0, 32], sizes = [32, 32], strides = [1, 1]} : vector<32x96xf32> to vector<32x32xf32>
    %33 = vector.extract_strided_slice %30 {offsets = [0, 64], sizes = [32, 32], strides = [1, 1]} : vector<32x96xf32> to vector<32x32xf32>
    %c0_19 = arith.constant 0 : index
    %c0_20 = arith.constant 0 : index
    %c0_21 = arith.constant 0 : index
    %34 = vector.load %arg5[%c0_19, %c0_20, %c0_21] : memref<2x1x96xf32, #tpu.memory_space<vmem>>, vector<1x1x96xf32>
    %35 = vector.shape_cast %34 : vector<1x1x96xf32> to vector<1x96xf32>
    %36 = vector.extract_strided_slice %35 {offsets = [0, 0], sizes = [1, 32], strides = [1, 1]} : vector<1x96xf32> to vector<1x32xf32>
    %37 = vector.extract_strided_slice %35 {offsets = [0, 32], sizes = [1, 32], strides = [1, 1]} : vector<1x96xf32> to vector<1x32xf32>
    %38 = vector.extract_strided_slice %35 {offsets = [0, 64], sizes = [1, 32], strides = [1, 1]} : vector<1x96xf32> to vector<1x32xf32>
    %c1_22 = arith.constant 1 : index
    %c0_23 = arith.constant 0 : index
    %c0_24 = arith.constant 0 : index
    %39 = vector.load %arg3[%c1_22, %c0_23, %c0_24] : memref<2x32x96xf32, #tpu.memory_space<vmem>>, vector<1x32x96xf32>
    %40 = vector.shape_cast %39 : vector<1x32x96xf32> to vector<32x96xf32>
    %41 = vector.extract_strided_slice %40 {offsets = [0, 0], sizes = [32, 32], strides = [1, 1]} : vector<32x96xf32> to vector<32x32xf32>
    %42 = vector.extract_strided_slice %40 {offsets = [0, 32], sizes = [32, 32], strides = [1, 1]} : vector<32x96xf32> to vector<32x32xf32>
    %43 = vector.extract_strided_slice %40 {offsets = [0, 64], sizes = [32, 32], strides = [1, 1]} : vector<32x96xf32> to vector<32x32xf32>
    %c1_25 = arith.constant 1 : index
    %c0_26 = arith.constant 0 : index
    %c0_27 = arith.constant 0 : index
    %44 = vector.load %arg5[%c1_25, %c0_26, %c0_27] : memref<2x1x96xf32, #tpu.memory_space<vmem>>, vector<1x1x96xf32>
    %45 = vector.shape_cast %44 : vector<1x1x96xf32> to vector<1x96xf32>
    %46 = vector.extract_strided_slice %45 {offsets = [0, 0], sizes = [1, 32], strides = [1, 1]} : vector<1x96xf32> to vector<1x32xf32>
    %47 = vector.extract_strided_slice %45 {offsets = [0, 32], sizes = [1, 32], strides = [1, 1]} : vector<1x96xf32> to vector<1x32xf32>
    %48 = vector.extract_strided_slice %45 {offsets = [0, 64], sizes = [1, 32], strides = [1, 1]} : vector<1x96xf32> to vector<1x32xf32>
    %cst_28 = arith.constant 0.000000e+00 : f32
    %49 = vector.broadcast %cst_28 : f32 to vector<8x32xf32>
    %cst_29 = arith.constant 0.000000e+00 : f32
    %50 = vector.broadcast %cst_29 : f32 to vector<8x32xf32>
    %51 = vector.extract_strided_slice %13 {offsets = [0, 0, 0], sizes = [1, 8, 32], strides = [1, 1, 1]} : vector<8x8x32xf32> to vector<1x8x32xf32>
    %52 = vector.shape_cast %51 : vector<1x8x32xf32> to vector<8x32xf32>
    %53 = vector.extract_strided_slice %14 {offsets = [0, 0, 0], sizes = [1, 8, 32], strides = [1, 1, 1]} : vector<8x8x32xf32> to vector<1x8x32xf32>
    %54 = vector.shape_cast %53 : vector<1x8x32xf32> to vector<8x32xf32>
    %55 = vector.extract_strided_slice %15 {offsets = [0, 0, 0], sizes = [1, 8, 32], strides = [1, 1, 1]} : vector<8x8x32xf32> to vector<1x8x32xf32>
    %56 = vector.shape_cast %55 : vector<1x8x32xf32> to vector<8x32xf32>
    %c0_i32 = arith.constant 0 : i32
    %57 = vector.broadcast %c0_i32 : i32 to vector<8x1xi32>
    %58 = arith.cmpi sgt, %0, %57 : vector<8x1xi32>
    %cst_30 = arith.constant dense<0.000000e+00> : vector<8x32xf32>
    %59 = tpu.matmul %49, %31, %cst_30 {dimension_numbers = #tpu.dot_dimension_numbers<[1], [0], [0], [1], [0, 0, 1, 1], [], []>} : vector<8x32xf32>, vector<32x32xf32>, vector<8x32xf32> -> vector<8x32xf32>
    %60 = arith.addf %52, %59 : vector<8x32xf32>
    %61 = vector.broadcast %36 : vector<1x32xf32> to vector<8x32xf32>
    %62 = arith.addf %60, %61 : vector<8x32xf32>
    %63 = arith.negf %62 : vector<8x32xf32>
    %64 = math.exp %63 : vector<8x32xf32>
    %cst_31 = arith.constant 1.000000e+00 : f32
    %65 = vector.broadcast %cst_31 : f32 to vector<8x32xf32>
    %66 = arith.addf %65, %64 : vector<8x32xf32>
    %67 = arith.divf %65, %66 : vector<8x32xf32>
    %cst_32 = arith.constant dense<0.000000e+00> : vector<8x32xf32>
    %68 = tpu.matmul %49, %32, %cst_32 {dimension_numbers = #tpu.dot_dimension_numbers<[1], [0], [0], [1], [0, 0, 1, 1], [], []>} : vector<8x32xf32>, vector<32x32xf32>, vector<8x32xf32> -> vector<8x32xf32>
    %69 = arith.addf %54, %68 : vector<8x32xf32>
    %70 = vector.broadcast %37 : vector<1x32xf32> to vector<8x32xf32>
    %71 = arith.addf %69, %70 : vector<8x32xf32>
    %72 = arith.negf %71 : vector<8x32xf32>
    %73 = math.exp %72 : vector<8x32xf32>
    %cst_33 = arith.constant 1.000000e+00 : f32
    %74 = vector.broadcast %cst_33 : f32 to vector<8x32xf32>
    %75 = arith.addf %74, %73 : vector<8x32xf32>
    %76 = arith.divf %74, %75 : vector<8x32xf32>
    %cst_34 = arith.constant dense<0.000000e+00> : vector<8x32xf32>
    %77 = tpu.matmul %49, %33, %cst_34 {dimension_numbers = #tpu.dot_dimension_numbers<[1], [0], [0], [1], [0, 0, 1, 1], [], []>} : vector<8x32xf32>, vector<32x32xf32>, vector<8x32xf32> -> vector<8x32xf32>
    %78 = vector.broadcast %38 : vector<1x32xf32> to vector<8x32xf32>
    %79 = arith.addf %77, %78 : vector<8x32xf32>
    %80 = arith.mulf %67, %79 : vector<8x32xf32>
    %81 = arith.addf %56, %80 : vector<8x32xf32>
    %82 = math.tanh %81 : vector<8x32xf32>
    %cst_35 = arith.constant 1.000000e+00 : f32
    %83 = vector.broadcast %cst_35 : f32 to vector<8x32xf32>
    %84 = arith.subf %83, %76 : vector<8x32xf32>
    %85 = arith.mulf %84, %82 : vector<8x32xf32>
    %86 = arith.mulf %76, %49 : vector<8x32xf32>
    %87 = arith.addf %85, %86 : vector<8x32xf32>
    %88 = vector.shape_cast %58 : vector<8x1xi1> to vector<8x1xi1>
    %89 = vector.broadcast %88 : vector<8x1xi1> to vector<8x32xi1>
    %90 = arith.select %89, %87, %49 : vector<8x32xi1>, vector<8x32xf32>
    %91 = vector.extract_strided_slice %26 {offsets = [7, 0, 0], sizes = [1, 8, 32], strides = [1, 1, 1]} : vector<8x8x32xf32> to vector<1x8x32xf32>
    %92 = vector.shape_cast %91 : vector<1x8x32xf32> to vector<8x32xf32>
    %93 = vector.extract_strided_slice %27 {offsets = [7, 0, 0], sizes = [1, 8, 32], strides = [1, 1, 1]} : vector<8x8x32xf32> to vector<1x8x32xf32>
    %94 = vector.shape_cast %93 : vector<1x8x32xf32> to vector<8x32xf32>
    %95 = vector.extract_strided_slice %28 {offsets = [7, 0, 0], sizes = [1, 8, 32], strides = [1, 1, 1]} : vector<8x8x32xf32> to vector<1x8x32xf32>
    %96 = vector.shape_cast %95 : vector<1x8x32xf32> to vector<8x32xf32>
    %c7_i32 = arith.constant 7 : i32
    %97 = vector.broadcast %c7_i32 : i32 to vector<8x1xi32>
    %98 = arith.cmpi sgt, %0, %97 : vector<8x1xi32>
    %cst_36 = arith.constant dense<0.000000e+00> : vector<8x32xf32>
    %99 = tpu.matmul %50, %41, %cst_36 {dimension_numbers = #tpu.dot_dimension_numbers<[1], [0], [0], [1], [0, 0, 1, 1], [], []>} : vector<8x32xf32>, vector<32x32xf32>, vector<8x32xf32> -> vector<8x32xf32>
    %100 = arith.addf %92, %99 : vector<8x32xf32>
    %101 = vector.broadcast %46 : vector<1x32xf32> to vector<8x32xf32>
    %102 = arith.addf %100, %101 : vector<8x32xf32>
    %103 = arith.negf %102 : vector<8x32xf32>
    %104 = math.exp %103 : vector<8x32xf32>
    %cst_37 = arith.constant 1.000000e+00 : f32
    %105 = vector.broadcast %cst_37 : f32 to vector<8x32xf32>
    %106 = arith.addf %105, %104 : vector<8x32xf32>
    %107 = arith.divf %105, %106 : vector<8x32xf32>
    %cst_38 = arith.constant dense<0.000000e+00> : vector<8x32xf32>
    %108 = tpu.matmul %50, %42, %cst_38 {dimension_numbers = #tpu.dot_dimension_numbers<[1], [0], [0], [1], [0, 0, 1, 1], [], []>} : vector<8x32xf32>, vector<32x32xf32>, vector<8x32xf32> -> vector<8x32xf32>
    %109 = arith.addf %94, %108 : vector<8x32xf32>
    %110 = vector.broadcast %47 : vector<1x32xf32> to vector<8x32xf32>
    %111 = arith.addf %109, %110 : vector<8x32xf32>
    %112 = arith.negf %111 : vector<8x32xf32>
    %113 = math.exp %112 : vector<8x32xf32>
    %cst_39 = arith.constant 1.000000e+00 : f32
    %114 = vector.broadcast %cst_39 : f32 to vector<8x32xf32>
    %115 = arith.addf %114, %113 : vector<8x32xf32>
    %116 = arith.divf %114, %115 : vector<8x32xf32>
    %cst_40 = arith.constant dense<0.000000e+00> : vector<8x32xf32>
    %117 = tpu.matmul %50, %43, %cst_40 {dimension_numbers = #tpu.dot_dimension_numbers<[1], [0], [0], [1], [0, 0, 1, 1], [], []>} : vector<8x32xf32>, vector<32x32xf32>, vector<8x32xf32> -> vector<8x32xf32>
    %118 = vector.broadcast %48 : vector<1x32xf32> to vector<8x32xf32>
    %119 = arith.addf %117, %118 : vector<8x32xf32>
    %120 = arith.mulf %107, %119 : vector<8x32xf32>
    %121 = arith.addf %96, %120 : vector<8x32xf32>
    %122 = math.tanh %121 : vector<8x32xf32>
    %cst_41 = arith.constant 1.000000e+00 : f32
    %123 = vector.broadcast %cst_41 : f32 to vector<8x32xf32>
    %124 = arith.subf %123, %116 : vector<8x32xf32>
    %125 = arith.mulf %124, %122 : vector<8x32xf32>
    %126 = arith.mulf %116, %50 : vector<8x32xf32>
    %127 = arith.addf %125, %126 : vector<8x32xf32>
    %128 = vector.shape_cast %98 : vector<8x1xi1> to vector<8x1xi1>
    %129 = vector.broadcast %128 : vector<8x1xi1> to vector<8x32xi1>
    %130 = arith.select %129, %127, %50 : vector<8x32xi1>, vector<8x32xf32>
    %131 = vector.extract_strided_slice %13 {offsets = [1, 0, 0], sizes = [1, 8, 32], strides = [1, 1, 1]} : vector<8x8x32xf32> to vector<1x8x32xf32>
    %132 = vector.shape_cast %131 : vector<1x8x32xf32> to vector<8x32xf32>
    %133 = vector.extract_strided_slice %14 {offsets = [1, 0, 0], sizes = [1, 8, 32], strides = [1, 1, 1]} : vector<8x8x32xf32> to vector<1x8x32xf32>
    %134 = vector.shape_cast %133 : vector<1x8x32xf32> to vector<8x32xf32>
    %135 = vector.extract_strided_slice %15 {offsets = [1, 0, 0], sizes = [1, 8, 32], strides = [1, 1, 1]} : vector<8x8x32xf32> to vector<1x8x32xf32>
    %136 = vector.shape_cast %135 : vector<1x8x32xf32> to vector<8x32xf32>
    %c1_i32 = arith.constant 1 : i32
    %137 = vector.broadcast %c1_i32 : i32 to vector<8x1xi32>
    %138 = arith.cmpi sgt, %0, %137 : vector<8x1xi32>
    %cst_42 = arith.constant dense<0.000000e+00> : vector<8x32xf32>
    %139 = tpu.matmul %90, %31, %cst_42 {dimension_numbers = #tpu.dot_dimension_numbers<[1], [0], [0], [1], [0, 0, 1, 1], [], []>} : vector<8x32xf32>, vector<32x32xf32>, vector<8x32xf32> -> vector<8x32xf32>
    %140 = arith.addf %132, %139 : vector<8x32xf32>
    %141 = vector.broadcast %36 : vector<1x32xf32> to vector<8x32xf32>
    %142 = arith.addf %140, %141 : vector<8x32xf32>
    %143 = arith.negf %142 : vector<8x32xf32>
    %144 = math.exp %143 : vector<8x32xf32>
    %cst_43 = arith.constant 1.000000e+00 : f32
    %145 = vector.broadcast %cst_43 : f32 to vector<8x32xf32>
    %146 = arith.addf %145, %144 : vector<8x32xf32>
    %147 = arith.divf %145, %146 : vector<8x32xf32>
    %cst_44 = arith.constant dense<0.000000e+00> : vector<8x32xf32>
    %148 = tpu.matmul %90, %32, %cst_44 {dimension_numbers = #tpu.dot_dimension_numbers<[1], [0], [0], [1], [0, 0, 1, 1], [], []>} : vector<8x32xf32>, vector<32x32xf32>, vector<8x32xf32> -> vector<8x32xf32>
    %149 = arith.addf %134, %148 : vector<8x32xf32>
    %150 = vector.broadcast %37 : vector<1x32xf32> to vector<8x32xf32>
    %151 = arith.addf %149, %150 : vector<8x32xf32>
    %152 = arith.negf %151 : vector<8x32xf32>
    %153 = math.exp %152 : vector<8x32xf32>
    %cst_45 = arith.constant 1.000000e+00 : f32
    %154 = vector.broadcast %cst_45 : f32 to vector<8x32xf32>
    %155 = arith.addf %154, %153 : vector<8x32xf32>
    %156 = arith.divf %154, %155 : vector<8x32xf32>
    %cst_46 = arith.constant dense<0.000000e+00> : vector<8x32xf32>
    %157 = tpu.matmul %90, %33, %cst_46 {dimension_numbers = #tpu.dot_dimension_numbers<[1], [0], [0], [1], [0, 0, 1, 1], [], []>} : vector<8x32xf32>, vector<32x32xf32>, vector<8x32xf32> -> vector<8x32xf32>
    %158 = vector.broadcast %38 : vector<1x32xf32> to vector<8x32xf32>
    %159 = arith.addf %157, %158 : vector<8x32xf32>
    %160 = arith.mulf %147, %159 : vector<8x32xf32>
    %161 = arith.addf %136, %160 : vector<8x32xf32>
    %162 = math.tanh %161 : vector<8x32xf32>
    %cst_47 = arith.constant 1.000000e+00 : f32
    %163 = vector.broadcast %cst_47 : f32 to vector<8x32xf32>
    %164 = arith.subf %163, %156 : vector<8x32xf32>
    %165 = arith.mulf %164, %162 : vector<8x32xf32>
    %166 = arith.mulf %156, %90 : vector<8x32xf32>
    %167 = arith.addf %165, %166 : vector<8x32xf32>
    %168 = vector.shape_cast %138 : vector<8x1xi1> to vector<8x1xi1>
    %169 = vector.broadcast %168 : vector<8x1xi1> to vector<8x32xi1>
    %170 = arith.select %169, %167, %90 : vector<8x32xi1>, vector<8x32xf32>
    %171 = vector.extract_strided_slice %26 {offsets = [6, 0, 0], sizes = [1, 8, 32], strides = [1, 1, 1]} : vector<8x8x32xf32> to vector<1x8x32xf32>
    %172 = vector.shape_cast %171 : vector<1x8x32xf32> to vector<8x32xf32>
    %173 = vector.extract_strided_slice %27 {offsets = [6, 0, 0], sizes = [1, 8, 32], strides = [1, 1, 1]} : vector<8x8x32xf32> to vector<1x8x32xf32>
    %174 = vector.shape_cast %173 : vector<1x8x32xf32> to vector<8x32xf32>
    %175 = vector.extract_strided_slice %28 {offsets = [6, 0, 0], sizes = [1, 8, 32], strides = [1, 1, 1]} : vector<8x8x32xf32> to vector<1x8x32xf32>
    %176 = vector.shape_cast %175 : vector<1x8x32xf32> to vector<8x32xf32>
    %c6_i32 = arith.constant 6 : i32
    %177 = vector.broadcast %c6_i32 : i32 to vector<8x1xi32>
    %178 = arith.cmpi sgt, %0, %177 : vector<8x1xi32>
    %cst_48 = arith.constant dense<0.000000e+00> : vector<8x32xf32>
    %179 = tpu.matmul %130, %41, %cst_48 {dimension_numbers = #tpu.dot_dimension_numbers<[1], [0], [0], [1], [0, 0, 1, 1], [], []>} : vector<8x32xf32>, vector<32x32xf32>, vector<8x32xf32> -> vector<8x32xf32>
    %180 = arith.addf %172, %179 : vector<8x32xf32>
    %181 = vector.broadcast %46 : vector<1x32xf32> to vector<8x32xf32>
    %182 = arith.addf %180, %181 : vector<8x32xf32>
    %183 = arith.negf %182 : vector<8x32xf32>
    %184 = math.exp %183 : vector<8x32xf32>
    %cst_49 = arith.constant 1.000000e+00 : f32
    %185 = vector.broadcast %cst_49 : f32 to vector<8x32xf32>
    %186 = arith.addf %185, %184 : vector<8x32xf32>
    %187 = arith.divf %185, %186 : vector<8x32xf32>
    %cst_50 = arith.constant dense<0.000000e+00> : vector<8x32xf32>
    %188 = tpu.matmul %130, %42, %cst_50 {dimension_numbers = #tpu.dot_dimension_numbers<[1], [0], [0], [1], [0, 0, 1, 1], [], []>} : vector<8x32xf32>, vector<32x32xf32>, vector<8x32xf32> -> vector<8x32xf32>
    %189 = arith.addf %174, %188 : vector<8x32xf32>
    %190 = vector.broadcast %47 : vector<1x32xf32> to vector<8x32xf32>
    %191 = arith.addf %189, %190 : vector<8x32xf32>
    %192 = arith.negf %191 : vector<8x32xf32>
    %193 = math.exp %192 : vector<8x32xf32>
    %cst_51 = arith.constant 1.000000e+00 : f32
    %194 = vector.broadcast %cst_51 : f32 to vector<8x32xf32>
    %195 = arith.addf %194, %193 : vector<8x32xf32>
    %196 = arith.divf %194, %195 : vector<8x32xf32>
    %cst_52 = arith.constant dense<0.000000e+00> : vector<8x32xf32>
    %197 = tpu.matmul %130, %43, %cst_52 {dimension_numbers = #tpu.dot_dimension_numbers<[1], [0], [0], [1], [0, 0, 1, 1], [], []>} : vector<8x32xf32>, vector<32x32xf32>, vector<8x32xf32> -> vector<8x32xf32>
    %198 = vector.broadcast %48 : vector<1x32xf32> to vector<8x32xf32>
    %199 = arith.addf %197, %198 : vector<8x32xf32>
    %200 = arith.mulf %187, %199 : vector<8x32xf32>
    %201 = arith.addf %176, %200 : vector<8x32xf32>
    %202 = math.tanh %201 : vector<8x32xf32>
    %cst_53 = arith.constant 1.000000e+00 : f32
    %203 = vector.broadcast %cst_53 : f32 to vector<8x32xf32>
    %204 = arith.subf %203, %196 : vector<8x32xf32>
    %205 = arith.mulf %204, %202 : vector<8x32xf32>
    %206 = arith.mulf %196, %130 : vector<8x32xf32>
    %207 = arith.addf %205, %206 : vector<8x32xf32>
    %208 = vector.shape_cast %178 : vector<8x1xi1> to vector<8x1xi1>
    %209 = vector.broadcast %208 : vector<8x1xi1> to vector<8x32xi1>
    %210 = arith.select %209, %207, %130 : vector<8x32xi1>, vector<8x32xf32>
    %211 = vector.extract_strided_slice %13 {offsets = [2, 0, 0], sizes = [1, 8, 32], strides = [1, 1, 1]} : vector<8x8x32xf32> to vector<1x8x32xf32>
    %212 = vector.shape_cast %211 : vector<1x8x32xf32> to vector<8x32xf32>
    %213 = vector.extract_strided_slice %14 {offsets = [2, 0, 0], sizes = [1, 8, 32], strides = [1, 1, 1]} : vector<8x8x32xf32> to vector<1x8x32xf32>
    %214 = vector.shape_cast %213 : vector<1x8x32xf32> to vector<8x32xf32>
    %215 = vector.extract_strided_slice %15 {offsets = [2, 0, 0], sizes = [1, 8, 32], strides = [1, 1, 1]} : vector<8x8x32xf32> to vector<1x8x32xf32>
    %216 = vector.shape_cast %215 : vector<1x8x32xf32> to vector<8x32xf32>
    %c2_i32 = arith.constant 2 : i32
    %217 = vector.broadcast %c2_i32 : i32 to vector<8x1xi32>
    %218 = arith.cmpi sgt, %0, %217 : vector<8x1xi32>
    %cst_54 = arith.constant dense<0.000000e+00> : vector<8x32xf32>
    %219 = tpu.matmul %170, %31, %cst_54 {dimension_numbers = #tpu.dot_dimension_numbers<[1], [0], [0], [1], [0, 0, 1, 1], [], []>} : vector<8x32xf32>, vector<32x32xf32>, vector<8x32xf32> -> vector<8x32xf32>
    %220 = arith.addf %212, %219 : vector<8x32xf32>
    %221 = vector.broadcast %36 : vector<1x32xf32> to vector<8x32xf32>
    %222 = arith.addf %220, %221 : vector<8x32xf32>
    %223 = arith.negf %222 : vector<8x32xf32>
    %224 = math.exp %223 : vector<8x32xf32>
    %cst_55 = arith.constant 1.000000e+00 : f32
    %225 = vector.broadcast %cst_55 : f32 to vector<8x32xf32>
    %226 = arith.addf %225, %224 : vector<8x32xf32>
    %227 = arith.divf %225, %226 : vector<8x32xf32>
    %cst_56 = arith.constant dense<0.000000e+00> : vector<8x32xf32>
    %228 = tpu.matmul %170, %32, %cst_56 {dimension_numbers = #tpu.dot_dimension_numbers<[1], [0], [0], [1], [0, 0, 1, 1], [], []>} : vector<8x32xf32>, vector<32x32xf32>, vector<8x32xf32> -> vector<8x32xf32>
    %229 = arith.addf %214, %228 : vector<8x32xf32>
    %230 = vector.broadcast %37 : vector<1x32xf32> to vector<8x32xf32>
    %231 = arith.addf %229, %230 : vector<8x32xf32>
    %232 = arith.negf %231 : vector<8x32xf32>
    %233 = math.exp %232 : vector<8x32xf32>
    %cst_57 = arith.constant 1.000000e+00 : f32
    %234 = vector.broadcast %cst_57 : f32 to vector<8x32xf32>
    %235 = arith.addf %234, %233 : vector<8x32xf32>
    %236 = arith.divf %234, %235 : vector<8x32xf32>
    %cst_58 = arith.constant dense<0.000000e+00> : vector<8x32xf32>
    %237 = tpu.matmul %170, %33, %cst_58 {dimension_numbers = #tpu.dot_dimension_numbers<[1], [0], [0], [1], [0, 0, 1, 1], [], []>} : vector<8x32xf32>, vector<32x32xf32>, vector<8x32xf32> -> vector<8x32xf32>
    %238 = vector.broadcast %38 : vector<1x32xf32> to vector<8x32xf32>
    %239 = arith.addf %237, %238 : vector<8x32xf32>
    %240 = arith.mulf %227, %239 : vector<8x32xf32>
    %241 = arith.addf %216, %240 : vector<8x32xf32>
    %242 = math.tanh %241 : vector<8x32xf32>
    %cst_59 = arith.constant 1.000000e+00 : f32
    %243 = vector.broadcast %cst_59 : f32 to vector<8x32xf32>
    %244 = arith.subf %243, %236 : vector<8x32xf32>
    %245 = arith.mulf %244, %242 : vector<8x32xf32>
    %246 = arith.mulf %236, %170 : vector<8x32xf32>
    %247 = arith.addf %245, %246 : vector<8x32xf32>
    %248 = vector.shape_cast %218 : vector<8x1xi1> to vector<8x1xi1>
    %249 = vector.broadcast %248 : vector<8x1xi1> to vector<8x32xi1>
    %250 = arith.select %249, %247, %170 : vector<8x32xi1>, vector<8x32xf32>
    %251 = vector.extract_strided_slice %26 {offsets = [5, 0, 0], sizes = [1, 8, 32], strides = [1, 1, 1]} : vector<8x8x32xf32> to vector<1x8x32xf32>
    %252 = vector.shape_cast %251 : vector<1x8x32xf32> to vector<8x32xf32>
    %253 = vector.extract_strided_slice %27 {offsets = [5, 0, 0], sizes = [1, 8, 32], strides = [1, 1, 1]} : vector<8x8x32xf32> to vector<1x8x32xf32>
    %254 = vector.shape_cast %253 : vector<1x8x32xf32> to vector<8x32xf32>
    %255 = vector.extract_strided_slice %28 {offsets = [5, 0, 0], sizes = [1, 8, 32], strides = [1, 1, 1]} : vector<8x8x32xf32> to vector<1x8x32xf32>
    %256 = vector.shape_cast %255 : vector<1x8x32xf32> to vector<8x32xf32>
    %c5_i32 = arith.constant 5 : i32
    %257 = vector.broadcast %c5_i32 : i32 to vector<8x1xi32>
    %258 = arith.cmpi sgt, %0, %257 : vector<8x1xi32>
    %cst_60 = arith.constant dense<0.000000e+00> : vector<8x32xf32>
    %259 = tpu.matmul %210, %41, %cst_60 {dimension_numbers = #tpu.dot_dimension_numbers<[1], [0], [0], [1], [0, 0, 1, 1], [], []>} : vector<8x32xf32>, vector<32x32xf32>, vector<8x32xf32> -> vector<8x32xf32>
    %260 = arith.addf %252, %259 : vector<8x32xf32>
    %261 = vector.broadcast %46 : vector<1x32xf32> to vector<8x32xf32>
    %262 = arith.addf %260, %261 : vector<8x32xf32>
    %263 = arith.negf %262 : vector<8x32xf32>
    %264 = math.exp %263 : vector<8x32xf32>
    %cst_61 = arith.constant 1.000000e+00 : f32
    %265 = vector.broadcast %cst_61 : f32 to vector<8x32xf32>
    %266 = arith.addf %265, %264 : vector<8x32xf32>
    %267 = arith.divf %265, %266 : vector<8x32xf32>
    %cst_62 = arith.constant dense<0.000000e+00> : vector<8x32xf32>
    %268 = tpu.matmul %210, %42, %cst_62 {dimension_numbers = #tpu.dot_dimension_numbers<[1], [0], [0], [1], [0, 0, 1, 1], [], []>} : vector<8x32xf32>, vector<32x32xf32>, vector<8x32xf32> -> vector<8x32xf32>
    %269 = arith.addf %254, %268 : vector<8x32xf32>
    %270 = vector.broadcast %47 : vector<1x32xf32> to vector<8x32xf32>
    %271 = arith.addf %269, %270 : vector<8x32xf32>
    %272 = arith.negf %271 : vector<8x32xf32>
    %273 = math.exp %272 : vector<8x32xf32>
    %cst_63 = arith.constant 1.000000e+00 : f32
    %274 = vector.broadcast %cst_63 : f32 to vector<8x32xf32>
    %275 = arith.addf %274, %273 : vector<8x32xf32>
    %276 = arith.divf %274, %275 : vector<8x32xf32>
    %cst_64 = arith.constant dense<0.000000e+00> : vector<8x32xf32>
    %277 = tpu.matmul %210, %43, %cst_64 {dimension_numbers = #tpu.dot_dimension_numbers<[1], [0], [0], [1], [0, 0, 1, 1], [], []>} : vector<8x32xf32>, vector<32x32xf32>, vector<8x32xf32> -> vector<8x32xf32>
    %278 = vector.broadcast %48 : vector<1x32xf32> to vector<8x32xf32>
    %279 = arith.addf %277, %278 : vector<8x32xf32>
    %280 = arith.mulf %267, %279 : vector<8x32xf32>
    %281 = arith.addf %256, %280 : vector<8x32xf32>
    %282 = math.tanh %281 : vector<8x32xf32>
    %cst_65 = arith.constant 1.000000e+00 : f32
    %283 = vector.broadcast %cst_65 : f32 to vector<8x32xf32>
    %284 = arith.subf %283, %276 : vector<8x32xf32>
    %285 = arith.mulf %284, %282 : vector<8x32xf32>
    %286 = arith.mulf %276, %210 : vector<8x32xf32>
    %287 = arith.addf %285, %286 : vector<8x32xf32>
    %288 = vector.shape_cast %258 : vector<8x1xi1> to vector<8x1xi1>
    %289 = vector.broadcast %288 : vector<8x1xi1> to vector<8x32xi1>
    %290 = arith.select %289, %287, %210 : vector<8x32xi1>, vector<8x32xf32>
    %291 = vector.extract_strided_slice %13 {offsets = [3, 0, 0], sizes = [1, 8, 32], strides = [1, 1, 1]} : vector<8x8x32xf32> to vector<1x8x32xf32>
    %292 = vector.shape_cast %291 : vector<1x8x32xf32> to vector<8x32xf32>
    %293 = vector.extract_strided_slice %14 {offsets = [3, 0, 0], sizes = [1, 8, 32], strides = [1, 1, 1]} : vector<8x8x32xf32> to vector<1x8x32xf32>
    %294 = vector.shape_cast %293 : vector<1x8x32xf32> to vector<8x32xf32>
    %295 = vector.extract_strided_slice %15 {offsets = [3, 0, 0], sizes = [1, 8, 32], strides = [1, 1, 1]} : vector<8x8x32xf32> to vector<1x8x32xf32>
    %296 = vector.shape_cast %295 : vector<1x8x32xf32> to vector<8x32xf32>
    %c3_i32 = arith.constant 3 : i32
    %297 = vector.broadcast %c3_i32 : i32 to vector<8x1xi32>
    %298 = arith.cmpi sgt, %0, %297 : vector<8x1xi32>
    %cst_66 = arith.constant dense<0.000000e+00> : vector<8x32xf32>
    %299 = tpu.matmul %250, %31, %cst_66 {dimension_numbers = #tpu.dot_dimension_numbers<[1], [0], [0], [1], [0, 0, 1, 1], [], []>} : vector<8x32xf32>, vector<32x32xf32>, vector<8x32xf32> -> vector<8x32xf32>
    %300 = arith.addf %292, %299 : vector<8x32xf32>
    %301 = vector.broadcast %36 : vector<1x32xf32> to vector<8x32xf32>
    %302 = arith.addf %300, %301 : vector<8x32xf32>
    %303 = arith.negf %302 : vector<8x32xf32>
    %304 = math.exp %303 : vector<8x32xf32>
    %cst_67 = arith.constant 1.000000e+00 : f32
    %305 = vector.broadcast %cst_67 : f32 to vector<8x32xf32>
    %306 = arith.addf %305, %304 : vector<8x32xf32>
    %307 = arith.divf %305, %306 : vector<8x32xf32>
    %cst_68 = arith.constant dense<0.000000e+00> : vector<8x32xf32>
    %308 = tpu.matmul %250, %32, %cst_68 {dimension_numbers = #tpu.dot_dimension_numbers<[1], [0], [0], [1], [0, 0, 1, 1], [], []>} : vector<8x32xf32>, vector<32x32xf32>, vector<8x32xf32> -> vector<8x32xf32>
    %309 = arith.addf %294, %308 : vector<8x32xf32>
    %310 = vector.broadcast %37 : vector<1x32xf32> to vector<8x32xf32>
    %311 = arith.addf %309, %310 : vector<8x32xf32>
    %312 = arith.negf %311 : vector<8x32xf32>
    %313 = math.exp %312 : vector<8x32xf32>
    %cst_69 = arith.constant 1.000000e+00 : f32
    %314 = vector.broadcast %cst_69 : f32 to vector<8x32xf32>
    %315 = arith.addf %314, %313 : vector<8x32xf32>
    %316 = arith.divf %314, %315 : vector<8x32xf32>
    %cst_70 = arith.constant dense<0.000000e+00> : vector<8x32xf32>
    %317 = tpu.matmul %250, %33, %cst_70 {dimension_numbers = #tpu.dot_dimension_numbers<[1], [0], [0], [1], [0, 0, 1, 1], [], []>} : vector<8x32xf32>, vector<32x32xf32>, vector<8x32xf32> -> vector<8x32xf32>
    %318 = vector.broadcast %38 : vector<1x32xf32> to vector<8x32xf32>
    %319 = arith.addf %317, %318 : vector<8x32xf32>
    %320 = arith.mulf %307, %319 : vector<8x32xf32>
    %321 = arith.addf %296, %320 : vector<8x32xf32>
    %322 = math.tanh %321 : vector<8x32xf32>
    %cst_71 = arith.constant 1.000000e+00 : f32
    %323 = vector.broadcast %cst_71 : f32 to vector<8x32xf32>
    %324 = arith.subf %323, %316 : vector<8x32xf32>
    %325 = arith.mulf %324, %322 : vector<8x32xf32>
    %326 = arith.mulf %316, %250 : vector<8x32xf32>
    %327 = arith.addf %325, %326 : vector<8x32xf32>
    %328 = vector.shape_cast %298 : vector<8x1xi1> to vector<8x1xi1>
    %329 = vector.broadcast %328 : vector<8x1xi1> to vector<8x32xi1>
    %330 = arith.select %329, %327, %250 : vector<8x32xi1>, vector<8x32xf32>
    %331 = vector.extract_strided_slice %26 {offsets = [4, 0, 0], sizes = [1, 8, 32], strides = [1, 1, 1]} : vector<8x8x32xf32> to vector<1x8x32xf32>
    %332 = vector.shape_cast %331 : vector<1x8x32xf32> to vector<8x32xf32>
    %333 = vector.extract_strided_slice %27 {offsets = [4, 0, 0], sizes = [1, 8, 32], strides = [1, 1, 1]} : vector<8x8x32xf32> to vector<1x8x32xf32>
    %334 = vector.shape_cast %333 : vector<1x8x32xf32> to vector<8x32xf32>
    %335 = vector.extract_strided_slice %28 {offsets = [4, 0, 0], sizes = [1, 8, 32], strides = [1, 1, 1]} : vector<8x8x32xf32> to vector<1x8x32xf32>
    %336 = vector.shape_cast %335 : vector<1x8x32xf32> to vector<8x32xf32>
    %c4_i32 = arith.constant 4 : i32
    %337 = vector.broadcast %c4_i32 : i32 to vector<8x1xi32>
    %338 = arith.cmpi sgt, %0, %337 : vector<8x1xi32>
    %cst_72 = arith.constant dense<0.000000e+00> : vector<8x32xf32>
    %339 = tpu.matmul %290, %41, %cst_72 {dimension_numbers = #tpu.dot_dimension_numbers<[1], [0], [0], [1], [0, 0, 1, 1], [], []>} : vector<8x32xf32>, vector<32x32xf32>, vector<8x32xf32> -> vector<8x32xf32>
    %340 = arith.addf %332, %339 : vector<8x32xf32>
    %341 = vector.broadcast %46 : vector<1x32xf32> to vector<8x32xf32>
    %342 = arith.addf %340, %341 : vector<8x32xf32>
    %343 = arith.negf %342 : vector<8x32xf32>
    %344 = math.exp %343 : vector<8x32xf32>
    %cst_73 = arith.constant 1.000000e+00 : f32
    %345 = vector.broadcast %cst_73 : f32 to vector<8x32xf32>
    %346 = arith.addf %345, %344 : vector<8x32xf32>
    %347 = arith.divf %345, %346 : vector<8x32xf32>
    %cst_74 = arith.constant dense<0.000000e+00> : vector<8x32xf32>
    %348 = tpu.matmul %290, %42, %cst_74 {dimension_numbers = #tpu.dot_dimension_numbers<[1], [0], [0], [1], [0, 0, 1, 1], [], []>} : vector<8x32xf32>, vector<32x32xf32>, vector<8x32xf32> -> vector<8x32xf32>
    %349 = arith.addf %334, %348 : vector<8x32xf32>
    %350 = vector.broadcast %47 : vector<1x32xf32> to vector<8x32xf32>
    %351 = arith.addf %349, %350 : vector<8x32xf32>
    %352 = arith.negf %351 : vector<8x32xf32>
    %353 = math.exp %352 : vector<8x32xf32>
    %cst_75 = arith.constant 1.000000e+00 : f32
    %354 = vector.broadcast %cst_75 : f32 to vector<8x32xf32>
    %355 = arith.addf %354, %353 : vector<8x32xf32>
    %356 = arith.divf %354, %355 : vector<8x32xf32>
    %cst_76 = arith.constant dense<0.000000e+00> : vector<8x32xf32>
    %357 = tpu.matmul %290, %43, %cst_76 {dimension_numbers = #tpu.dot_dimension_numbers<[1], [0], [0], [1], [0, 0, 1, 1], [], []>} : vector<8x32xf32>, vector<32x32xf32>, vector<8x32xf32> -> vector<8x32xf32>
    %358 = vector.broadcast %48 : vector<1x32xf32> to vector<8x32xf32>
    %359 = arith.addf %357, %358 : vector<8x32xf32>
    %360 = arith.mulf %347, %359 : vector<8x32xf32>
    %361 = arith.addf %336, %360 : vector<8x32xf32>
    %362 = math.tanh %361 : vector<8x32xf32>
    %cst_77 = arith.constant 1.000000e+00 : f32
    %363 = vector.broadcast %cst_77 : f32 to vector<8x32xf32>
    %364 = arith.subf %363, %356 : vector<8x32xf32>
    %365 = arith.mulf %364, %362 : vector<8x32xf32>
    %366 = arith.mulf %356, %290 : vector<8x32xf32>
    %367 = arith.addf %365, %366 : vector<8x32xf32>
    %368 = vector.shape_cast %338 : vector<8x1xi1> to vector<8x1xi1>
    %369 = vector.broadcast %368 : vector<8x1xi1> to vector<8x32xi1>
    %370 = arith.select %369, %367, %290 : vector<8x32xi1>, vector<8x32xf32>
    %371 = vector.extract_strided_slice %13 {offsets = [4, 0, 0], sizes = [1, 8, 32], strides = [1, 1, 1]} : vector<8x8x32xf32> to vector<1x8x32xf32>
    %372 = vector.shape_cast %371 : vector<1x8x32xf32> to vector<8x32xf32>
    %373 = vector.extract_strided_slice %14 {offsets = [4, 0, 0], sizes = [1, 8, 32], strides = [1, 1, 1]} : vector<8x8x32xf32> to vector<1x8x32xf32>
    %374 = vector.shape_cast %373 : vector<1x8x32xf32> to vector<8x32xf32>
    %375 = vector.extract_strided_slice %15 {offsets = [4, 0, 0], sizes = [1, 8, 32], strides = [1, 1, 1]} : vector<8x8x32xf32> to vector<1x8x32xf32>
    %376 = vector.shape_cast %375 : vector<1x8x32xf32> to vector<8x32xf32>
    %c4_i32_78 = arith.constant 4 : i32
    %377 = vector.broadcast %c4_i32_78 : i32 to vector<8x1xi32>
    %378 = arith.cmpi sgt, %0, %377 : vector<8x1xi32>
    %cst_79 = arith.constant dense<0.000000e+00> : vector<8x32xf32>
    %379 = tpu.matmul %330, %31, %cst_79 {dimension_numbers = #tpu.dot_dimension_numbers<[1], [0], [0], [1], [0, 0, 1, 1], [], []>} : vector<8x32xf32>, vector<32x32xf32>, vector<8x32xf32> -> vector<8x32xf32>
    %380 = arith.addf %372, %379 : vector<8x32xf32>
    %381 = vector.broadcast %36 : vector<1x32xf32> to vector<8x32xf32>
    %382 = arith.addf %380, %381 : vector<8x32xf32>
    %383 = arith.negf %382 : vector<8x32xf32>
    %384 = math.exp %383 : vector<8x32xf32>
    %cst_80 = arith.constant 1.000000e+00 : f32
    %385 = vector.broadcast %cst_80 : f32 to vector<8x32xf32>
    %386 = arith.addf %385, %384 : vector<8x32xf32>
    %387 = arith.divf %385, %386 : vector<8x32xf32>
    %cst_81 = arith.constant dense<0.000000e+00> : vector<8x32xf32>
    %388 = tpu.matmul %330, %32, %cst_81 {dimension_numbers = #tpu.dot_dimension_numbers<[1], [0], [0], [1], [0, 0, 1, 1], [], []>} : vector<8x32xf32>, vector<32x32xf32>, vector<8x32xf32> -> vector<8x32xf32>
    %389 = arith.addf %374, %388 : vector<8x32xf32>
    %390 = vector.broadcast %37 : vector<1x32xf32> to vector<8x32xf32>
    %391 = arith.addf %389, %390 : vector<8x32xf32>
    %392 = arith.negf %391 : vector<8x32xf32>
    %393 = math.exp %392 : vector<8x32xf32>
    %cst_82 = arith.constant 1.000000e+00 : f32
    %394 = vector.broadcast %cst_82 : f32 to vector<8x32xf32>
    %395 = arith.addf %394, %393 : vector<8x32xf32>
    %396 = arith.divf %394, %395 : vector<8x32xf32>
    %cst_83 = arith.constant dense<0.000000e+00> : vector<8x32xf32>
    %397 = tpu.matmul %330, %33, %cst_83 {dimension_numbers = #tpu.dot_dimension_numbers<[1], [0], [0], [1], [0, 0, 1, 1], [], []>} : vector<8x32xf32>, vector<32x32xf32>, vector<8x32xf32> -> vector<8x32xf32>
    %398 = vector.broadcast %38 : vector<1x32xf32> to vector<8x32xf32>
    %399 = arith.addf %397, %398 : vector<8x32xf32>
    %400 = arith.mulf %387, %399 : vector<8x32xf32>
    %401 = arith.addf %376, %400 : vector<8x32xf32>
    %402 = math.tanh %401 : vector<8x32xf32>
    %cst_84 = arith.constant 1.000000e+00 : f32
    %403 = vector.broadcast %cst_84 : f32 to vector<8x32xf32>
    %404 = arith.subf %403, %396 : vector<8x32xf32>
    %405 = arith.mulf %404, %402 : vector<8x32xf32>
    %406 = arith.mulf %396, %330 : vector<8x32xf32>
    %407 = arith.addf %405, %406 : vector<8x32xf32>
    %408 = vector.shape_cast %378 : vector<8x1xi1> to vector<8x1xi1>
    %409 = vector.broadcast %408 : vector<8x1xi1> to vector<8x32xi1>
    %410 = arith.select %409, %407, %330 : vector<8x32xi1>, vector<8x32xf32>
    %411 = vector.extract_strided_slice %26 {offsets = [3, 0, 0], sizes = [1, 8, 32], strides = [1, 1, 1]} : vector<8x8x32xf32> to vector<1x8x32xf32>
    %412 = vector.shape_cast %411 : vector<1x8x32xf32> to vector<8x32xf32>
    %413 = vector.extract_strided_slice %27 {offsets = [3, 0, 0], sizes = [1, 8, 32], strides = [1, 1, 1]} : vector<8x8x32xf32> to vector<1x8x32xf32>
    %414 = vector.shape_cast %413 : vector<1x8x32xf32> to vector<8x32xf32>
    %415 = vector.extract_strided_slice %28 {offsets = [3, 0, 0], sizes = [1, 8, 32], strides = [1, 1, 1]} : vector<8x8x32xf32> to vector<1x8x32xf32>
    %416 = vector.shape_cast %415 : vector<1x8x32xf32> to vector<8x32xf32>
    %c3_i32_85 = arith.constant 3 : i32
    %417 = vector.broadcast %c3_i32_85 : i32 to vector<8x1xi32>
    %418 = arith.cmpi sgt, %0, %417 : vector<8x1xi32>
    %cst_86 = arith.constant dense<0.000000e+00> : vector<8x32xf32>
    %419 = tpu.matmul %370, %41, %cst_86 {dimension_numbers = #tpu.dot_dimension_numbers<[1], [0], [0], [1], [0, 0, 1, 1], [], []>} : vector<8x32xf32>, vector<32x32xf32>, vector<8x32xf32> -> vector<8x32xf32>
    %420 = arith.addf %412, %419 : vector<8x32xf32>
    %421 = vector.broadcast %46 : vector<1x32xf32> to vector<8x32xf32>
    %422 = arith.addf %420, %421 : vector<8x32xf32>
    %423 = arith.negf %422 : vector<8x32xf32>
    %424 = math.exp %423 : vector<8x32xf32>
    %cst_87 = arith.constant 1.000000e+00 : f32
    %425 = vector.broadcast %cst_87 : f32 to vector<8x32xf32>
    %426 = arith.addf %425, %424 : vector<8x32xf32>
    %427 = arith.divf %425, %426 : vector<8x32xf32>
    %cst_88 = arith.constant dense<0.000000e+00> : vector<8x32xf32>
    %428 = tpu.matmul %370, %42, %cst_88 {dimension_numbers = #tpu.dot_dimension_numbers<[1], [0], [0], [1], [0, 0, 1, 1], [], []>} : vector<8x32xf32>, vector<32x32xf32>, vector<8x32xf32> -> vector<8x32xf32>
    %429 = arith.addf %414, %428 : vector<8x32xf32>
    %430 = vector.broadcast %47 : vector<1x32xf32> to vector<8x32xf32>
    %431 = arith.addf %429, %430 : vector<8x32xf32>
    %432 = arith.negf %431 : vector<8x32xf32>
    %433 = math.exp %432 : vector<8x32xf32>
    %cst_89 = arith.constant 1.000000e+00 : f32
    %434 = vector.broadcast %cst_89 : f32 to vector<8x32xf32>
    %435 = arith.addf %434, %433 : vector<8x32xf32>
    %436 = arith.divf %434, %435 : vector<8x32xf32>
    %cst_90 = arith.constant dense<0.000000e+00> : vector<8x32xf32>
    %437 = tpu.matmul %370, %43, %cst_90 {dimension_numbers = #tpu.dot_dimension_numbers<[1], [0], [0], [1], [0, 0, 1, 1], [], []>} : vector<8x32xf32>, vector<32x32xf32>, vector<8x32xf32> -> vector<8x32xf32>
    %438 = vector.broadcast %48 : vector<1x32xf32> to vector<8x32xf32>
    %439 = arith.addf %437, %438 : vector<8x32xf32>
    %440 = arith.mulf %427, %439 : vector<8x32xf32>
    %441 = arith.addf %416, %440 : vector<8x32xf32>
    %442 = math.tanh %441 : vector<8x32xf32>
    %cst_91 = arith.constant 1.000000e+00 : f32
    %443 = vector.broadcast %cst_91 : f32 to vector<8x32xf32>
    %444 = arith.subf %443, %436 : vector<8x32xf32>
    %445 = arith.mulf %444, %442 : vector<8x32xf32>
    %446 = arith.mulf %436, %370 : vector<8x32xf32>
    %447 = arith.addf %445, %446 : vector<8x32xf32>
    %448 = vector.shape_cast %418 : vector<8x1xi1> to vector<8x1xi1>
    %449 = vector.broadcast %448 : vector<8x1xi1> to vector<8x32xi1>
    %450 = arith.select %449, %447, %370 : vector<8x32xi1>, vector<8x32xf32>
    %451 = vector.extract_strided_slice %13 {offsets = [5, 0, 0], sizes = [1, 8, 32], strides = [1, 1, 1]} : vector<8x8x32xf32> to vector<1x8x32xf32>
    %452 = vector.shape_cast %451 : vector<1x8x32xf32> to vector<8x32xf32>
    %453 = vector.extract_strided_slice %14 {offsets = [5, 0, 0], sizes = [1, 8, 32], strides = [1, 1, 1]} : vector<8x8x32xf32> to vector<1x8x32xf32>
    %454 = vector.shape_cast %453 : vector<1x8x32xf32> to vector<8x32xf32>
    %455 = vector.extract_strided_slice %15 {offsets = [5, 0, 0], sizes = [1, 8, 32], strides = [1, 1, 1]} : vector<8x8x32xf32> to vector<1x8x32xf32>
    %456 = vector.shape_cast %455 : vector<1x8x32xf32> to vector<8x32xf32>
    %c5_i32_92 = arith.constant 5 : i32
    %457 = vector.broadcast %c5_i32_92 : i32 to vector<8x1xi32>
    %458 = arith.cmpi sgt, %0, %457 : vector<8x1xi32>
    %cst_93 = arith.constant dense<0.000000e+00> : vector<8x32xf32>
    %459 = tpu.matmul %410, %31, %cst_93 {dimension_numbers = #tpu.dot_dimension_numbers<[1], [0], [0], [1], [0, 0, 1, 1], [], []>} : vector<8x32xf32>, vector<32x32xf32>, vector<8x32xf32> -> vector<8x32xf32>
    %460 = arith.addf %452, %459 : vector<8x32xf32>
    %461 = vector.broadcast %36 : vector<1x32xf32> to vector<8x32xf32>
    %462 = arith.addf %460, %461 : vector<8x32xf32>
    %463 = arith.negf %462 : vector<8x32xf32>
    %464 = math.exp %463 : vector<8x32xf32>
    %cst_94 = arith.constant 1.000000e+00 : f32
    %465 = vector.broadcast %cst_94 : f32 to vector<8x32xf32>
    %466 = arith.addf %465, %464 : vector<8x32xf32>
    %467 = arith.divf %465, %466 : vector<8x32xf32>
    %cst_95 = arith.constant dense<0.000000e+00> : vector<8x32xf32>
    %468 = tpu.matmul %410, %32, %cst_95 {dimension_numbers = #tpu.dot_dimension_numbers<[1], [0], [0], [1], [0, 0, 1, 1], [], []>} : vector<8x32xf32>, vector<32x32xf32>, vector<8x32xf32> -> vector<8x32xf32>
    %469 = arith.addf %454, %468 : vector<8x32xf32>
    %470 = vector.broadcast %37 : vector<1x32xf32> to vector<8x32xf32>
    %471 = arith.addf %469, %470 : vector<8x32xf32>
    %472 = arith.negf %471 : vector<8x32xf32>
    %473 = math.exp %472 : vector<8x32xf32>
    %cst_96 = arith.constant 1.000000e+00 : f32
    %474 = vector.broadcast %cst_96 : f32 to vector<8x32xf32>
    %475 = arith.addf %474, %473 : vector<8x32xf32>
    %476 = arith.divf %474, %475 : vector<8x32xf32>
    %cst_97 = arith.constant dense<0.000000e+00> : vector<8x32xf32>
    %477 = tpu.matmul %410, %33, %cst_97 {dimension_numbers = #tpu.dot_dimension_numbers<[1], [0], [0], [1], [0, 0, 1, 1], [], []>} : vector<8x32xf32>, vector<32x32xf32>, vector<8x32xf32> -> vector<8x32xf32>
    %478 = vector.broadcast %38 : vector<1x32xf32> to vector<8x32xf32>
    %479 = arith.addf %477, %478 : vector<8x32xf32>
    %480 = arith.mulf %467, %479 : vector<8x32xf32>
    %481 = arith.addf %456, %480 : vector<8x32xf32>
    %482 = math.tanh %481 : vector<8x32xf32>
    %cst_98 = arith.constant 1.000000e+00 : f32
    %483 = vector.broadcast %cst_98 : f32 to vector<8x32xf32>
    %484 = arith.subf %483, %476 : vector<8x32xf32>
    %485 = arith.mulf %484, %482 : vector<8x32xf32>
    %486 = arith.mulf %476, %410 : vector<8x32xf32>
    %487 = arith.addf %485, %486 : vector<8x32xf32>
    %488 = vector.shape_cast %458 : vector<8x1xi1> to vector<8x1xi1>
    %489 = vector.broadcast %488 : vector<8x1xi1> to vector<8x32xi1>
    %490 = arith.select %489, %487, %410 : vector<8x32xi1>, vector<8x32xf32>
    %491 = vector.extract_strided_slice %26 {offsets = [2, 0, 0], sizes = [1, 8, 32], strides = [1, 1, 1]} : vector<8x8x32xf32> to vector<1x8x32xf32>
    %492 = vector.shape_cast %491 : vector<1x8x32xf32> to vector<8x32xf32>
    %493 = vector.extract_strided_slice %27 {offsets = [2, 0, 0], sizes = [1, 8, 32], strides = [1, 1, 1]} : vector<8x8x32xf32> to vector<1x8x32xf32>
    %494 = vector.shape_cast %493 : vector<1x8x32xf32> to vector<8x32xf32>
    %495 = vector.extract_strided_slice %28 {offsets = [2, 0, 0], sizes = [1, 8, 32], strides = [1, 1, 1]} : vector<8x8x32xf32> to vector<1x8x32xf32>
    %496 = vector.shape_cast %495 : vector<1x8x32xf32> to vector<8x32xf32>
    %c2_i32_99 = arith.constant 2 : i32
    %497 = vector.broadcast %c2_i32_99 : i32 to vector<8x1xi32>
    %498 = arith.cmpi sgt, %0, %497 : vector<8x1xi32>
    %cst_100 = arith.constant dense<0.000000e+00> : vector<8x32xf32>
    %499 = tpu.matmul %450, %41, %cst_100 {dimension_numbers = #tpu.dot_dimension_numbers<[1], [0], [0], [1], [0, 0, 1, 1], [], []>} : vector<8x32xf32>, vector<32x32xf32>, vector<8x32xf32> -> vector<8x32xf32>
    %500 = arith.addf %492, %499 : vector<8x32xf32>
    %501 = vector.broadcast %46 : vector<1x32xf32> to vector<8x32xf32>
    %502 = arith.addf %500, %501 : vector<8x32xf32>
    %503 = arith.negf %502 : vector<8x32xf32>
    %504 = math.exp %503 : vector<8x32xf32>
    %cst_101 = arith.constant 1.000000e+00 : f32
    %505 = vector.broadcast %cst_101 : f32 to vector<8x32xf32>
    %506 = arith.addf %505, %504 : vector<8x32xf32>
    %507 = arith.divf %505, %506 : vector<8x32xf32>
    %cst_102 = arith.constant dense<0.000000e+00> : vector<8x32xf32>
    %508 = tpu.matmul %450, %42, %cst_102 {dimension_numbers = #tpu.dot_dimension_numbers<[1], [0], [0], [1], [0, 0, 1, 1], [], []>} : vector<8x32xf32>, vector<32x32xf32>, vector<8x32xf32> -> vector<8x32xf32>
    %509 = arith.addf %494, %508 : vector<8x32xf32>
    %510 = vector.broadcast %47 : vector<1x32xf32> to vector<8x32xf32>
    %511 = arith.addf %509, %510 : vector<8x32xf32>
    %512 = arith.negf %511 : vector<8x32xf32>
    %513 = math.exp %512 : vector<8x32xf32>
    %cst_103 = arith.constant 1.000000e+00 : f32
    %514 = vector.broadcast %cst_103 : f32 to vector<8x32xf32>
    %515 = arith.addf %514, %513 : vector<8x32xf32>
    %516 = arith.divf %514, %515 : vector<8x32xf32>
    %cst_104 = arith.constant dense<0.000000e+00> : vector<8x32xf32>
    %517 = tpu.matmul %450, %43, %cst_104 {dimension_numbers = #tpu.dot_dimension_numbers<[1], [0], [0], [1], [0, 0, 1, 1], [], []>} : vector<8x32xf32>, vector<32x32xf32>, vector<8x32xf32> -> vector<8x32xf32>
    %518 = vector.broadcast %48 : vector<1x32xf32> to vector<8x32xf32>
    %519 = arith.addf %517, %518 : vector<8x32xf32>
    %520 = arith.mulf %507, %519 : vector<8x32xf32>
    %521 = arith.addf %496, %520 : vector<8x32xf32>
    %522 = math.tanh %521 : vector<8x32xf32>
    %cst_105 = arith.constant 1.000000e+00 : f32
    %523 = vector.broadcast %cst_105 : f32 to vector<8x32xf32>
    %524 = arith.subf %523, %516 : vector<8x32xf32>
    %525 = arith.mulf %524, %522 : vector<8x32xf32>
    %526 = arith.mulf %516, %450 : vector<8x32xf32>
    %527 = arith.addf %525, %526 : vector<8x32xf32>
    %528 = vector.shape_cast %498 : vector<8x1xi1> to vector<8x1xi1>
    %529 = vector.broadcast %528 : vector<8x1xi1> to vector<8x32xi1>
    %530 = arith.select %529, %527, %450 : vector<8x32xi1>, vector<8x32xf32>
    %531 = vector.extract_strided_slice %13 {offsets = [6, 0, 0], sizes = [1, 8, 32], strides = [1, 1, 1]} : vector<8x8x32xf32> to vector<1x8x32xf32>
    %532 = vector.shape_cast %531 : vector<1x8x32xf32> to vector<8x32xf32>
    %533 = vector.extract_strided_slice %14 {offsets = [6, 0, 0], sizes = [1, 8, 32], strides = [1, 1, 1]} : vector<8x8x32xf32> to vector<1x8x32xf32>
    %534 = vector.shape_cast %533 : vector<1x8x32xf32> to vector<8x32xf32>
    %535 = vector.extract_strided_slice %15 {offsets = [6, 0, 0], sizes = [1, 8, 32], strides = [1, 1, 1]} : vector<8x8x32xf32> to vector<1x8x32xf32>
    %536 = vector.shape_cast %535 : vector<1x8x32xf32> to vector<8x32xf32>
    %c6_i32_106 = arith.constant 6 : i32
    %537 = vector.broadcast %c6_i32_106 : i32 to vector<8x1xi32>
    %538 = arith.cmpi sgt, %0, %537 : vector<8x1xi32>
    %cst_107 = arith.constant dense<0.000000e+00> : vector<8x32xf32>
    %539 = tpu.matmul %490, %31, %cst_107 {dimension_numbers = #tpu.dot_dimension_numbers<[1], [0], [0], [1], [0, 0, 1, 1], [], []>} : vector<8x32xf32>, vector<32x32xf32>, vector<8x32xf32> -> vector<8x32xf32>
    %540 = arith.addf %532, %539 : vector<8x32xf32>
    %541 = vector.broadcast %36 : vector<1x32xf32> to vector<8x32xf32>
    %542 = arith.addf %540, %541 : vector<8x32xf32>
    %543 = arith.negf %542 : vector<8x32xf32>
    %544 = math.exp %543 : vector<8x32xf32>
    %cst_108 = arith.constant 1.000000e+00 : f32
    %545 = vector.broadcast %cst_108 : f32 to vector<8x32xf32>
    %546 = arith.addf %545, %544 : vector<8x32xf32>
    %547 = arith.divf %545, %546 : vector<8x32xf32>
    %cst_109 = arith.constant dense<0.000000e+00> : vector<8x32xf32>
    %548 = tpu.matmul %490, %32, %cst_109 {dimension_numbers = #tpu.dot_dimension_numbers<[1], [0], [0], [1], [0, 0, 1, 1], [], []>} : vector<8x32xf32>, vector<32x32xf32>, vector<8x32xf32> -> vector<8x32xf32>
    %549 = arith.addf %534, %548 : vector<8x32xf32>
    %550 = vector.broadcast %37 : vector<1x32xf32> to vector<8x32xf32>
    %551 = arith.addf %549, %550 : vector<8x32xf32>
    %552 = arith.negf %551 : vector<8x32xf32>
    %553 = math.exp %552 : vector<8x32xf32>
    %cst_110 = arith.constant 1.000000e+00 : f32
    %554 = vector.broadcast %cst_110 : f32 to vector<8x32xf32>
    %555 = arith.addf %554, %553 : vector<8x32xf32>
    %556 = arith.divf %554, %555 : vector<8x32xf32>
    %cst_111 = arith.constant dense<0.000000e+00> : vector<8x32xf32>
    %557 = tpu.matmul %490, %33, %cst_111 {dimension_numbers = #tpu.dot_dimension_numbers<[1], [0], [0], [1], [0, 0, 1, 1], [], []>} : vector<8x32xf32>, vector<32x32xf32>, vector<8x32xf32> -> vector<8x32xf32>
    %558 = vector.broadcast %38 : vector<1x32xf32> to vector<8x32xf32>
    %559 = arith.addf %557, %558 : vector<8x32xf32>
    %560 = arith.mulf %547, %559 : vector<8x32xf32>
    %561 = arith.addf %536, %560 : vector<8x32xf32>
    %562 = math.tanh %561 : vector<8x32xf32>
    %cst_112 = arith.constant 1.000000e+00 : f32
    %563 = vector.broadcast %cst_112 : f32 to vector<8x32xf32>
    %564 = arith.subf %563, %556 : vector<8x32xf32>
    %565 = arith.mulf %564, %562 : vector<8x32xf32>
    %566 = arith.mulf %556, %490 : vector<8x32xf32>
    %567 = arith.addf %565, %566 : vector<8x32xf32>
    %568 = vector.shape_cast %538 : vector<8x1xi1> to vector<8x1xi1>
    %569 = vector.broadcast %568 : vector<8x1xi1> to vector<8x32xi1>
    %570 = arith.select %569, %567, %490 : vector<8x32xi1>, vector<8x32xf32>
    %571 = vector.extract_strided_slice %26 {offsets = [1, 0, 0], sizes = [1, 8, 32], strides = [1, 1, 1]} : vector<8x8x32xf32> to vector<1x8x32xf32>
    %572 = vector.shape_cast %571 : vector<1x8x32xf32> to vector<8x32xf32>
    %573 = vector.extract_strided_slice %27 {offsets = [1, 0, 0], sizes = [1, 8, 32], strides = [1, 1, 1]} : vector<8x8x32xf32> to vector<1x8x32xf32>
    %574 = vector.shape_cast %573 : vector<1x8x32xf32> to vector<8x32xf32>
    %575 = vector.extract_strided_slice %28 {offsets = [1, 0, 0], sizes = [1, 8, 32], strides = [1, 1, 1]} : vector<8x8x32xf32> to vector<1x8x32xf32>
    %576 = vector.shape_cast %575 : vector<1x8x32xf32> to vector<8x32xf32>
    %c1_i32_113 = arith.constant 1 : i32
    %577 = vector.broadcast %c1_i32_113 : i32 to vector<8x1xi32>
    %578 = arith.cmpi sgt, %0, %577 : vector<8x1xi32>
    %cst_114 = arith.constant dense<0.000000e+00> : vector<8x32xf32>
    %579 = tpu.matmul %530, %41, %cst_114 {dimension_numbers = #tpu.dot_dimension_numbers<[1], [0], [0], [1], [0, 0, 1, 1], [], []>} : vector<8x32xf32>, vector<32x32xf32>, vector<8x32xf32> -> vector<8x32xf32>
    %580 = arith.addf %572, %579 : vector<8x32xf32>
    %581 = vector.broadcast %46 : vector<1x32xf32> to vector<8x32xf32>
    %582 = arith.addf %580, %581 : vector<8x32xf32>
    %583 = arith.negf %582 : vector<8x32xf32>
    %584 = math.exp %583 : vector<8x32xf32>
    %cst_115 = arith.constant 1.000000e+00 : f32
    %585 = vector.broadcast %cst_115 : f32 to vector<8x32xf32>
    %586 = arith.addf %585, %584 : vector<8x32xf32>
    %587 = arith.divf %585, %586 : vector<8x32xf32>
    %cst_116 = arith.constant dense<0.000000e+00> : vector<8x32xf32>
    %588 = tpu.matmul %530, %42, %cst_116 {dimension_numbers = #tpu.dot_dimension_numbers<[1], [0], [0], [1], [0, 0, 1, 1], [], []>} : vector<8x32xf32>, vector<32x32xf32>, vector<8x32xf32> -> vector<8x32xf32>
    %589 = arith.addf %574, %588 : vector<8x32xf32>
    %590 = vector.broadcast %47 : vector<1x32xf32> to vector<8x32xf32>
    %591 = arith.addf %589, %590 : vector<8x32xf32>
    %592 = arith.negf %591 : vector<8x32xf32>
    %593 = math.exp %592 : vector<8x32xf32>
    %cst_117 = arith.constant 1.000000e+00 : f32
    %594 = vector.broadcast %cst_117 : f32 to vector<8x32xf32>
    %595 = arith.addf %594, %593 : vector<8x32xf32>
    %596 = arith.divf %594, %595 : vector<8x32xf32>
    %cst_118 = arith.constant dense<0.000000e+00> : vector<8x32xf32>
    %597 = tpu.matmul %530, %43, %cst_118 {dimension_numbers = #tpu.dot_dimension_numbers<[1], [0], [0], [1], [0, 0, 1, 1], [], []>} : vector<8x32xf32>, vector<32x32xf32>, vector<8x32xf32> -> vector<8x32xf32>
    %598 = vector.broadcast %48 : vector<1x32xf32> to vector<8x32xf32>
    %599 = arith.addf %597, %598 : vector<8x32xf32>
    %600 = arith.mulf %587, %599 : vector<8x32xf32>
    %601 = arith.addf %576, %600 : vector<8x32xf32>
    %602 = math.tanh %601 : vector<8x32xf32>
    %cst_119 = arith.constant 1.000000e+00 : f32
    %603 = vector.broadcast %cst_119 : f32 to vector<8x32xf32>
    %604 = arith.subf %603, %596 : vector<8x32xf32>
    %605 = arith.mulf %604, %602 : vector<8x32xf32>
    %606 = arith.mulf %596, %530 : vector<8x32xf32>
    %607 = arith.addf %605, %606 : vector<8x32xf32>
    %608 = vector.shape_cast %578 : vector<8x1xi1> to vector<8x1xi1>
    %609 = vector.broadcast %608 : vector<8x1xi1> to vector<8x32xi1>
    %610 = arith.select %609, %607, %530 : vector<8x32xi1>, vector<8x32xf32>
    %611 = vector.extract_strided_slice %13 {offsets = [7, 0, 0], sizes = [1, 8, 32], strides = [1, 1, 1]} : vector<8x8x32xf32> to vector<1x8x32xf32>
    %612 = vector.shape_cast %611 : vector<1x8x32xf32> to vector<8x32xf32>
    %613 = vector.extract_strided_slice %14 {offsets = [7, 0, 0], sizes = [1, 8, 32], strides = [1, 1, 1]} : vector<8x8x32xf32> to vector<1x8x32xf32>
    %614 = vector.shape_cast %613 : vector<1x8x32xf32> to vector<8x32xf32>
    %615 = vector.extract_strided_slice %15 {offsets = [7, 0, 0], sizes = [1, 8, 32], strides = [1, 1, 1]} : vector<8x8x32xf32> to vector<1x8x32xf32>
    %616 = vector.shape_cast %615 : vector<1x8x32xf32> to vector<8x32xf32>
    %c7_i32_120 = arith.constant 7 : i32
    %617 = vector.broadcast %c7_i32_120 : i32 to vector<8x1xi32>
    %618 = arith.cmpi sgt, %0, %617 : vector<8x1xi32>
    %cst_121 = arith.constant dense<0.000000e+00> : vector<8x32xf32>
    %619 = tpu.matmul %570, %31, %cst_121 {dimension_numbers = #tpu.dot_dimension_numbers<[1], [0], [0], [1], [0, 0, 1, 1], [], []>} : vector<8x32xf32>, vector<32x32xf32>, vector<8x32xf32> -> vector<8x32xf32>
    %620 = arith.addf %612, %619 : vector<8x32xf32>
    %621 = vector.broadcast %36 : vector<1x32xf32> to vector<8x32xf32>
    %622 = arith.addf %620, %621 : vector<8x32xf32>
    %623 = arith.negf %622 : vector<8x32xf32>
    %624 = math.exp %623 : vector<8x32xf32>
    %cst_122 = arith.constant 1.000000e+00 : f32
    %625 = vector.broadcast %cst_122 : f32 to vector<8x32xf32>
    %626 = arith.addf %625, %624 : vector<8x32xf32>
    %627 = arith.divf %625, %626 : vector<8x32xf32>
    %cst_123 = arith.constant dense<0.000000e+00> : vector<8x32xf32>
    %628 = tpu.matmul %570, %32, %cst_123 {dimension_numbers = #tpu.dot_dimension_numbers<[1], [0], [0], [1], [0, 0, 1, 1], [], []>} : vector<8x32xf32>, vector<32x32xf32>, vector<8x32xf32> -> vector<8x32xf32>
    %629 = arith.addf %614, %628 : vector<8x32xf32>
    %630 = vector.broadcast %37 : vector<1x32xf32> to vector<8x32xf32>
    %631 = arith.addf %629, %630 : vector<8x32xf32>
    %632 = arith.negf %631 : vector<8x32xf32>
    %633 = math.exp %632 : vector<8x32xf32>
    %cst_124 = arith.constant 1.000000e+00 : f32
    %634 = vector.broadcast %cst_124 : f32 to vector<8x32xf32>
    %635 = arith.addf %634, %633 : vector<8x32xf32>
    %636 = arith.divf %634, %635 : vector<8x32xf32>
    %cst_125 = arith.constant dense<0.000000e+00> : vector<8x32xf32>
    %637 = tpu.matmul %570, %33, %cst_125 {dimension_numbers = #tpu.dot_dimension_numbers<[1], [0], [0], [1], [0, 0, 1, 1], [], []>} : vector<8x32xf32>, vector<32x32xf32>, vector<8x32xf32> -> vector<8x32xf32>
    %638 = vector.broadcast %38 : vector<1x32xf32> to vector<8x32xf32>
    %639 = arith.addf %637, %638 : vector<8x32xf32>
    %640 = arith.mulf %627, %639 : vector<8x32xf32>
    %641 = arith.addf %616, %640 : vector<8x32xf32>
    %642 = math.tanh %641 : vector<8x32xf32>
    %cst_126 = arith.constant 1.000000e+00 : f32
    %643 = vector.broadcast %cst_126 : f32 to vector<8x32xf32>
    %644 = arith.subf %643, %636 : vector<8x32xf32>
    %645 = arith.mulf %644, %642 : vector<8x32xf32>
    %646 = arith.mulf %636, %570 : vector<8x32xf32>
    %647 = arith.addf %645, %646 : vector<8x32xf32>
    %648 = vector.shape_cast %618 : vector<8x1xi1> to vector<8x1xi1>
    %649 = vector.broadcast %648 : vector<8x1xi1> to vector<8x32xi1>
    %650 = arith.select %649, %647, %570 : vector<8x32xi1>, vector<8x32xf32>
    %651 = vector.extract_strided_slice %26 {offsets = [0, 0, 0], sizes = [1, 8, 32], strides = [1, 1, 1]} : vector<8x8x32xf32> to vector<1x8x32xf32>
    %652 = vector.shape_cast %651 : vector<1x8x32xf32> to vector<8x32xf32>
    %653 = vector.extract_strided_slice %27 {offsets = [0, 0, 0], sizes = [1, 8, 32], strides = [1, 1, 1]} : vector<8x8x32xf32> to vector<1x8x32xf32>
    %654 = vector.shape_cast %653 : vector<1x8x32xf32> to vector<8x32xf32>
    %655 = vector.extract_strided_slice %28 {offsets = [0, 0, 0], sizes = [1, 8, 32], strides = [1, 1, 1]} : vector<8x8x32xf32> to vector<1x8x32xf32>
    %656 = vector.shape_cast %655 : vector<1x8x32xf32> to vector<8x32xf32>
    %c0_i32_127 = arith.constant 0 : i32
    %657 = vector.broadcast %c0_i32_127 : i32 to vector<8x1xi32>
    %658 = arith.cmpi sgt, %0, %657 : vector<8x1xi32>
    %cst_128 = arith.constant dense<0.000000e+00> : vector<8x32xf32>
    %659 = tpu.matmul %610, %41, %cst_128 {dimension_numbers = #tpu.dot_dimension_numbers<[1], [0], [0], [1], [0, 0, 1, 1], [], []>} : vector<8x32xf32>, vector<32x32xf32>, vector<8x32xf32> -> vector<8x32xf32>
    %660 = arith.addf %652, %659 : vector<8x32xf32>
    %661 = vector.broadcast %46 : vector<1x32xf32> to vector<8x32xf32>
    %662 = arith.addf %660, %661 : vector<8x32xf32>
    %663 = arith.negf %662 : vector<8x32xf32>
    %664 = math.exp %663 : vector<8x32xf32>
    %cst_129 = arith.constant 1.000000e+00 : f32
    %665 = vector.broadcast %cst_129 : f32 to vector<8x32xf32>
    %666 = arith.addf %665, %664 : vector<8x32xf32>
    %667 = arith.divf %665, %666 : vector<8x32xf32>
    %cst_130 = arith.constant dense<0.000000e+00> : vector<8x32xf32>
    %668 = tpu.matmul %610, %42, %cst_130 {dimension_numbers = #tpu.dot_dimension_numbers<[1], [0], [0], [1], [0, 0, 1, 1], [], []>} : vector<8x32xf32>, vector<32x32xf32>, vector<8x32xf32> -> vector<8x32xf32>
    %669 = arith.addf %654, %668 : vector<8x32xf32>
    %670 = vector.broadcast %47 : vector<1x32xf32> to vector<8x32xf32>
    %671 = arith.addf %669, %670 : vector<8x32xf32>
    %672 = arith.negf %671 : vector<8x32xf32>
    %673 = math.exp %672 : vector<8x32xf32>
    %cst_131 = arith.constant 1.000000e+00 : f32
    %674 = vector.broadcast %cst_131 : f32 to vector<8x32xf32>
    %675 = arith.addf %674, %673 : vector<8x32xf32>
    %676 = arith.divf %674, %675 : vector<8x32xf32>
    %cst_132 = arith.constant dense<0.000000e+00> : vector<8x32xf32>
    %677 = tpu.matmul %610, %43, %cst_132 {dimension_numbers = #tpu.dot_dimension_numbers<[1], [0], [0], [1], [0, 0, 1, 1], [], []>} : vector<8x32xf32>, vector<32x32xf32>, vector<8x32xf32> -> vector<8x32xf32>
    %678 = vector.broadcast %48 : vector<1x32xf32> to vector<8x32xf32>
    %679 = arith.addf %677, %678 : vector<8x32xf32>
    %680 = arith.mulf %667, %679 : vector<8x32xf32>
    %681 = arith.addf %656, %680 : vector<8x32xf32>
    %682 = math.tanh %681 : vector<8x32xf32>
    %cst_133 = arith.constant 1.000000e+00 : f32
    %683 = vector.broadcast %cst_133 : f32 to vector<8x32xf32>
    %684 = arith.subf %683, %676 : vector<8x32xf32>
    %685 = arith.mulf %684, %682 : vector<8x32xf32>
    %686 = arith.mulf %676, %610 : vector<8x32xf32>
    %687 = arith.addf %685, %686 : vector<8x32xf32>
    %688 = vector.shape_cast %658 : vector<8x1xi1> to vector<8x1xi1>
    %689 = vector.broadcast %688 : vector<8x1xi1> to vector<8x32xi1>
    %690 = arith.select %689, %687, %610 : vector<8x32xi1>, vector<8x32xf32>
    %691 = tpu.concatenate %690, %650 in 1 : vector<8x32xf32>, vector<8x32xf32> -> vector<8x64xf32>
    %c0_134 = arith.constant 0 : index
    %c0_135 = arith.constant 0 : index
    %692 = vector.load %arg6[%c0_134, %c0_135] : memref<64x4xf32, #tpu.memory_space<vmem>>, vector<64x4xf32>
    %cst_136 = arith.constant dense<0.000000e+00> : vector<8x4xf32>
    %693 = tpu.matmul %691, %692, %cst_136 {dimension_numbers = #tpu.dot_dimension_numbers<[1], [0], [0], [1], [0, 0, 1, 1], [], []>} : vector<8x64xf32>, vector<64x4xf32>, vector<8x4xf32> -> vector<8x4xf32>
    %c0_137 = arith.constant 0 : index
    %c0_138 = arith.constant 0 : index
    %694 = vector.load %arg7[%c0_137, %c0_138] : memref<1x4xf32, #tpu.memory_space<vmem>>, vector<1x4xf32>
    %695 = vector.broadcast %694 : vector<1x4xf32> to vector<8x4xf32>
    %696 = arith.addf %693, %695 : vector<8x4xf32>
    %697 = arith.negf %696 : vector<8x4xf32>
    %698 = math.exp %697 : vector<8x4xf32>
    %cst_139 = arith.constant 1.000000e+00 : f32
    %699 = vector.broadcast %cst_139 : f32 to vector<8x4xf32>
    %700 = arith.addf %699, %698 : vector<8x4xf32>
    %701 = arith.divf %699, %700 : vector<8x4xf32>
    %c0_140 = arith.constant 0 : index
    %c0_141 = arith.constant 0 : index
    %702 = vector.load %arg8[%c0_140, %c0_141] : memref<8x4xf32, #tpu.memory_space<vmem>>, vector<8x4xf32>
    tpu.vector_store %arg8[%c0_140, %c0_141], %701 {strides = array<i32>} : memref<8x4xf32, #tpu.memory_space<vmem>>, vector<8x4xf32>,
    return
  }
}

</mosaic_0001>

<llo_original>
// kernel: tpu_custom_call.1
$region0: #{tpu_custom_call.1}
  #allocation0 [shape = 'u32[]', space=smem, size = 0x4, offset = 0x4, fixed_abs, tag = 'smem constant byte address 0x4 - core index']
  #allocation1 [shape = 'u32[144,128]{1,0:T(1,128)}', space=vmem, size = 0x12000, scoped, tag = 'internal scratch']
  %s0 = inlined_call_operand.vmem [shape: s32[8,1], index: 0, kind: input, shape index: {}]
  %s1 = inlined_call_operand.vmem [shape: f32[8,8,32], index: 1, kind: input, shape index: {}]
  %s2 = inlined_call_operand.hbm [shape: f32[2,32,96], index: 2, kind: input, shape index: {}]
  %s3 = inlined_call_operand.hbm [shape: f32[2,32,96], index: 3, kind: input, shape index: {}]
  %s4 = inlined_call_operand.vmem [shape: f32[2,1,96], index: 4, kind: input, shape index: {}]
  %s5 = inlined_call_operand.vmem [shape: f32[2,1,96], index: 5, kind: input, shape index: {}]
  %s6 = inlined_call_operand.vmem [shape: f32[64,4], index: 6, kind: input, shape index: {}]
  %s7 = inlined_call_operand.vmem [shape: f32[1,4], index: 7, kind: input, shape index: {}]
  %s8 = inlined_call_operand.vmem [shape: f32[8,4], index: 8, kind: output, shape index: {}]
  %s9 = sld [smem:[#allocation0]]
  $region50: #{tpu_custom_call.1} parent=0
    _
  %s11 = ssub.s32 1, %s9
  %s12 = scalar_select 0, %s11, %s9
  $region1: #{tpu_custom_call.1} parent=0
    #allocation2 [shape = 'u8[32768]{0}', space=vmem, size = 0x8000, scoped, tag = 'input window, operand 2, single buffered']
    #allocation3 [shape = 's32[1]{0}', space=sflag, size = 0x4, scoped, tag = 'scoped memory for tpu_custom_call.1']
    #allocation4 [shape = 'u8[32768]{0}', space=vmem, size = 0x8000, scoped, tag = 'input window, operand 3, single buffered']
    #allocation5 [shape = 's32[1]{0}', space=sflag, size = 0x4, scoped, tag = 'scoped memory for tpu_custom_call.1']
    %13 = vsyncpa [#allocation3], 0
    %14 = vsyncpa [#allocation5], 0
    // Predicated region
    $region2: #{tpu_custom_call.1} parent=1 // pred_check
      _
    $region3: #{tpu_custom_call.1} parent=1 // pred_check_branch
      %16 = sbr.rel (0) target = $region5
    $region4: #{tpu_custom_call.1} parent=1 // pred_region
      _
    $region5: #{tpu_custom_call.1} parent=1 // pred_fallthru
      _
    // Predicated region
    $region6: #{tpu_custom_call.1} parent=1 // pred_check
      _
    $region7: #{tpu_custom_call.1} parent=1 // pred_check_branch
      %18 = sbr.rel (0) target = $region9
    $region8: #{tpu_custom_call.1} parent=1 // pred_region
      _
    $region9: #{tpu_custom_call.1} parent=1 // pred_fallthru
      _
    // Predicated region
    $region10: #{tpu_custom_call.1} parent=1 // pred_check
      _
    $region11: #{tpu_custom_call.1} parent=1 // pred_check_branch
      %20 = sbr.rel (0) target = $region13
    $region12: #{tpu_custom_call.1} parent=1 // pred_region
      %s22 = ssub.s32 1024, 1024
      %23 = vsyncadd [#allocation3], %s22
      %s24 = sshll.u32 [#allocation2], 4
      %s25 = int_to_ptr.vmem [resolvable:$true] %s24
      %30 = dma.hbm_to_vmem [thread:$0]  %s2, 1024, %s25, [#allocation3], 128, 128, 8
    $region13: #{tpu_custom_call.1} parent=1 // pred_fallthru
      _
    // Predicated region
    $region14: #{tpu_custom_call.1} parent=1 // pred_check
      _
    $region15: #{tpu_custom_call.1} parent=1 // pred_check_branch
      %32 = sbr.rel (0) target = $region17
    $region16: #{tpu_custom_call.1} parent=1 // pred_region
      %s34 = ssub.s32 1024, 1024
      %35 = vsyncadd [#allocation5], %s34
      %s36 = sshll.u32 [#allocation4], 4
      %s37 = int_to_ptr.vmem [resolvable:$true] %s36
      %42 = dma.hbm_to_vmem [thread:$0]  %s3, 1024, %s37, [#allocation5], 128, 128, 8
    $region17: #{tpu_custom_call.1} parent=1 // pred_fallthru
      _
    // Predicated region
    $region18: #{tpu_custom_call.1} parent=1 // pred_check
      _
    $region19: #{tpu_custom_call.1} parent=1 // pred_check_branch
      %44 = sbr.rel (0) target = $region21
    $region20: #{tpu_custom_call.1} parent=1 // pred_region
      _
    $region21: #{tpu_custom_call.1} parent=1 // pred_fallthru
      _
    // Predicated region
    $region22: #{tpu_custom_call.1} parent=1 // pred_check
      _
    $region23: #{tpu_custom_call.1} parent=1 // pred_check_branch
      %46 = sbr.rel (0) target = $region25
    $region24: #{tpu_custom_call.1} parent=1 // pred_region
      _
    $region25: #{tpu_custom_call.1} parent=1 // pred_fallthru
      _
    // Predicated region
    $region26: #{tpu_custom_call.1} parent=1 // pred_check
      _
    $region27: #{tpu_custom_call.1} parent=1 // pred_check_branch
      %48 = sbr.rel (0) target = $region29
    $region28: #{tpu_custom_call.1} parent=1 // pred_region
      _
    $region29: #{tpu_custom_call.1} parent=1 // pred_fallthru
      _
    // Predicated region
    $region30: #{tpu_custom_call.1} parent=1 // pred_check
      _
    $region31: #{tpu_custom_call.1} parent=1 // pred_check_branch
      %50 = sbr.rel (0) target = $region33
    $region32: #{tpu_custom_call.1} parent=1 // pred_region
      _
    $region33: #{tpu_custom_call.1} parent=1 // pred_fallthru
      _
    // Predicated region
    $region34: #{tpu_custom_call.1} parent=1 // pred_check
      _
    $region35: #{tpu_custom_call.1} parent=1 // pred_check_branch
      %52 = sbr.rel (0) target = $region37
    $region36: #{tpu_custom_call.1} parent=1 // pred_region
      %53 = dma.done [#allocation3], 1024
    $region37: #{tpu_custom_call.1} parent=1 // pred_fallthru
      _
    // Predicated region
    $region38: #{tpu_custom_call.1} parent=1 // pred_check
      _
    $region39: #{tpu_custom_call.1} parent=1 // pred_check_branch
      %55 = sbr.rel (0) target = $region41
    $region40: #{tpu_custom_call.1} parent=1 // pred_region
      %56 = dma.done [#allocation5], 1024
    $region41: #{tpu_custom_call.1} parent=1 // pred_fallthru
      _
    %v57 = vld [vmem:[%s0] sm:$0xff]
    %v58 = vld [vmem:[%s1] sm:$0xff]
    %v59 = vld [vmem:[%s1 + $0x8] sm:$0xff]
    %v60 = vld [vmem:[%s1 + $0x10] sm:$0xff]
    %v61 = vld [vmem:[%s1 + $0x18] sm:$0xff]
    %v62 = vld [vmem:[%s1 + $0x20] sm:$0xff]
    %v63 = vld [vmem:[%s1 + $0x28] sm:$0xff]
    %v64 = vld [vmem:[%s1 + $0x30] sm:$0xff]
    %v65 = vld [vmem:[%s1 + $0x38] sm:$0xff]
    %v66 = vld [vmem:[#allocation2] sm:$0xff]
    %v67 = vld [vmem:[#allocation2 + $0x8] sm:$0xff]
    %v68 = vld [vmem:[#allocation2 + $0x10] sm:$0xff]
    %v69 = vld [vmem:[#allocation2 + $0x18] sm:$0xff]
    %v70 = vld [vmem:[%s4] sm:$0x1]
    %v72 = vlaneseq
    %v73 = vshrl.u32 %v72, 7
    %v74 = vsub.s32 0, %v73
    %v75 = vrot.slane %v70, %v74
    %vm77 = vcmask 261120
    %v79 = vsel %vm77, %v58, 0
    %v82 = vsel %vm77, %v59, 0
    %v85 = vsel %vm77, %v60, 0
    %v88 = vsel %vm77, %v61, 0
    %v91 = vsel %vm77, %v62, 0
    %v94 = vsel %vm77, %v63, 0
    %v97 = vsel %vm77, %v64, 0
    %v100 = vsel %vm77, %v65, 0
    %102 = vmatprep.subr.mxu0 0.0
    %103 = vmatpush1.msra.mxu0 0.0
    %104 = vmatprep.subr.mxu0 0.0
    %105 = vmatpush1.msra.mxu0 0.0
    %106 = vmatprep.subr.mxu0 0.0
    %107 = vmatpush1.msra.mxu0 0.0
    %108 = vmatprep.subr.mxu0 0.0
    %109 = vmatpush1.msra.mxu0 0.0
    %110 = vmatprep.subr.mxu0 0.0
    %111 = vmatpush1.msra.mxu0 0.0
    %112 = vmatprep.subr.mxu0 0.0
    %113 = vmatpush1.msra.mxu0 0.0
    %114 = vmatprep.subr.mxu0 0.0
    %115 = vmatpush1.msra.mxu0 0.0
    %116 = vmatprep.subr.mxu0 0.0
    %117 = vmatpush1.msra.mxu0 0.0
    %118 = vmatprep.subr.mxu0 0.0
    %119 = vmatpush1.msra.mxu0 0.0
    %120 = vmatprep.subr.mxu0 0.0
    %121 = vmatpush1.msra.mxu0 0.0
    %122 = vmatprep.subr.mxu0 0.0
    %123 = vmatpush1.msra.mxu0 0.0
    %124 = vmatprep.subr.mxu0 0.0
    %125 = vmatpush1.msra.mxu0 0.0
    %126 = vmatprep.subr.mxu0 0.0
    %127 = vmatpush1.msra.mxu0 %v69
    %128 = vmatprep.subr.mxu0 0.0
    %129 = vmatpush1.msra.mxu0 %v68
    %130 = vmatprep.subr.mxu0 0.0
    %131 = vmatpush1.msra.mxu0 %v67
    %132 = vmatprep.subr.mxu0 0.0
    %133 = vmatpush1.msra.mxu0 %v66
    %134 = vmatprep.subr.mxu0 0.0
    %135 = vmatpush2.msra.mxu0 0.0
    %136 = vmatprep.subr.mxu0 0.0
    %137 = vmatpush2.msra.mxu0 0.0
    %138 = vmatprep.subr.mxu0 0.0
    %139 = vmatpush2.msra.mxu0 0.0
    %140 = vmatprep.subr.mxu0 0.0
    %141 = vmatpush2.msra.mxu0 0.0
    %142 = vmatprep.subr.mxu0 0.0
    %143 = vmatpush2.msra.mxu0 0.0
    %144 = vmatprep.subr.mxu0 0.0
    %145 = vmatpush2.msra.mxu0 0.0
    %146 = vmatprep.subr.mxu0 0.0
    %147 = vmatpush2.msra.mxu0 0.0
    %148 = vmatprep.subr.mxu0 0.0
    %149 = vmatpush2.msra.mxu0 0.0
    %150 = vmatprep.subr.mxu0 0.0
    %151 = vmatpush2.msra.mxu0 0.0
    %152 = vmatprep.subr.mxu0 0.0
    %153 = vmatpush2.msra.mxu0 0.0
    %154 = vmatprep.subr.mxu0 0.0
    %155 = vmatpush2.msra.mxu0 0.0
    %156 = vmatprep.subr.mxu0 0.0
    %157 = vmatpush2.msra.mxu0 0.0
    %158 = vmatprep.subr.mxu0 0.0
    %159 = vmatpush2.msra.mxu0 0.0
    %160 = vmatprep.subr.mxu0 0.0
    %161 = vmatpush2.msra.mxu0 0.0
    %162 = vmatprep.subr.mxu0 0.0
    %163 = vmatpush2.msra.mxu0 0.0
    %164 = vmatprep.subr.mxu0 0.0
    %165 = vmatpush2.msra.mxu0 0.0
    %166 = vmatprep.mubr.f32.mxu0 0.0
    %167 = vmatmul.mubr.f32.gmra.mxu0 %v79
    %v168 = vpop.f32.mrf.mxu0
    %v169 = vadd.f32 %v75, %v168
    %v170 = vpop.f32.mrf.mxu0
    %171 = vmatprep.mubr.f32.mxu0 0.0
    %172 = vmatmul.mubr.f32.gmra.mxu0 %v82
    %v173 = vpop.f32.mrf.mxu0
    %v174 = vadd.f32 %v75, %v173
    %v175 = vpop.f32.mrf.mxu0
    %176 = vmatprep.mubr.f32.mxu0 0.0
    %177 = vmatmul.mubr.f32.gmra.mxu0 %v85
    %v178 = vpop.f32.mrf.mxu0
    %v179 = vadd.f32 %v75, %v178
    %v180 = vpop.f32.mrf.mxu0
    %181 = vmatprep.mubr.f32.mxu0 0.0
    %182 = vmatmul.mubr.f32.gmra.mxu0 %v88
    %v183 = vpop.f32.mrf.mxu0
    %v184 = vadd.f32 %v75, %v183
    %v185 = vpop.f32.mrf.mxu0
    %186 = vmatprep.mubr.f32.mxu0 0.0
    %187 = vmatmul.mubr.f32.gmra.mxu0 %v91
    %v188 = vpop.f32.mrf.mxu0
    %v189 = vadd.f32 %v75, %v188
    %v190 = vpop.f32.mrf.mxu0
    %191 = vmatprep.mubr.f32.mxu0 0.0
    %192 = vmatmul.mubr.f32.gmra.mxu0 %v94
    %v193 = vpop.f32.mrf.mxu0
    %v194 = vadd.f32 %v75, %v193
    %v195 = vpop.f32.mrf.mxu0
    %196 = vmatprep.mubr.f32.mxu0 0.0
    %197 = vmatmul.mubr.f32.gmra.mxu0 %v97
    %v198 = vpop.f32.mrf.mxu0
    %v199 = vadd.f32 %v75, %v198
    %v200 = vpop.f32.mrf.mxu0
    %201 = vmatprep.mubr.f32.mxu0 0.0
    %202 = vmatmul.mubr.f32.gmra.mxu0 %v100
    %v203 = vpop.f32.mrf.mxu0
    %v204 = vadd.f32 %v75, %v203
    %v205 = vpop.f32.mrf.mxu0
    %206 = vdwg.mxu0
    %s207 = scalar_lea.vmem [#allocation2], 32
    %v208 = vld [vmem:[%s207] sm:$0xff]
    %v209 = vld [vmem:[%s207 + $0x8] sm:$0xff]
    %v210 = vld [vmem:[%s207 + $0x10] sm:$0xff]
    %v211 = vld [vmem:[%s207 + $0x18] sm:$0xff]
    %s212 = scalar_lea.vmem %s4, 1
    %v213 = vld [vmem:[%s212] sm:$0x1]
    %v215 = vlaneseq
    %v216 = vshrl.u32 %v215, 7
    %v217 = vsub.s32 0, %v216
    %v218 = vrot.slane %v213, %v217
    %220 = vmatprep.subr.mxu0 0.0
    %221 = vmatpush1.msra.mxu0 0.0
    %222 = vmatprep.subr.mxu0 0.0
    %223 = vmatpush1.msra.mxu0 0.0
    %224 = vmatprep.subr.mxu0 0.0
    %225 = vmatpush1.msra.mxu0 0.0
    %226 = vmatprep.subr.mxu0 0.0
    %227 = vmatpush1.msra.mxu0 0.0
    %228 = vmatprep.subr.mxu0 0.0
    %229 = vmatpush1.msra.mxu0 0.0
    %230 = vmatprep.subr.mxu0 0.0
    %231 = vmatpush1.msra.mxu0 0.0
    %232 = vmatprep.subr.mxu0 0.0
    %233 = vmatpush1.msra.mxu0 0.0
    %234 = vmatprep.subr.mxu0 0.0
    %235 = vmatpush1.msra.mxu0 0.0
    %236 = vmatprep.subr.mxu0 0.0
    %237 = vmatpush1.msra.mxu0 0.0
    %238 = vmatprep.subr.mxu0 0.0
    %239 = vmatpush1.msra.mxu0 0.0
    %240 = vmatprep.subr.mxu0 0.0
    %241 = vmatpush1.msra.mxu0 0.0
    %242 = vmatprep.subr.mxu0 0.0
    %243 = vmatpush1.msra.mxu0 0.0
    %244 = vmatprep.subr.mxu0 0.0
    %245 = vmatpush1.msra.mxu0 %v211
    %246 = vmatprep.subr.mxu0 0.0
    %247 = vmatpush1.msra.mxu0 %v210
    %248 = vmatprep.subr.mxu0 0.0
    %249 = vmatpush1.msra.mxu0 %v209
    %250 = vmatprep.subr.mxu0 0.0
    %251 = vmatpush1.msra.mxu0 %v208
    %252 = vmatprep.subr.mxu0 0.0
    %253 = vmatpush2.msra.mxu0 0.0
    %254 = vmatprep.subr.mxu0 0.0
    %255 = vmatpush2.msra.mxu0 0.0
    %256 = vmatprep.subr.mxu0 0.0
    %257 = vmatpush2.msra.mxu0 0.0
    %258 = vmatprep.subr.mxu0 0.0
    %259 = vmatpush2.msra.mxu0 0.0
    %260 = vmatprep.subr.mxu0 0.0
    %261 = vmatpush2.msra.mxu0 0.0
    %262 = vmatprep.subr.mxu0 0.0
    %263 = vmatpush2.msra.mxu0 0.0
    %264 = vmatprep.subr.mxu0 0.0
    %265 = vmatpush2.msra.mxu0 0.0
    %266 = vmatprep.subr.mxu0 0.0
    %267 = vmatpush2.msra.mxu0 0.0
    %268 = vmatprep.subr.mxu0 0.0
    %269 = vmatpush2.msra.mxu0 0.0
    %270 = vmatprep.subr.mxu0 0.0
    %271 = vmatpush2.msra.mxu0 0.0
    %272 = vmatprep.subr.mxu0 0.0
    %273 = vmatpush2.msra.mxu0 0.0
    %274 = vmatprep.subr.mxu0 0.0
    %275 = vmatpush2.msra.mxu0 0.0
    %276 = vmatprep.subr.mxu0 0.0
    %277 = vmatpush2.msra.mxu0 0.0
    %278 = vmatprep.subr.mxu0 0.0
    %279 = vmatpush2.msra.mxu0 0.0
    %280 = vmatprep.subr.mxu0 0.0
    %281 = vmatpush2.msra.mxu0 0.0
    %282 = vmatprep.subr.mxu0 0.0
    %283 = vmatpush2.msra.mxu0 0.0
    %284 = vmatprep.mubr.f32.mxu0 0.0
    %285 = vmatmul.mubr.f32.gmra.mxu0 %v79
    %v286 = vpop.f32.mrf.mxu0
    %v287 = vadd.f32 %v218, %v286
    %v288 = vpop.f32.mrf.mxu0
    %289 = vmatprep.mubr.f32.mxu0 0.0
    %290 = vmatmul.mubr.f32.gmra.mxu0 %v82
    %v291 = vpop.f32.mrf.mxu0
    %v292 = vadd.f32 %v218, %v291
    %v293 = vpop.f32.mrf.mxu0
    %294 = vmatprep.mubr.f32.mxu0 0.0
    %295 = vmatmul.mubr.f32.gmra.mxu0 %v85
    %v296 = vpop.f32.mrf.mxu0
    %v297 = vadd.f32 %v218, %v296
    %v298 = vpop.f32.mrf.mxu0
    %299 = vmatprep.mubr.f32.mxu0 0.0
    %300 = vmatmul.mubr.f32.gmra.mxu0 %v88
    %v301 = vpop.f32.mrf.mxu0
    %v302 = vadd.f32 %v218, %v301
    %v303 = vpop.f32.mrf.mxu0
    %304 = vmatprep.mubr.f32.mxu0 0.0
    %305 = vmatmul.mubr.f32.gmra.mxu0 %v91
    %v306 = vpop.f32.mrf.mxu0
    %v307 = vadd.f32 %v218, %v306
    %v308 = vpop.f32.mrf.mxu0
    %309 = vmatprep.mubr.f32.mxu0 0.0
    %310 = vmatmul.mubr.f32.gmra.mxu0 %v94
    %v311 = vpop.f32.mrf.mxu0
    %v312 = vadd.f32 %v218, %v311
    %v313 = vpop.f32.mrf.mxu0
    %314 = vmatprep.mubr.f32.mxu0 0.0
    %315 = vmatmul.mubr.f32.gmra.mxu0 %v97
    %v316 = vpop.f32.mrf.mxu0
    %v317 = vadd.f32 %v218, %v316
    %v318 = vpop.f32.mrf.mxu0
    %319 = vmatprep.mubr.f32.mxu0 0.0
    %320 = vmatmul.mubr.f32.gmra.mxu0 %v100
    %v321 = vpop.f32.mrf.mxu0
    %v322 = vadd.f32 %v218, %v321
    %v323 = vpop.f32.mrf.mxu0
    %324 = vdwg.mxu0
    %v325 = vld [vmem:[#allocation4] sm:$0xff]
    %v326 = vld [vmem:[#allocation4 + $0x8] sm:$0xff]
    %v327 = vld [vmem:[#allocation4 + $0x10] sm:$0xff]
    %v328 = vld [vmem:[#allocation4 + $0x18] sm:$0xff]
    %v329 = vld [vmem:[%s5] sm:$0x1]
    %s330 = scalar_lea.vmem [#allocation4], 32
    %v331 = vld [vmem:[%s330] sm:$0xff]
    %v332 = vld [vmem:[%s330 + $0x8] sm:$0xff]
    %v333 = vld [vmem:[%s330 + $0x10] sm:$0xff]
    %v334 = vld [vmem:[%s330 + $0x18] sm:$0xff]
    %s335 = scalar_lea.vmem %s5, 1
    %v336 = vld [vmem:[%s335] sm:$0x1]
    %vm337 = vcmp.gt.s32.totalorder %v57, 0
    %v339 = vsel %vm77, 0.0, 0
    %341 = vmatprep.subr.mxu0 0.0
    %342 = vmatpush1.msra.mxu0 0.0
    %343 = vmatprep.subr.mxu0 0.0
    %344 = vmatpush1.msra.mxu0 0.0
    %345 = vmatprep.subr.mxu0 0.0
    %346 = vmatpush1.msra.mxu0 0.0
    %347 = vmatprep.subr.mxu0 0.0
    %348 = vmatpush1.msra.mxu0 0.0
    %349 = vmatprep.subr.mxu0 0.0
    %350 = vmatpush1.msra.mxu0 0.0
    %351 = vmatprep.subr.mxu0 0.0
    %352 = vmatpush1.msra.mxu0 0.0
    %353 = vmatprep.subr.mxu0 0.0
    %354 = vmatpush1.msra.mxu0 0.0
    %355 = vmatprep.subr.mxu0 0.0
    %356 = vmatpush1.msra.mxu0 0.0
    %357 = vmatprep.subr.mxu0 0.0
    %358 = vmatpush1.msra.mxu0 0.0
    %359 = vmatprep.subr.mxu0 0.0
    %360 = vmatpush1.msra.mxu0 0.0
    %361 = vmatprep.subr.mxu0 0.0
    %362 = vmatpush1.msra.mxu0 0.0
    %363 = vmatprep.subr.mxu0 0.0
    %364 = vmatpush1.msra.mxu0 0.0
    %365 = vmatprep.subr.mxu0 0.0
    %366 = vmatpush1.msra.mxu0 %v328
    %367 = vmatprep.subr.mxu0 0.0
    %368 = vmatpush1.msra.mxu0 %v327
    %369 = vmatprep.subr.mxu0 0.0
    %370 = vmatpush1.msra.mxu0 %v326
    %371 = vmatprep.subr.mxu0 0.0
    %372 = vmatpush1.msra.mxu0 %v325
    %373 = vmatprep.subr.mxu0 0.0
    %374 = vmatpush2.msra.mxu0 0.0
    %375 = vmatprep.subr.mxu0 0.0
    %376 = vmatpush2.msra.mxu0 0.0
    %377 = vmatprep.subr.mxu0 0.0
    %378 = vmatpush2.msra.mxu0 0.0
    %379 = vmatprep.subr.mxu0 0.0
    %380 = vmatpush2.msra.mxu0 0.0
    %381 = vmatprep.subr.mxu0 0.0
    %382 = vmatpush2.msra.mxu0 0.0
    %383 = vmatprep.subr.mxu0 0.0
    %384 = vmatpush2.msra.mxu0 0.0
    %385 = vmatprep.subr.mxu0 0.0
    %386 = vmatpush2.msra.mxu0 0.0
    %387 = vmatprep.subr.mxu0 0.0
    %388 = vmatpush2.msra.mxu0 0.0
    %389 = vmatprep.subr.mxu0 0.0
    %390 = vmatpush2.msra.mxu0 0.0
    %391 = vmatprep.subr.mxu0 0.0
    %392 = vmatpush2.msra.mxu0 0.0
    %393 = vmatprep.subr.mxu0 0.0
    %394 = vmatpush2.msra.mxu0 0.0
    %395 = vmatprep.subr.mxu0 0.0
    %396 = vmatpush2.msra.mxu0 0.0
    %397 = vmatprep.subr.mxu0 0.0
    %398 = vmatpush2.msra.mxu0 0.0
    %399 = vmatprep.subr.mxu0 0.0
    %400 = vmatpush2.msra.mxu0 0.0
    %401 = vmatprep.subr.mxu0 0.0
    %402 = vmatpush2.msra.mxu0 0.0
    %403 = vmatprep.subr.mxu0 0.0
    %404 = vmatpush2.msra.mxu0 0.0
    %405 = vmatprep.mubr.f32.mxu0 0.0
    %406 = vmatmul.mubr.f32.gmra.mxu0 %v339
    %v407 = vpop.f32.mrf.mxu0
    %v408 = vadd.f32 0.0, %v407
    %v409 = vpop.f32.mrf.mxu0
    %410 = vdwg.mxu0
    %v411 = vadd.f32 %v169, %v408
    %v413 = vlaneseq
    %v414 = vshrl.u32 %v413, 7
    %v415 = vsub.s32 0, %v414
    %v416 = vrot.slane %v329, %v415
    %v418 = vadd.f32 %v411, %v416
    %v419 = vxor.u32 %v418, 2147483648
    %v420 = vmul.f32 %v419, 1.442695
    %v421 = vpow.pop %v420
    %v422 = vadd.f32 %v421, 1.0
    %v423 = vrcp.pop %v422
    %v424 = vmul.f32 1.0, %v423
    %429 = vrot.lane.b32.xlu0 %v325, 96
    %v430 = vpop.permute.xlu0 %429
    %431 = vrot.lane.b32.xlu0 %v326, 96
    %v432 = vpop.permute.xlu0 %431
    %433 = vrot.lane.b32.xlu0 %v327, 96
    %v434 = vpop.permute.xlu0 %433
    %435 = vrot.lane.b32.xlu0 %v328, 96
    %v436 = vpop.permute.xlu0 %435
    %441 = vmatprep.subr.mxu0 0.0
    %442 = vmatpush1.msra.mxu0 0.0
    %443 = vmatprep.subr.mxu0 0.0
    %444 = vmatpush1.msra.mxu0 0.0
    %445 = vmatprep.subr.mxu0 0.0
    %446 = vmatpush1.msra.mxu0 0.0
    %447 = vmatprep.subr.mxu0 0.0
    %448 = vmatpush1.msra.mxu0 0.0
    %449 = vmatprep.subr.mxu0 0.0
    %450 = vmatpush1.msra.mxu0 0.0
    %451 = vmatprep.subr.mxu0 0.0
    %452 = vmatpush1.msra.mxu0 0.0
    %453 = vmatprep.subr.mxu0 0.0
    %454 = vmatpush1.msra.mxu0 0.0
    %455 = vmatprep.subr.mxu0 0.0
    %456 = vmatpush1.msra.mxu0 0.0
    %457 = vmatprep.subr.mxu0 0.0
    %458 = vmatpush1.msra.mxu0 0.0
    %459 = vmatprep.subr.mxu0 0.0
    %460 = vmatpush1.msra.mxu0 0.0
    %461 = vmatprep.subr.mxu0 0.0
    %462 = vmatpush1.msra.mxu0 0.0
    %463 = vmatprep.subr.mxu0 0.0
    %464 = vmatpush1.msra.mxu0 0.0
    %465 = vmatprep.subr.mxu0 0.0
    %466 = vmatpush1.msra.mxu0 %v436
    %467 = vmatprep.subr.mxu0 0.0
    %468 = vmatpush1.msra.mxu0 %v434
    %469 = vmatprep.subr.mxu0 0.0
    %470 = vmatpush1.msra.mxu0 %v432
    %471 = vmatprep.subr.mxu0 0.0
    %472 = vmatpush1.msra.mxu0 %v430
    %473 = vmatprep.subr.mxu0 0.0
    %474 = vmatpush2.msra.mxu0 0.0
    %475 = vmatprep.subr.mxu0 0.0
    %476 = vmatpush2.msra.mxu0 0.0
    %477 = vmatprep.subr.mxu0 0.0
    %478 = vmatpush2.msra.mxu0 0.0
    %479 = vmatprep.subr.mxu0 0.0
    %480 = vmatpush2.msra.mxu0 0.0
    %481 = vmatprep.subr.mxu0 0.0
    %482 = vmatpush2.msra.mxu0 0.0
    %483 = vmatprep.subr.mxu0 0.0
    %484 = vmatpush2.msra.mxu0 0.0
    %485 = vmatprep.subr.mxu0 0.0
    %486 = vmatpush2.msra.mxu0 0.0
    %487 = vmatprep.subr.mxu0 0.0
    %488 = vmatpush2.msra.mxu0 0.0
    %489 = vmatprep.subr.mxu0 0.0
    %490 = vmatpush2.msra.mxu0 0.0
    %491 = vmatprep.subr.mxu0 0.0
    %492 = vmatpush2.msra.mxu0 0.0
    %493 = vmatprep.subr.mxu0 0.0
    %494 = vmatpush2.msra.mxu0 0.0
    %495 = vmatprep.subr.mxu0 0.0
    %496 = vmatpush2.msra.mxu0 0.0
    %497 = vmatprep.subr.mxu0 0.0
    %498 = vmatpush2.msra.mxu0 0.0
    %499 = vmatprep.subr.mxu0 0.0
    %500 = vmatpush2.msra.mxu0 0.0
    %501 = vmatprep.subr.mxu0 0.0
    %502 = vmatpush2.msra.mxu0 0.0
    %503 = vmatprep.subr.mxu0 0.0
    %504 = vmatpush2.msra.mxu0 0.0
    %505 = vmatprep.mubr.f32.mxu0 0.0
    %506 = vmatmul.mubr.f32.gmra.mxu0 %v339
    %v507 = vpop.f32.mrf.mxu0
    %v508 = vadd.f32 0.0, %v507
    %v509 = vpop.f32.mrf.mxu0
    %510 = vdwg.mxu0
    %512 = vrot.lane.b32.xlu0 %v508, 32
    %v513 = vpop.permute.xlu0 %512
    %v515 = vadd.f32 %v169, %v513
    %v516 = vadd.f32 %v515, %v416
    %v517 = vxor.u32 %v516, 2147483648
    %v518 = vmul.f32 %v517, 1.442695
    %v519 = vpow.pop %v518
    %v520 = vadd.f32 %v519, 1.0
    %v521 = vrcp.pop %v520
    %v522 = vmul.f32 1.0, %v521
    %523 = vrot.lane.b32.xlu0 %v325, 64
    %v524 = vpop.permute.xlu0 %523
    %525 = vrot.lane.b32.xlu0 %v326, 64
    %v526 = vpop.permute.xlu0 %525
    %527 = vrot.lane.b32.xlu0 %v327, 64
    %v528 = vpop.permute.xlu0 %527
    %529 = vrot.lane.b32.xlu0 %v328, 64
    %v530 = vpop.permute.xlu0 %529
    %535 = vrot.lane.b32.xlu0 %v416, 64
    %v536 = vpop.permute.xlu0 %535
    %538 = vmatprep.subr.mxu0 0.0
    %539 = vmatpush1.msra.mxu0 0.0
    %540 = vmatprep.subr.mxu0 0.0
    %541 = vmatpush1.msra.mxu0 0.0
    %542 = vmatprep.subr.mxu0 0.0
    %543 = vmatpush1.msra.mxu0 0.0
    %544 = vmatprep.subr.mxu0 0.0
    %545 = vmatpush1.msra.mxu0 0.0
    %546 = vmatprep.subr.mxu0 0.0
    %547 = vmatpush1.msra.mxu0 0.0
    %548 = vmatprep.subr.mxu0 0.0
    %549 = vmatpush1.msra.mxu0 0.0
    %550 = vmatprep.subr.mxu0 0.0
    %551 = vmatpush1.msra.mxu0 0.0
    %552 = vmatprep.subr.mxu0 0.0
    %553 = vmatpush1.msra.mxu0 0.0
    %554 = vmatprep.subr.mxu0 0.0
    %555 = vmatpush1.msra.mxu0 0.0
    %556 = vmatprep.subr.mxu0 0.0
    %557 = vmatpush1.msra.mxu0 0.0
    %558 = vmatprep.subr.mxu0 0.0
    %559 = vmatpush1.msra.mxu0 0.0
    %560 = vmatprep.subr.mxu0 0.0
    %561 = vmatpush1.msra.mxu0 0.0
    %562 = vmatprep.subr.mxu0 0.0
    %563 = vmatpush1.msra.mxu0 %v530
    %564 = vmatprep.subr.mxu0 0.0
    %565 = vmatpush1.msra.mxu0 %v528
    %566 = vmatprep.subr.mxu0 0.0
    %567 = vmatpush1.msra.mxu0 %v526
    %568 = vmatprep.subr.mxu0 0.0
    %569 = vmatpush1.msra.mxu0 %v524
    %570 = vmatprep.subr.mxu0 0.0
    %571 = vmatpush2.msra.mxu0 0.0
    %572 = vmatprep.subr.mxu0 0.0
    %573 = vmatpush2.msra.mxu0 0.0
    %574 = vmatprep.subr.mxu0 0.0
    %575 = vmatpush2.msra.mxu0 0.0
    %576 = vmatprep.subr.mxu0 0.0
    %577 = vmatpush2.msra.mxu0 0.0
    %578 = vmatprep.subr.mxu0 0.0
    %579 = vmatpush2.msra.mxu0 0.0
    %580 = vmatprep.subr.mxu0 0.0
    %581 = vmatpush2.msra.mxu0 0.0
    %582 = vmatprep.subr.mxu0 0.0
    %583 = vmatpush2.msra.mxu0 0.0
    %584 = vmatprep.subr.mxu0 0.0
    %585 = vmatpush2.msra.mxu0 0.0
    %586 = vmatprep.subr.mxu0 0.0
    %587 = vmatpush2.msra.mxu0 0.0
    %588 = vmatprep.subr.mxu0 0.0
    %589 = vmatpush2.msra.mxu0 0.0
    %590 = vmatprep.subr.mxu0 0.0
    %591 = vmatpush2.msra.mxu0 0.0
    %592 = vmatprep.subr.mxu0 0.0
    %593 = vmatpush2.msra.mxu0 0.0
    %594 = vmatprep.subr.mxu0 0.0
    %595 = vmatpush2.msra.mxu0 0.0
    %596 = vmatprep.subr.mxu0 0.0
    %597 = vmatpush2.msra.mxu0 0.0
    %598 = vmatprep.subr.mxu0 0.0
    %599 = vmatpush2.msra.mxu0 0.0
    %600 = vmatprep.subr.mxu0 0.0
    %601 = vmatpush2.msra.mxu0 0.0
    %602 = vmatprep.mubr.f32.mxu0 0.0
    %603 = vmatmul.mubr.f32.gmra.mxu0 %v339
    %v604 = vpop.f32.mrf.mxu0
    %v605 = vadd.f32 %v536, %v604
    %v606 = vpop.f32.mrf.mxu0
    %607 = vdwg.mxu0
    %v608 = vmul.f32 %v424, %v605
    %610 = vrot.lane.b32.xlu0 %v608, 64
    %v611 = vpop.permute.xlu0 %610
    %v613 = vadd.f32 %v169, %v611
    %v614 = vtanh.pop %v613
    %v615 = vsub.f32 1.0, %v522
    %617 = vrot.lane.b32.xlu0 %v614, 96
    %v618 = vpop.permute.xlu0 %617
    %v620 = vmul.f32 %v615, %v618
    %v621 = vmul.f32 %v522, 0.0
    %v622 = vadd.f32 %v620, %v621
    %v623 = vsel %vm337, 1, 0
    %624 = vset.pattern.permute.xlu0 0
    %625 = vperm.xlu0 %624, %v623
    %v626 = vpop.permute.xlu0 %625
    %vm627 = vcmp.eq.s32.totalorder %v626, 1
    %v628 = vsel %vm627, %v622, 0.0
    %vm629 = vcmp.gt.s32.totalorder %v57, 7
    %630 = vmatprep.subr.mxu0 0.0
    %631 = vmatpush1.msra.mxu0 0.0
    %632 = vmatprep.subr.mxu0 0.0
    %633 = vmatpush1.msra.mxu0 0.0
    %634 = vmatprep.subr.mxu0 0.0
    %635 = vmatpush1.msra.mxu0 0.0
    %636 = vmatprep.subr.mxu0 0.0
    %637 = vmatpush1.msra.mxu0 0.0
    %638 = vmatprep.subr.mxu0 0.0
    %639 = vmatpush1.msra.mxu0 0.0
    %640 = vmatprep.subr.mxu0 0.0
    %641 = vmatpush1.msra.mxu0 0.0
    %642 = vmatprep.subr.mxu0 0.0
    %643 = vmatpush1.msra.mxu0 0.0
    %644 = vmatprep.subr.mxu0 0.0
    %645 = vmatpush1.msra.mxu0 0.0
    %646 = vmatprep.subr.mxu0 0.0
    %647 = vmatpush1.msra.mxu0 0.0
    %648 = vmatprep.subr.mxu0 0.0
    %649 = vmatpush1.msra.mxu0 0.0
    %650 = vmatprep.subr.mxu0 0.0
    %651 = vmatpush1.msra.mxu0 0.0
    %652 = vmatprep.subr.mxu0 0.0
    %653 = vmatpush1.msra.mxu0 0.0
    %654 = vmatprep.subr.mxu0 0.0
    %655 = vmatpush1.msra.mxu0 %v334
    %656 = vmatprep.subr.mxu0 0.0
    %657 = vmatpush1.msra.mxu0 %v333
    %658 = vmatprep.subr.mxu0 0.0
    %659 = vmatpush1.msra.mxu0 %v332
    %660 = vmatprep.subr.mxu0 0.0
    %661 = vmatpush1.msra.mxu0 %v331
    %662 = vmatprep.subr.mxu0 0.0
    %663 = vmatpush2.msra.mxu0 0.0
    %664 = vmatprep.subr.mxu0 0.0
    %665 = vmatpush2.msra.mxu0 0.0
    %666 = vmatprep.subr.mxu0 0.0
    %667 = vmatpush2.msra.mxu0 0.0
    %668 = vmatprep.subr.mxu0 0.0
    %669 = vmatpush2.msra.mxu0 0.0
    %670 = vmatprep.subr.mxu0 0.0
    %671 = vmatpush2.msra.mxu0 0.0
    %672 = vmatprep.subr.mxu0 0.0
    %673 = vmatpush2.msra.mxu0 0.0
    %674 = vmatprep.subr.mxu0 0.0
    %675 = vmatpush2.msra.mxu0 0.0
    %676 = vmatprep.subr.mxu0 0.0
    %677 = vmatpush2.msra.mxu0 0.0
    %678 = vmatprep.subr.mxu0 0.0
    %679 = vmatpush2.msra.mxu0 0.0
    %680 = vmatprep.subr.mxu0 0.0
    %681 = vmatpush2.msra.mxu0 0.0
    %682 = vmatprep.subr.mxu0 0.0
    %683 = vmatpush2.msra.mxu0 0.0
    %684 = vmatprep.subr.mxu0 0.0
    %685 = vmatpush2.msra.mxu0 0.0
    %686 = vmatprep.subr.mxu0 0.0
    %687 = vmatpush2.msra.mxu0 0.0
    %688 = vmatprep.subr.mxu0 0.0
    %689 = vmatpush2.msra.mxu0 0.0
    %690 = vmatprep.subr.mxu0 0.0
    %691 = vmatpush2.msra.mxu0 0.0
    %692 = vmatprep.subr.mxu0 0.0
    %693 = vmatpush2.msra.mxu0 0.0
    %694 = vmatprep.mubr.f32.mxu0 0.0
    %695 = vmatmul.mubr.f32.gmra.mxu0 %v339
    %v696 = vpop.f32.mrf.mxu0
    %v697 = vadd.f32 0.0, %v696
    %v698 = vpop.f32.mrf.mxu0
    %699 = vdwg.mxu0
    %v700 = vadd.f32 %v322, %v697
    %v702 = vlaneseq
    %v703 = vshrl.u32 %v702, 7
    %v704 = vsub.s32 0, %v703
    %v705 = vrot.slane %v336, %v704
    %v707 = vadd.f32 %v700, %v705
    %v708 = vxor.u32 %v707, 2147483648
    %v709 = vmul.f32 %v708, 1.442695
    %v710 = vpow.pop %v709
    %v711 = vadd.f32 %v710, 1.0
    %v712 = vrcp.pop %v711
    %v713 = vmul.f32 1.0, %v712
    %718 = vrot.lane.b32.xlu0 %v331, 96
    %v719 = vpop.permute.xlu0 %718
    %720 = vrot.lane.b32.xlu0 %v332, 96
    %v721 = vpop.permute.xlu0 %720
    %722 = vrot.lane.b32.xlu0 %v333, 96
    %v723 = vpop.permute.xlu0 %722
    %724 = vrot.lane.b32.xlu0 %v334, 96
    %v725 = vpop.permute.xlu0 %724
    %730 = vmatprep.subr.mxu0 0.0
    %731 = vmatpush1.msra.mxu0 0.0
    %732 = vmatprep.subr.mxu0 0.0
    %733 = vmatpush1.msra.mxu0 0.0
    %734 = vmatprep.subr.mxu0 0.0
    %735 = vmatpush1.msra.mxu0 0.0
    %736 = vmatprep.subr.mxu0 0.0
    %737 = vmatpush1.msra.mxu0 0.0
    %738 = vmatprep.subr.mxu0 0.0
    %739 = vmatpush1.msra.mxu0 0.0
    %740 = vmatprep.subr.mxu0 0.0
    %741 = vmatpush1.msra.mxu0 0.0
    %742 = vmatprep.subr.mxu0 0.0
    %743 = vmatpush1.msra.mxu0 0.0
    %744 = vmatprep.subr.mxu0 0.0
    %745 = vmatpush1.msra.mxu0 0.0
    %746 = vmatprep.subr.mxu0 0.0
    %747 = vmatpush1.msra.mxu0 0.0
    %748 = vmatprep.subr.mxu0 0.0
    %749 = vmatpush1.msra.mxu0 0.0
    %750 = vmatprep.subr.mxu0 0.0
    %751 = vmatpush1.msra.mxu0 0.0
    %752 = vmatprep.subr.mxu0 0.0
    %753 = vmatpush1.msra.mxu0 0.0
    %754 = vmatprep.subr.mxu0 0.0
    %755 = vmatpush1.msra.mxu0 %v725
    %756 = vmatprep.subr.mxu0 0.0
    %757 = vmatpush1.msra.mxu0 %v723
    %758 = vmatprep.subr.mxu0 0.0
    %759 = vmatpush1.msra.mxu0 %v721
    %760 = vmatprep.subr.mxu0 0.0
    %761 = vmatpush1.msra.mxu0 %v719
    %762 = vmatprep.subr.mxu0 0.0
    %763 = vmatpush2.msra.mxu0 0.0
    %764 = vmatprep.subr.mxu0 0.0
    %765 = vmatpush2.msra.mxu0 0.0
    %766 = vmatprep.subr.mxu0 0.0
    %767 = vmatpush2.msra.mxu0 0.0
    %768 = vmatprep.subr.mxu0 0.0
    %769 = vmatpush2.msra.mxu0 0.0
    %770 = vmatprep.subr.mxu0 0.0
    %771 = vmatpush2.msra.mxu0 0.0
    %772 = vmatprep.subr.mxu0 0.0
    %773 = vmatpush2.msra.mxu0 0.0
    %774 = vmatprep.subr.mxu0 0.0
    %775 = vmatpush2.msra.mxu0 0.0
    %776 = vmatprep.subr.mxu0 0.0
    %777 = vmatpush2.msra.mxu0 0.0
    %778 = vmatprep.subr.mxu0 0.0
    %779 = vmatpush2.msra.mxu0 0.0
    %780 = vmatprep.subr.mxu0 0.0
    %781 = vmatpush2.msra.mxu0 0.0
    %782 = vmatprep.subr.mxu0 0.0
    %783 = vmatpush2.msra.mxu0 0.0
    %784 = vmatprep.subr.mxu0 0.0
    %785 = vmatpush2.msra.mxu0 0.0
    %786 = vmatprep.subr.mxu0 0.0
    %787 = vmatpush2.msra.mxu0 0.0
    %788 = vmatprep.subr.mxu0 0.0
    %789 = vmatpush2.msra.mxu0 0.0
    %790 = vmatprep.subr.mxu0 0.0
    %791 = vmatpush2.msra.mxu0 0.0
    %792 = vmatprep.subr.mxu0 0.0
    %793 = vmatpush2.msra.mxu0 0.0
    %794 = vmatprep.mubr.f32.mxu0 0.0
    %795 = vmatmul.mubr.f32.gmra.mxu0 %v339
    %v796 = vpop.f32.mrf.mxu0
    %v797 = vadd.f32 0.0, %v796
    %v798 = vpop.f32.mrf.mxu0
    %799 = vdwg.mxu0
    %801 = vrot.lane.b32.xlu0 %v797, 32
    %v802 = vpop.permute.xlu0 %801
    %v804 = vadd.f32 %v322, %v802
    %v805 = vadd.f32 %v804, %v705
    %v806 = vxor.u32 %v805, 2147483648
    %v807 = vmul.f32 %v806, 1.442695
    %v808 = vpow.pop %v807
    %v809 = vadd.f32 %v808, 1.0
    %v810 = vrcp.pop %v809
    %v811 = vmul.f32 1.0, %v810
    %812 = vrot.lane.b32.xlu0 %v331, 64
    %v813 = vpop.permute.xlu0 %812
    %814 = vrot.lane.b32.xlu0 %v332, 64
    %v815 = vpop.permute.xlu0 %814
    %816 = vrot.lane.b32.xlu0 %v333, 64
    %v817 = vpop.permute.xlu0 %816
    %818 = vrot.lane.b32.xlu0 %v334, 64
    %v819 = vpop.permute.xlu0 %818
    %824 = vrot.lane.b32.xlu0 %v705, 64
    %v825 = vpop.permute.xlu0 %824
    %827 = vmatprep.subr.mxu0 0.0
    %828 = vmatpush1.msra.mxu0 0.0
    %829 = vmatprep.subr.mxu0 0.0
    %830 = vmatpush1.msra.mxu0 0.0
    %831 = vmatprep.subr.mxu0 0.0
    %832 = vmatpush1.msra.mxu0 0.0
    %833 = vmatprep.subr.mxu0 0.0
    %834 = vmatpush1.msra.mxu0 0.0
    %835 = vmatprep.subr.mxu0 0.0
    %836 = vmatpush1.msra.mxu0 0.0
    %837 = vmatprep.subr.mxu0 0.0
    %838 = vmatpush1.msra.mxu0 0.0
    %839 = vmatprep.subr.mxu0 0.0
    %840 = vmatpush1.msra.mxu0 0.0
    %841 = vmatprep.subr.mxu0 0.0
    %842 = vmatpush1.msra.mxu0 0.0
    %843 = vmatprep.subr.mxu0 0.0
    %844 = vmatpush1.msra.mxu0 0.0
    %845 = vmatprep.subr.mxu0 0.0
    %846 = vmatpush1.msra.mxu0 0.0
    %847 = vmatprep.subr.mxu0 0.0
    %848 = vmatpush1.msra.mxu0 0.0
    %849 = vmatprep.subr.mxu0 0.0
    %850 = vmatpush1.msra.mxu0 0.0
    %851 = vmatprep.subr.mxu0 0.0
    %852 = vmatpush1.msra.mxu0 %v819
    %853 = vmatprep.subr.mxu0 0.0
    %854 = vmatpush1.msra.mxu0 %v817
    %855 = vmatprep.subr.mxu0 0.0
    %856 = vmatpush1.msra.mxu0 %v815
    %857 = vmatprep.subr.mxu0 0.0
    %858 = vmatpush1.msra.mxu0 %v813
    %859 = vmatprep.subr.mxu0 0.0
    %860 = vmatpush2.msra.mxu0 0.0
    %861 = vmatprep.subr.mxu0 0.0
    %862 = vmatpush2.msra.mxu0 0.0
    %863 = vmatprep.subr.mxu0 0.0
    %864 = vmatpush2.msra.mxu0 0.0
    %865 = vmatprep.subr.mxu0 0.0
    %866 = vmatpush2.msra.mxu0 0.0
    %867 = vmatprep.subr.mxu0 0.0
    %868 = vmatpush2.msra.mxu0 0.0
    %869 = vmatprep.subr.mxu0 0.0
    %870 = vmatpush2.msra.mxu0 0.0
    %871 = vmatprep.subr.mxu0 0.0
    %872 = vmatpush2.msra.mxu0 0.0
    %873 = vmatprep.subr.mxu0 0.0
    %874 = vmatpush2.msra.mxu0 0.0
    %875 = vmatprep.subr.mxu0 0.0
    %876 = vmatpush2.msra.mxu0 0.0
    %877 = vmatprep.subr.mxu0 0.0
    %878 = vmatpush2.msra.mxu0 0.0
    %879 = vmatprep.subr.mxu0 0.0
    %880 = vmatpush2.msra.mxu0 0.0
    %881 = vmatprep.subr.mxu0 0.0
    %882 = vmatpush2.msra.mxu0 0.0
    %883 = vmatprep.subr.mxu0 0.0
    %884 = vmatpush2.msra.mxu0 0.0
    %885 = vmatprep.subr.mxu0 0.0
    %886 = vmatpush2.msra.mxu0 0.0
    %887 = vmatprep.subr.mxu0 0.0
    %888 = vmatpush2.msra.mxu0 0.0
    %889 = vmatprep.subr.mxu0 0.0
    %890 = vmatpush2.msra.mxu0 0.0
    %891 = vmatprep.mubr.f32.mxu0 0.0
    %892 = vmatmul.mubr.f32.gmra.mxu0 %v339
    %v893 = vpop.f32.mrf.mxu0
    %v894 = vadd.f32 %v825, %v893
    %v895 = vpop.f32.mrf.mxu0
    %896 = vdwg.mxu0
    %v897 = vmul.f32 %v713, %v894
    %899 = vrot.lane.b32.xlu0 %v897, 64
    %v900 = vpop.permute.xlu0 %899
    %v902 = vadd.f32 %v322, %v900
    %v903 = vtanh.pop %v902
    %v904 = vsub.f32 1.0, %v811
    %906 = vrot.lane.b32.xlu0 %v903, 96
    %v907 = vpop.permute.xlu0 %906
    %v909 = vmul.f32 %v904, %v907
    %v910 = vmul.f32 %v811, 0.0
    %v911 = vadd.f32 %v909, %v910
    %v912 = vsel %vm629, 1, 0
    %913 = vset.pattern.permute.xlu0 0
    %914 = vperm.xlu0 %913, %v912
    %v915 = vpop.permute.xlu0 %914
    %vm916 = vcmp.eq.s32.totalorder %v915, 1
    %v917 = vsel %vm916, %v911, 0.0
    %vm918 = vcmp.gt.s32.totalorder %v57, 1
    %920 = vrot.lane.b32.xlu0 %v628, 96
    %v921 = vpop.permute.xlu0 %920
    %v922 = vsel %vm77, %v921, 0
    %924 = vmatprep.subr.mxu0 0.0
    %925 = vmatpush1.msra.mxu0 0.0
    %926 = vmatprep.subr.mxu0 0.0
    %927 = vmatpush1.msra.mxu0 0.0
    %928 = vmatprep.subr.mxu0 0.0
    %929 = vmatpush1.msra.mxu0 0.0
    %930 = vmatprep.subr.mxu0 0.0
    %931 = vmatpush1.msra.mxu0 0.0
    %932 = vmatprep.subr.mxu0 0.0
    %933 = vmatpush1.msra.mxu0 0.0
    %934 = vmatprep.subr.mxu0 0.0
    %935 = vmatpush1.msra.mxu0 0.0
    %936 = vmatprep.subr.mxu0 0.0
    %937 = vmatpush1.msra.mxu0 0.0
    %938 = vmatprep.subr.mxu0 0.0
    %939 = vmatpush1.msra.mxu0 0.0
    %940 = vmatprep.subr.mxu0 0.0
    %941 = vmatpush1.msra.mxu0 0.0
    %942 = vmatprep.subr.mxu0 0.0
    %943 = vmatpush1.msra.mxu0 0.0
    %944 = vmatprep.subr.mxu0 0.0
    %945 = vmatpush1.msra.mxu0 0.0
    %946 = vmatprep.subr.mxu0 0.0
    %947 = vmatpush1.msra.mxu0 0.0
    %948 = vmatprep.subr.mxu0 0.0
    %949 = vmatpush1.msra.mxu0 %v328
    %950 = vmatprep.subr.mxu0 0.0
    %951 = vmatpush1.msra.mxu0 %v327
    %952 = vmatprep.subr.mxu0 0.0
    %953 = vmatpush1.msra.mxu0 %v326
    %954 = vmatprep.subr.mxu0 0.0
    %955 = vmatpush1.msra.mxu0 %v325
    %956 = vmatprep.subr.mxu0 0.0
    %957 = vmatpush2.msra.mxu0 0.0
    %958 = vmatprep.subr.mxu0 0.0
    %959 = vmatpush2.msra.mxu0 0.0
    %960 = vmatprep.subr.mxu0 0.0
    %961 = vmatpush2.msra.mxu0 0.0
    %962 = vmatprep.subr.mxu0 0.0
    %963 = vmatpush2.msra.mxu0 0.0
    %964 = vmatprep.subr.mxu0 0.0
    %965 = vmatpush2.msra.mxu0 0.0
    %966 = vmatprep.subr.mxu0 0.0
    %967 = vmatpush2.msra.mxu0 0.0
    %968 = vmatprep.subr.mxu0 0.0
    %969 = vmatpush2.msra.mxu0 0.0
    %970 = vmatprep.subr.mxu0 0.0
    %971 = vmatpush2.msra.mxu0 0.0
    %972 = vmatprep.subr.mxu0 0.0
    %973 = vmatpush2.msra.mxu0 0.0
    %974 = vmatprep.subr.mxu0 0.0
    %975 = vmatpush2.msra.mxu0 0.0
    %976 = vmatprep.subr.mxu0 0.0
    %977 = vmatpush2.msra.mxu0 0.0
    %978 = vmatprep.subr.mxu0 0.0
    %979 = vmatpush2.msra.mxu0 0.0
    %980 = vmatprep.subr.mxu0 0.0
    %981 = vmatpush2.msra.mxu0 0.0
    %982 = vmatprep.subr.mxu0 0.0
    %983 = vmatpush2.msra.mxu0 0.0
    %984 = vmatprep.subr.mxu0 0.0
    %985 = vmatpush2.msra.mxu0 0.0
    %986 = vmatprep.subr.mxu0 0.0
    %987 = vmatpush2.msra.mxu0 0.0
    %988 = vmatprep.mubr.f32.mxu0 0.0
    %989 = vmatmul.mubr.f32.gmra.mxu0 %v922
    %v990 = vpop.f32.mrf.mxu0
    %v991 = vadd.f32 0.0, %v990
    %v992 = vpop.f32.mrf.mxu0
    %993 = vdwg.mxu0
    %v994 = vadd.f32 %v174, %v991
    %v995 = vadd.f32 %v994, %v416
    %v996 = vxor.u32 %v995, 2147483648
    %v997 = vmul.f32 %v996, 1.442695
    %v998 = vpow.pop %v997
    %v999 = vadd.f32 %v998, 1.0
    %v1000 = vrcp.pop %v999
    %v1001 = vmul.f32 1.0, %v1000
    %1002 = vmatprep.subr.mxu0 0.0
    %1003 = vmatpush1.msra.mxu0 0.0
    %1004 = vmatprep.subr.mxu0 0.0
    %1005 = vmatpush1.msra.mxu0 0.0
    %1006 = vmatprep.subr.mxu0 0.0
    %1007 = vmatpush1.msra.mxu0 0.0
    %1008 = vmatprep.subr.mxu0 0.0
    %1009 = vmatpush1.msra.mxu0 0.0
    %1010 = vmatprep.subr.mxu0 0.0
    %1011 = vmatpush1.msra.mxu0 0.0
    %1012 = vmatprep.subr.mxu0 0.0
    %1013 = vmatpush1.msra.mxu0 0.0
    %1014 = vmatprep.subr.mxu0 0.0
    %1015 = vmatpush1.msra.mxu0 0.0
    %1016 = vmatprep.subr.mxu0 0.0
    %1017 = vmatpush1.msra.mxu0 0.0
    %1018 = vmatprep.subr.mxu0 0.0
    %1019 = vmatpush1.msra.mxu0 0.0
    %1020 = vmatprep.subr.mxu0 0.0
    %1021 = vmatpush1.msra.mxu0 0.0
    %1022 = vmatprep.subr.mxu0 0.0
    %1023 = vmatpush1.msra.mxu0 0.0
    %1024 = vmatprep.subr.mxu0 0.0
    %1025 = vmatpush1.msra.mxu0 0.0
    %1026 = vmatprep.subr.mxu0 0.0
    %1027 = vmatpush1.msra.mxu0 %v436
    %1028 = vmatprep.subr.mxu0 0.0
    %1029 = vmatpush1.msra.mxu0 %v434
    %1030 = vmatprep.subr.mxu0 0.0
    %1031 = vmatpush1.msra.mxu0 %v432
    %1032 = vmatprep.subr.mxu0 0.0
    %1033 = vmatpush1.msra.mxu0 %v430
    %1034 = vmatprep.subr.mxu0 0.0
    %1035 = vmatpush2.msra.mxu0 0.0
    %1036 = vmatprep.subr.mxu0 0.0
    %1037 = vmatpush2.msra.mxu0 0.0
    %1038 = vmatprep.subr.mxu0 0.0
    %1039 = vmatpush2.msra.mxu0 0.0
    %1040 = vmatprep.subr.mxu0 0.0
    %1041 = vmatpush2.msra.mxu0 0.0
    %1042 = vmatprep.subr.mxu0 0.0
    %1043 = vmatpush2.msra.mxu0 0.0
    %1044 = vmatprep.subr.mxu0 0.0
    %1045 = vmatpush2.msra.mxu0 0.0
    %1046 = vmatprep.subr.mxu0 0.0
    %1047 = vmatpush2.msra.mxu0 0.0
    %1048 = vmatprep.subr.mxu0 0.0
    %1049 = vmatpush2.msra.mxu0 0.0
    %1050 = vmatprep.subr.mxu0 0.0
    %1051 = vmatpush2.msra.mxu0 0.0
    %1052 = vmatprep.subr.mxu0 0.0
    %1053 = vmatpush2.msra.mxu0 0.0
    %1054 = vmatprep.subr.mxu0 0.0
    %1055 = vmatpush2.msra.mxu0 0.0
    %1056 = vmatprep.subr.mxu0 0.0
    %1057 = vmatpush2.msra.mxu0 0.0
    %1058 = vmatprep.subr.mxu0 0.0
    %1059 = vmatpush2.msra.mxu0 0.0
    %1060 = vmatprep.subr.mxu0 0.0
    %1061 = vmatpush2.msra.mxu0 0.0
    %1062 = vmatprep.subr.mxu0 0.0
    %1063 = vmatpush2.msra.mxu0 0.0
    %1064 = vmatprep.subr.mxu0 0.0
    %1065 = vmatpush2.msra.mxu0 0.0
    %1066 = vmatprep.mubr.f32.mxu0 0.0
    %1067 = vmatmul.mubr.f32.gmra.mxu0 %v922
    %v1068 = vpop.f32.mrf.mxu0
    %v1069 = vadd.f32 0.0, %v1068
    %v1070 = vpop.f32.mrf.mxu0
    %1071 = vdwg.mxu0
    %1073 = vrot.lane.b32.xlu0 %v1069, 32
    %v1074 = vpop.permute.xlu0 %1073
    %v1076 = vadd.f32 %v174, %v1074
    %v1077 = vadd.f32 %v1076, %v416
    %v1078 = vxor.u32 %v1077, 2147483648
    %v1079 = vmul.f32 %v1078, 1.442695
    %v1080 = vpow.pop %v1079
    %v1081 = vadd.f32 %v1080, 1.0
    %v1082 = vrcp.pop %v1081
    %v1083 = vmul.f32 1.0, %v1082
    %1084 = vmatprep.subr.mxu0 0.0
    %1085 = vmatpush1.msra.mxu0 0.0
    %1086 = vmatprep.subr.mxu0 0.0
    %1087 = vmatpush1.msra.mxu0 0.0
    %1088 = vmatprep.subr.mxu0 0.0
    %1089 = vmatpush1.msra.mxu0 0.0
    %1090 = vmatprep.subr.mxu0 0.0
    %1091 = vmatpush1.msra.mxu0 0.0
    %1092 = vmatprep.subr.mxu0 0.0
    %1093 = vmatpush1.msra.mxu0 0.0
    %1094 = vmatprep.subr.mxu0 0.0
    %1095 = vmatpush1.msra.mxu0 0.0
    %1096 = vmatprep.subr.mxu0 0.0
    %1097 = vmatpush1.msra.mxu0 0.0
    %1098 = vmatprep.subr.mxu0 0.0
    %1099 = vmatpush1.msra.mxu0 0.0
    %1100 = vmatprep.subr.mxu0 0.0
    %1101 = vmatpush1.msra.mxu0 0.0
    %1102 = vmatprep.subr.mxu0 0.0
    %1103 = vmatpush1.msra.mxu0 0.0
    %1104 = vmatprep.subr.mxu0 0.0
    %1105 = vmatpush1.msra.mxu0 0.0
    %1106 = vmatprep.subr.mxu0 0.0
    %1107 = vmatpush1.msra.mxu0 0.0
    %1108 = vmatprep.subr.mxu0 0.0
    %1109 = vmatpush1.msra.mxu0 %v530
    %1110 = vmatprep.subr.mxu0 0.0
    %1111 = vmatpush1.msra.mxu0 %v528
    %1112 = vmatprep.subr.mxu0 0.0
    %1113 = vmatpush1.msra.mxu0 %v526
    %1114 = vmatprep.subr.mxu0 0.0
    %1115 = vmatpush1.msra.mxu0 %v524
    %1116 = vmatprep.subr.mxu0 0.0
    %1117 = vmatpush2.msra.mxu0 0.0
    %1118 = vmatprep.subr.mxu0 0.0
    %1119 = vmatpush2.msra.mxu0 0.0
    %1120 = vmatprep.subr.mxu0 0.0
    %1121 = vmatpush2.msra.mxu0 0.0
    %1122 = vmatprep.subr.mxu0 0.0
    %1123 = vmatpush2.msra.mxu0 0.0
    %1124 = vmatprep.subr.mxu0 0.0
    %1125 = vmatpush2.msra.mxu0 0.0
    %1126 = vmatprep.subr.mxu0 0.0
    %1127 = vmatpush2.msra.mxu0 0.0
    %1128 = vmatprep.subr.mxu0 0.0
    %1129 = vmatpush2.msra.mxu0 0.0
    %1130 = vmatprep.subr.mxu0 0.0
    %1131 = vmatpush2.msra.mxu0 0.0
    %1132 = vmatprep.subr.mxu0 0.0
    %1133 = vmatpush2.msra.mxu0 0.0
    %1134 = vmatprep.subr.mxu0 0.0
    %1135 = vmatpush2.msra.mxu0 0.0
    %1136 = vmatprep.subr.mxu0 0.0
    %1137 = vmatpush2.msra.mxu0 0.0
    %1138 = vmatprep.subr.mxu0 0.0
    %1139 = vmatpush2.msra.mxu0 0.0
    %1140 = vmatprep.subr.mxu0 0.0
    %1141 = vmatpush2.msra.mxu0 0.0
    %1142 = vmatprep.subr.mxu0 0.0
    %1143 = vmatpush2.msra.mxu0 0.0
    %1144 = vmatprep.subr.mxu0 0.0
    %1145 = vmatpush2.msra.mxu0 0.0
    %1146 = vmatprep.subr.mxu0 0.0
    %1147 = vmatpush2.msra.mxu0 0.0
    %1148 = vmatprep.mubr.f32.mxu0 0.0
    %1149 = vmatmul.mubr.f32.gmra.mxu0 %v922
    %v1150 = vpop.f32.mrf.mxu0
    %v1151 = vadd.f32 %v536, %v1150
    %v1152 = vpop.f32.mrf.mxu0
    %1153 = vdwg.mxu0
    %v1154 = vmul.f32 %v1001, %v1151
    %1156 = vrot.lane.b32.xlu0 %v1154, 64
    %v1157 = vpop.permute.xlu0 %1156
    %v1159 = vadd.f32 %v174, %v1157
    %v1160 = vtanh.pop %v1159
    %v1161 = vsub.f32 1.0, %v1083
    %1163 = vrot.lane.b32.xlu0 %v1160, 96
    %v1164 = vpop.permute.xlu0 %1163
    %v1166 = vmul.f32 %v1161, %v1164
    %v1167 = vmul.f32 %v1083, %v628
    %v1168 = vadd.f32 %v1166, %v1167
    %v1169 = vsel %vm918, 1, 0
    %1170 = vset.pattern.permute.xlu0 0
    %1171 = vperm.xlu0 %1170, %v1169
    %v1172 = vpop.permute.xlu0 %1171
    %vm1173 = vcmp.eq.s32.totalorder %v1172, 1
    %v1174 = vsel %vm1173, %v1168, %v628
    %vm1175 = vcmp.gt.s32.totalorder %v57, 6
    %1177 = vrot.lane.b32.xlu0 %v917, 96
    %v1178 = vpop.permute.xlu0 %1177
    %v1179 = vsel %vm77, %v1178, 0
    %1181 = vmatprep.subr.mxu0 0.0
    %1182 = vmatpush1.msra.mxu0 0.0
    %1183 = vmatprep.subr.mxu0 0.0
    %1184 = vmatpush1.msra.mxu0 0.0
    %1185 = vmatprep.subr.mxu0 0.0
    %1186 = vmatpush1.msra.mxu0 0.0
    %1187 = vmatprep.subr.mxu0 0.0
    %1188 = vmatpush1.msra.mxu0 0.0
    %1189 = vmatprep.subr.mxu0 0.0
    %1190 = vmatpush1.msra.mxu0 0.0
    %1191 = vmatprep.subr.mxu0 0.0
    %1192 = vmatpush1.msra.mxu0 0.0
    %1193 = vmatprep.subr.mxu0 0.0
    %1194 = vmatpush1.msra.mxu0 0.0
    %1195 = vmatprep.subr.mxu0 0.0
    %1196 = vmatpush1.msra.mxu0 0.0
    %1197 = vmatprep.subr.mxu0 0.0
    %1198 = vmatpush1.msra.mxu0 0.0
    %1199 = vmatprep.subr.mxu0 0.0
    %1200 = vmatpush1.msra.mxu0 0.0
    %1201 = vmatprep.subr.mxu0 0.0
    %1202 = vmatpush1.msra.mxu0 0.0
    %1203 = vmatprep.subr.mxu0 0.0
    %1204 = vmatpush1.msra.mxu0 0.0
    %1205 = vmatprep.subr.mxu0 0.0
    %1206 = vmatpush1.msra.mxu0 %v334
    %1207 = vmatprep.subr.mxu0 0.0
    %1208 = vmatpush1.msra.mxu0 %v333
    %1209 = vmatprep.subr.mxu0 0.0
    %1210 = vmatpush1.msra.mxu0 %v332
    %1211 = vmatprep.subr.mxu0 0.0
    %1212 = vmatpush1.msra.mxu0 %v331
    %1213 = vmatprep.subr.mxu0 0.0
    %1214 = vmatpush2.msra.mxu0 0.0
    %1215 = vmatprep.subr.mxu0 0.0
    %1216 = vmatpush2.msra.mxu0 0.0
    %1217 = vmatprep.subr.mxu0 0.0
    %1218 = vmatpush2.msra.mxu0 0.0
    %1219 = vmatprep.subr.mxu0 0.0
    %1220 = vmatpush2.msra.mxu0 0.0
    %1221 = vmatprep.subr.mxu0 0.0
    %1222 = vmatpush2.msra.mxu0 0.0
    %1223 = vmatprep.subr.mxu0 0.0
    %1224 = vmatpush2.msra.mxu0 0.0
    %1225 = vmatprep.subr.mxu0 0.0
    %1226 = vmatpush2.msra.mxu0 0.0
    %1227 = vmatprep.subr.mxu0 0.0
    %1228 = vmatpush2.msra.mxu0 0.0
    %1229 = vmatprep.subr.mxu0 0.0
    %1230 = vmatpush2.msra.mxu0 0.0
    %1231 = vmatprep.subr.mxu0 0.0
    %1232 = vmatpush2.msra.mxu0 0.0
    %1233 = vmatprep.subr.mxu0 0.0
    %1234 = vmatpush2.msra.mxu0 0.0
    %1235 = vmatprep.subr.mxu0 0.0
    %1236 = vmatpush2.msra.mxu0 0.0
    %1237 = vmatprep.subr.mxu0 0.0
    %1238 = vmatpush2.msra.mxu0 0.0
    %1239 = vmatprep.subr.mxu0 0.0
    %1240 = vmatpush2.msra.mxu0 0.0
    %1241 = vmatprep.subr.mxu0 0.0
    %1242 = vmatpush2.msra.mxu0 0.0
    %1243 = vmatprep.subr.mxu0 0.0
    %1244 = vmatpush2.msra.mxu0 0.0
    %1245 = vmatprep.mubr.f32.mxu0 0.0
    %1246 = vmatmul.mubr.f32.gmra.mxu0 %v1179
    %v1247 = vpop.f32.mrf.mxu0
    %v1248 = vadd.f32 0.0, %v1247
    %v1249 = vpop.f32.mrf.mxu0
    %1250 = vdwg.mxu0
    %v1251 = vadd.f32 %v317, %v1248
    %v1252 = vadd.f32 %v1251, %v705
    %v1253 = vxor.u32 %v1252, 2147483648
    %v1254 = vmul.f32 %v1253, 1.442695
    %v1255 = vpow.pop %v1254
    %v1256 = vadd.f32 %v1255, 1.0
    %v1257 = vrcp.pop %v1256
    %v1258 = vmul.f32 1.0, %v1257
    %1259 = vmatprep.subr.mxu0 0.0
    %1260 = vmatpush1.msra.mxu0 0.0
    %1261 = vmatprep.subr.mxu0 0.0
    %1262 = vmatpush1.msra.mxu0 0.0
    %1263 = vmatprep.subr.mxu0 0.0
    %1264 = vmatpush1.msra.mxu0 0.0
    %1265 = vmatprep.subr.mxu0 0.0
    %1266 = vmatpush1.msra.mxu0 0.0
    %1267 = vmatprep.subr.mxu0 0.0
    %1268 = vmatpush1.msra.mxu0 0.0
    %1269 = vmatprep.subr.mxu0 0.0
    %1270 = vmatpush1.msra.mxu0 0.0
    %1271 = vmatprep.subr.mxu0 0.0
    %1272 = vmatpush1.msra.mxu0 0.0
    %1273 = vmatprep.subr.mxu0 0.0
    %1274 = vmatpush1.msra.mxu0 0.0
    %1275 = vmatprep.subr.mxu0 0.0
    %1276 = vmatpush1.msra.mxu0 0.0
    %1277 = vmatprep.subr.mxu0 0.0
    %1278 = vmatpush1.msra.mxu0 0.0
    %1279 = vmatprep.subr.mxu0 0.0
    %1280 = vmatpush1.msra.mxu0 0.0
    %1281 = vmatprep.subr.mxu0 0.0
    %1282 = vmatpush1.msra.mxu0 0.0
    %1283 = vmatprep.subr.mxu0 0.0
    %1284 = vmatpush1.msra.mxu0 %v725
    %1285 = vmatprep.subr.mxu0 0.0
    %1286 = vmatpush1.msra.mxu0 %v723
    %1287 = vmatprep.subr.mxu0 0.0
    %1288 = vmatpush1.msra.mxu0 %v721
    %1289 = vmatprep.subr.mxu0 0.0
    %1290 = vmatpush1.msra.mxu0 %v719
    %1291 = vmatprep.subr.mxu0 0.0
    %1292 = vmatpush2.msra.mxu0 0.0
    %1293 = vmatprep.subr.mxu0 0.0
    %1294 = vmatpush2.msra.mxu0 0.0
    %1295 = vmatprep.subr.mxu0 0.0
    %1296 = vmatpush2.msra.mxu0 0.0
    %1297 = vmatprep.subr.mxu0 0.0
    %1298 = vmatpush2.msra.mxu0 0.0
    %1299 = vmatprep.subr.mxu0 0.0
    %1300 = vmatpush2.msra.mxu0 0.0
    %1301 = vmatprep.subr.mxu0 0.0
    %1302 = vmatpush2.msra.mxu0 0.0
    %1303 = vmatprep.subr.mxu0 0.0
    %1304 = vmatpush2.msra.mxu0 0.0
    %1305 = vmatprep.subr.mxu0 0.0
    %1306 = vmatpush2.msra.mxu0 0.0
    %1307 = vmatprep.subr.mxu0 0.0
    %1308 = vmatpush2.msra.mxu0 0.0
    %1309 = vmatprep.subr.mxu0 0.0
    %1310 = vmatpush2.msra.mxu0 0.0
    %1311 = vmatprep.subr.mxu0 0.0
    %1312 = vmatpush2.msra.mxu0 0.0
    %1313 = vmatprep.subr.mxu0 0.0
    %1314 = vmatpush2.msra.mxu0 0.0
    %1315 = vmatprep.subr.mxu0 0.0
    %1316 = vmatpush2.msra.mxu0 0.0
    %1317 = vmatprep.subr.mxu0 0.0
    %1318 = vmatpush2.msra.mxu0 0.0
    %1319 = vmatprep.subr.mxu0 0.0
    %1320 = vmatpush2.msra.mxu0 0.0
    %1321 = vmatprep.subr.mxu0 0.0
    %1322 = vmatpush2.msra.mxu0 0.0
    %1323 = vmatprep.mubr.f32.mxu0 0.0
    %1324 = vmatmul.mubr.f32.gmra.mxu0 %v1179
    %v1325 = vpop.f32.mrf.mxu0
    %v1326 = vadd.f32 0.0, %v1325
    %v1327 = vpop.f32.mrf.mxu0
    %1328 = vdwg.mxu0
    %1330 = vrot.lane.b32.xlu0 %v1326, 32
    %v1331 = vpop.permute.xlu0 %1330
    %v1333 = vadd.f32 %v317, %v1331
    %v1334 = vadd.f32 %v1333, %v705
    %v1335 = vxor.u32 %v1334, 2147483648
    %v1336 = vmul.f32 %v1335, 1.442695
    %v1337 = vpow.pop %v1336
    %v1338 = vadd.f32 %v1337, 1.0
    %v1339 = vrcp.pop %v1338
    %v1340 = vmul.f32 1.0, %v1339
    %1341 = vmatprep.subr.mxu0 0.0
    %1342 = vmatpush1.msra.mxu0 0.0
    %1343 = vmatprep.subr.mxu0 0.0
    %1344 = vmatpush1.msra.mxu0 0.0
    %1345 = vmatprep.subr.mxu0 0.0
    %1346 = vmatpush1.msra.mxu0 0.0
    %1347 = vmatprep.subr.mxu0 0.0
    %1348 = vmatpush1.msra.mxu0 0.0
    %1349 = vmatprep.subr.mxu0 0.0
    %1350 = vmatpush1.msra.mxu0 0.0
    %1351 = vmatprep.subr.mxu0 0.0
    %1352 = vmatpush1.msra.mxu0 0.0
    %1353 = vmatprep.subr.mxu0 0.0
    %1354 = vmatpush1.msra.mxu0 0.0
    %1355 = vmatprep.subr.mxu0 0.0
    %1356 = vmatpush1.msra.mxu0 0.0
    %1357 = vmatprep.subr.mxu0 0.0
    %1358 = vmatpush1.msra.mxu0 0.0
    %1359 = vmatprep.subr.mxu0 0.0
    %1360 = vmatpush1.msra.mxu0 0.0
    %1361 = vmatprep.subr.mxu0 0.0
    %1362 = vmatpush1.msra.mxu0 0.0
    %1363 = vmatprep.subr.mxu0 0.0
    %1364 = vmatpush1.msra.mxu0 0.0
    %1365 = vmatprep.subr.mxu0 0.0
    %1366 = vmatpush1.msra.mxu0 %v819
    %1367 = vmatprep.subr.mxu0 0.0
    %1368 = vmatpush1.msra.mxu0 %v817
    %1369 = vmatprep.subr.mxu0 0.0
    %1370 = vmatpush1.msra.mxu0 %v815
    %1371 = vmatprep.subr.mxu0 0.0
    %1372 = vmatpush1.msra.mxu0 %v813
    %1373 = vmatprep.subr.mxu0 0.0
    %1374 = vmatpush2.msra.mxu0 0.0
    %1375 = vmatprep.subr.mxu0 0.0
    %1376 = vmatpush2.msra.mxu0 0.0
    %1377 = vmatprep.subr.mxu0 0.0
    %1378 = vmatpush2.msra.mxu0 0.0
    %1379 = vmatprep.subr.mxu0 0.0
    %1380 = vmatpush2.msra.mxu0 0.0
    %1381 = vmatprep.subr.mxu0 0.0
    %1382 = vmatpush2.msra.mxu0 0.0
    %1383 = vmatprep.subr.mxu0 0.0
    %1384 = vmatpush2.msra.mxu0 0.0
    %1385 = vmatprep.subr.mxu0 0.0
    %1386 = vmatpush2.msra.mxu0 0.0
    %1387 = vmatprep.subr.mxu0 0.0
    %1388 = vmatpush2.msra.mxu0 0.0
    %1389 = vmatprep.subr.mxu0 0.0
    %1390 = vmatpush2.msra.mxu0 0.0
    %1391 = vmatprep.subr.mxu0 0.0
    %1392 = vmatpush2.msra.mxu0 0.0
    %1393 = vmatprep.subr.mxu0 0.0
    %1394 = vmatpush2.msra.mxu0 0.0
    %1395 = vmatprep.subr.mxu0 0.0
    %1396 = vmatpush2.msra.mxu0 0.0
    %1397 = vmatprep.subr.mxu0 0.0
    %1398 = vmatpush2.msra.mxu0 0.0
    %1399 = vmatprep.subr.mxu0 0.0
    %1400 = vmatpush2.msra.mxu0 0.0
    %1401 = vmatprep.subr.mxu0 0.0
    %1402 = vmatpush2.msra.mxu0 0.0
    %1403 = vmatprep.subr.mxu0 0.0
    %1404 = vmatpush2.msra.mxu0 0.0
    %1405 = vmatprep.mubr.f32.mxu0 0.0
    %1406 = vmatmul.mubr.f32.gmra.mxu0 %v1179
    %v1407 = vpop.f32.mrf.mxu0
    %v1408 = vadd.f32 %v825, %v1407
    %v1409 = vpop.f32.mrf.mxu0
    %1410 = vdwg.mxu0
    %v1411 = vmul.f32 %v1258, %v1408
    %1413 = vrot.lane.b32.xlu0 %v1411, 64
    %v1414 = vpop.permute.xlu0 %1413
    %v1416 = vadd.f32 %v317, %v1414
    %v1417 = vtanh.pop %v1416
    %v1418 = vsub.f32 1.0, %v1340
    %1420 = vrot.lane.b32.xlu0 %v1417, 96
    %v1421 = vpop.permute.xlu0 %1420
    %v1423 = vmul.f32 %v1418, %v1421
    %v1424 = vmul.f32 %v1340, %v917
    %v1425 = vadd.f32 %v1423, %v1424
    %v1426 = vsel %vm1175, 1, 0
    %1427 = vset.pattern.permute.xlu0 0
    %1428 = vperm.xlu0 %1427, %v1426
    %v1429 = vpop.permute.xlu0 %1428
    %vm1430 = vcmp.eq.s32.totalorder %v1429, 1
    %v1431 = vsel %vm1430, %v1425, %v917
    %vm1432 = vcmp.gt.s32.totalorder %v57, 2
    %1434 = vrot.lane.b32.xlu0 %v1174, 96
    %v1435 = vpop.permute.xlu0 %1434
    %v1436 = vsel %vm77, %v1435, 0
    %1438 = vmatprep.subr.mxu0 0.0
    %1439 = vmatpush1.msra.mxu0 0.0
    %1440 = vmatprep.subr.mxu0 0.0
    %1441 = vmatpush1.msra.mxu0 0.0
    %1442 = vmatprep.subr.mxu0 0.0
    %1443 = vmatpush1.msra.mxu0 0.0
    %1444 = vmatprep.subr.mxu0 0.0
    %1445 = vmatpush1.msra.mxu0 0.0
    %1446 = vmatprep.subr.mxu0 0.0
    %1447 = vmatpush1.msra.mxu0 0.0
    %1448 = vmatprep.subr.mxu0 0.0
    %1449 = vmatpush1.msra.mxu0 0.0
    %1450 = vmatprep.subr.mxu0 0.0
    %1451 = vmatpush1.msra.mxu0 0.0
    %1452 = vmatprep.subr.mxu0 0.0
    %1453 = vmatpush1.msra.mxu0 0.0
    %1454 = vmatprep.subr.mxu0 0.0
    %1455 = vmatpush1.msra.mxu0 0.0
    %1456 = vmatprep.subr.mxu0 0.0
    %1457 = vmatpush1.msra.mxu0 0.0
    %1458 = vmatprep.subr.mxu0 0.0
    %1459 = vmatpush1.msra.mxu0 0.0
    %1460 = vmatprep.subr.mxu0 0.0
    %1461 = vmatpush1.msra.mxu0 0.0
    %1462 = vmatprep.subr.mxu0 0.0
    %1463 = vmatpush1.msra.mxu0 %v328
    %1464 = vmatprep.subr.mxu0 0.0
    %1465 = vmatpush1.msra.mxu0 %v327
    %1466 = vmatprep.subr.mxu0 0.0
    %1467 = vmatpush1.msra.mxu0 %v326
    %1468 = vmatprep.subr.mxu0 0.0
    %1469 = vmatpush1.msra.mxu0 %v325
    %1470 = vmatprep.subr.mxu0 0.0
    %1471 = vmatpush2.msra.mxu0 0.0
    %1472 = vmatprep.subr.mxu0 0.0
    %1473 = vmatpush2.msra.mxu0 0.0
    %1474 = vmatprep.subr.mxu0 0.0
    %1475 = vmatpush2.msra.mxu0 0.0
    %1476 = vmatprep.subr.mxu0 0.0
    %1477 = vmatpush2.msra.mxu0 0.0
    %1478 = vmatprep.subr.mxu0 0.0
    %1479 = vmatpush2.msra.mxu0 0.0
    %1480 = vmatprep.subr.mxu0 0.0
    %1481 = vmatpush2.msra.mxu0 0.0
    %1482 = vmatprep.subr.mxu0 0.0
    %1483 = vmatpush2.msra.mxu0 0.0
    %1484 = vmatprep.subr.mxu0 0.0
    %1485 = vmatpush2.msra.mxu0 0.0
    %1486 = vmatprep.subr.mxu0 0.0
    %1487 = vmatpush2.msra.mxu0 0.0
    %1488 = vmatprep.subr.mxu0 0.0
    %1489 = vmatpush2.msra.mxu0 0.0
    %1490 = vmatprep.subr.mxu0 0.0
    %1491 = vmatpush2.msra.mxu0 0.0
    %1492 = vmatprep.subr.mxu0 0.0
    %1493 = vmatpush2.msra.mxu0 0.0
    %1494 = vmatprep.subr.mxu0 0.0
    %1495 = vmatpush2.msra.mxu0 0.0
    %1496 = vmatprep.subr.mxu0 0.0
    %1497 = vmatpush2.msra.mxu0 0.0
    %1498 = vmatprep.subr.mxu0 0.0
    %1499 = vmatpush2.msra.mxu0 0.0
    %1500 = vmatprep.subr.mxu0 0.0
    %1501 = vmatpush2.msra.mxu0 0.0
    %1502 = vmatprep.mubr.f32.mxu0 0.0
    %1503 = vmatmul.mubr.f32.gmra.mxu0 %v1436
    %v1504 = vpop.f32.mrf.mxu0
    %v1505 = vadd.f32 0.0, %v1504
    %v1506 = vpop.f32.mrf.mxu0
    %1507 = vdwg.mxu0
    %v1508 = vadd.f32 %v179, %v1505
    %v1509 = vadd.f32 %v1508, %v416
    %v1510 = vxor.u32 %v1509, 2147483648
    %v1511 = vmul.f32 %v1510, 1.442695
    %v1512 = vpow.pop %v1511
    %v1513 = vadd.f32 %v1512, 1.0
    %v1514 = vrcp.pop %v1513
    %v1515 = vmul.f32 1.0, %v1514
    %1516 = vmatprep.subr.mxu0 0.0
    %1517 = vmatpush1.msra.mxu0 0.0
    %1518 = vmatprep.subr.mxu0 0.0
    %1519 = vmatpush1.msra.mxu0 0.0
    %1520 = vmatprep.subr.mxu0 0.0
    %1521 = vmatpush1.msra.mxu0 0.0
    %1522 = vmatprep.subr.mxu0 0.0
    %1523 = vmatpush1.msra.mxu0 0.0
    %1524 = vmatprep.subr.mxu0 0.0
    %1525 = vmatpush1.msra.mxu0 0.0
    %1526 = vmatprep.subr.mxu0 0.0
    %1527 = vmatpush1.msra.mxu0 0.0
    %1528 = vmatprep.subr.mxu0 0.0
    %1529 = vmatpush1.msra.mxu0 0.0
    %1530 = vmatprep.subr.mxu0 0.0
    %1531 = vmatpush1.msra.mxu0 0.0
    %1532 = vmatprep.subr.mxu0 0.0
    %1533 = vmatpush1.msra.mxu0 0.0
    %1534 = vmatprep.subr.mxu0 0.0
    %1535 = vmatpush1.msra.mxu0 0.0
    %1536 = vmatprep.subr.mxu0 0.0
    %1537 = vmatpush1.msra.mxu0 0.0
    %1538 = vmatprep.subr.mxu0 0.0
    %1539 = vmatpush1.msra.mxu0 0.0
    %1540 = vmatprep.subr.mxu0 0.0
    %1541 = vmatpush1.msra.mxu0 %v436
    %1542 = vmatprep.subr.mxu0 0.0
    %1543 = vmatpush1.msra.mxu0 %v434
    %1544 = vmatprep.subr.mxu0 0.0
    %1545 = vmatpush1.msra.mxu0 %v432
    %1546 = vmatprep.subr.mxu0 0.0
    %1547 = vmatpush1.msra.mxu0 %v430
    %1548 = vmatprep.subr.mxu0 0.0
    %1549 = vmatpush2.msra.mxu0 0.0
    %1550 = vmatprep.subr.mxu0 0.0
    %1551 = vmatpush2.msra.mxu0 0.0
    %1552 = vmatprep.subr.mxu0 0.0
    %1553 = vmatpush2.msra.mxu0 0.0
    %1554 = vmatprep.subr.mxu0 0.0
    %1555 = vmatpush2.msra.mxu0 0.0
    %1556 = vmatprep.subr.mxu0 0.0
    %1557 = vmatpush2.msra.mxu0 0.0
    %1558 = vmatprep.subr.mxu0 0.0
    %1559 = vmatpush2.msra.mxu0 0.0
    %1560 = vmatprep.subr.mxu0 0.0
    %1561 = vmatpush2.msra.mxu0 0.0
    %1562 = vmatprep.subr.mxu0 0.0
    %1563 = vmatpush2.msra.mxu0 0.0
    %1564 = vmatprep.subr.mxu0 0.0
    %1565 = vmatpush2.msra.mxu0 0.0
    %1566 = vmatprep.subr.mxu0 0.0
    %1567 = vmatpush2.msra.mxu0 0.0
    %1568 = vmatprep.subr.mxu0 0.0
    %1569 = vmatpush2.msra.mxu0 0.0
    %1570 = vmatprep.subr.mxu0 0.0
    %1571 = vmatpush2.msra.mxu0 0.0
    %1572 = vmatprep.subr.mxu0 0.0
    %1573 = vmatpush2.msra.mxu0 0.0
    %1574 = vmatprep.subr.mxu0 0.0
    %1575 = vmatpush2.msra.mxu0 0.0
    %1576 = vmatprep.subr.mxu0 0.0
    %1577 = vmatpush2.msra.mxu0 0.0
    %1578 = vmatprep.subr.mxu0 0.0
    %1579 = vmatpush2.msra.mxu0 0.0
    %1580 = vmatprep.mubr.f32.mxu0 0.0
    %1581 = vmatmul.mubr.f32.gmra.mxu0 %v1436
    %v1582 = vpop.f32.mrf.mxu0
    %v1583 = vadd.f32 0.0, %v1582
    %v1584 = vpop.f32.mrf.mxu0
    %1585 = vdwg.mxu0
    %1587 = vrot.lane.b32.xlu0 %v1583, 32
    %v1588 = vpop.permute.xlu0 %1587
    %v1590 = vadd.f32 %v179, %v1588
    %v1591 = vadd.f32 %v1590, %v416
    %v1592 = vxor.u32 %v1591, 2147483648
    %v1593 = vmul.f32 %v1592, 1.442695
    %v1594 = vpow.pop %v1593
    %v1595 = vadd.f32 %v1594, 1.0
    %v1596 = vrcp.pop %v1595
    %v1597 = vmul.f32 1.0, %v1596
    %1598 = vmatprep.subr.mxu0 0.0
    %1599 = vmatpush1.msra.mxu0 0.0
    %1600 = vmatprep.subr.mxu0 0.0
    %1601 = vmatpush1.msra.mxu0 0.0
    %1602 = vmatprep.subr.mxu0 0.0
    %1603 = vmatpush1.msra.mxu0 0.0
    %1604 = vmatprep.subr.mxu0 0.0
    %1605 = vmatpush1.msra.mxu0 0.0
    %1606 = vmatprep.subr.mxu0 0.0
    %1607 = vmatpush1.msra.mxu0 0.0
    %1608 = vmatprep.subr.mxu0 0.0
    %1609 = vmatpush1.msra.mxu0 0.0
    %1610 = vmatprep.subr.mxu0 0.0
    %1611 = vmatpush1.msra.mxu0 0.0
    %1612 = vmatprep.subr.mxu0 0.0
    %1613 = vmatpush1.msra.mxu0 0.0
    %1614 = vmatprep.subr.mxu0 0.0
    %1615 = vmatpush1.msra.mxu0 0.0
    %1616 = vmatprep.subr.mxu0 0.0
    %1617 = vmatpush1.msra.mxu0 0.0
    %1618 = vmatprep.subr.mxu0 0.0
    %1619 = vmatpush1.msra.mxu0 0.0
    %1620 = vmatprep.subr.mxu0 0.0
    %1621 = vmatpush1.msra.mxu0 0.0
    %1622 = vmatprep.subr.mxu0 0.0
    %1623 = vmatpush1.msra.mxu0 %v530
    %1624 = vmatprep.subr.mxu0 0.0
    %1625 = vmatpush1.msra.mxu0 %v528
    %1626 = vmatprep.subr.mxu0 0.0
    %1627 = vmatpush1.msra.mxu0 %v526
    %1628 = vmatprep.subr.mxu0 0.0
    %1629 = vmatpush1.msra.mxu0 %v524
    %1630 = vmatprep.subr.mxu0 0.0
    %1631 = vmatpush2.msra.mxu0 0.0
    %1632 = vmatprep.subr.mxu0 0.0
    %1633 = vmatpush2.msra.mxu0 0.0
    %1634 = vmatprep.subr.mxu0 0.0
    %1635 = vmatpush2.msra.mxu0 0.0
    %1636 = vmatprep.subr.mxu0 0.0
    %1637 = vmatpush2.msra.mxu0 0.0
    %1638 = vmatprep.subr.mxu0 0.0
    %1639 = vmatpush2.msra.mxu0 0.0
    %1640 = vmatprep.subr.mxu0 0.0
    %1641 = vmatpush2.msra.mxu0 0.0
    %1642 = vmatprep.subr.mxu0 0.0
    %1643 = vmatpush2.msra.mxu0 0.0
    %1644 = vmatprep.subr.mxu0 0.0
    %1645 = vmatpush2.msra.mxu0 0.0
    %1646 = vmatprep.subr.mxu0 0.0
    %1647 = vmatpush2.msra.mxu0 0.0
    %1648 = vmatprep.subr.mxu0 0.0
    %1649 = vmatpush2.msra.mxu0 0.0
    %1650 = vmatprep.subr.mxu0 0.0
    %1651 = vmatpush2.msra.mxu0 0.0
    %1652 = vmatprep.subr.mxu0 0.0
    %1653 = vmatpush2.msra.mxu0 0.0
    %1654 = vmatprep.subr.mxu0 0.0
    %1655 = vmatpush2.msra.mxu0 0.0
    %1656 = vmatprep.subr.mxu0 0.0
    %1657 = vmatpush2.msra.mxu0 0.0
    %1658 = vmatprep.subr.mxu0 0.0
    %1659 = vmatpush2.msra.mxu0 0.0
    %1660 = vmatprep.subr.mxu0 0.0
    %1661 = vmatpush2.msra.mxu0 0.0
    %1662 = vmatprep.mubr.f32.mxu0 0.0
    %1663 = vmatmul.mubr.f32.gmra.mxu0 %v1436
    %v1664 = vpop.f32.mrf.mxu0
    %v1665 = vadd.f32 %v536, %v1664
    %v1666 = vpop.f32.mrf.mxu0
    %1667 = vdwg.mxu0
    %v1668 = vmul.f32 %v1515, %v1665
    %1670 = vrot.lane.b32.xlu0 %v1668, 64
    %v1671 = vpop.permute.xlu0 %1670
    %v1673 = vadd.f32 %v179, %v1671
    %v1674 = vtanh.pop %v1673
    %v1675 = vsub.f32 1.0, %v1597
    %1677 = vrot.lane.b32.xlu0 %v1674, 96
    %v1678 = vpop.permute.xlu0 %1677
    %v1680 = vmul.f32 %v1675, %v1678
    %v1681 = vmul.f32 %v1597, %v1174
    %v1682 = vadd.f32 %v1680, %v1681
    %v1683 = vsel %vm1432, 1, 0
    %1684 = vset.pattern.permute.xlu0 0
    %1685 = vperm.xlu0 %1684, %v1683
    %v1686 = vpop.permute.xlu0 %1685
    %vm1687 = vcmp.eq.s32.totalorder %v1686, 1
    %v1688 = vsel %vm1687, %v1682, %v1174
    %vm1689 = vcmp.gt.s32.totalorder %v57, 5
    %1691 = vrot.lane.b32.xlu0 %v1431, 96
    %v1692 = vpop.permute.xlu0 %1691
    %v1693 = vsel %vm77, %v1692, 0
    %1695 = vmatprep.subr.mxu0 0.0
    %1696 = vmatpush1.msra.mxu0 0.0
    %1697 = vmatprep.subr.mxu0 0.0
    %1698 = vmatpush1.msra.mxu0 0.0
    %1699 = vmatprep.subr.mxu0 0.0
    %1700 = vmatpush1.msra.mxu0 0.0
    %1701 = vmatprep.subr.mxu0 0.0
    %1702 = vmatpush1.msra.mxu0 0.0
    %1703 = vmatprep.subr.mxu0 0.0
    %1704 = vmatpush1.msra.mxu0 0.0
    %1705 = vmatprep.subr.mxu0 0.0
    %1706 = vmatpush1.msra.mxu0 0.0
    %1707 = vmatprep.subr.mxu0 0.0
    %1708 = vmatpush1.msra.mxu0 0.0
    %1709 = vmatprep.subr.mxu0 0.0
    %1710 = vmatpush1.msra.mxu0 0.0
    %1711 = vmatprep.subr.mxu0 0.0
    %1712 = vmatpush1.msra.mxu0 0.0
    %1713 = vmatprep.subr.mxu0 0.0
    %1714 = vmatpush1.msra.mxu0 0.0
    %1715 = vmatprep.subr.mxu0 0.0
    %1716 = vmatpush1.msra.mxu0 0.0
    %1717 = vmatprep.subr.mxu0 0.0
    %1718 = vmatpush1.msra.mxu0 0.0
    %1719 = vmatprep.subr.mxu0 0.0
    %1720 = vmatpush1.msra.mxu0 %v334
    %1721 = vmatprep.subr.mxu0 0.0
    %1722 = vmatpush1.msra.mxu0 %v333
    %1723 = vmatprep.subr.mxu0 0.0
    %1724 = vmatpush1.msra.mxu0 %v332
    %1725 = vmatprep.subr.mxu0 0.0
    %1726 = vmatpush1.msra.mxu0 %v331
    %1727 = vmatprep.subr.mxu0 0.0
    %1728 = vmatpush2.msra.mxu0 0.0
    %1729 = vmatprep.subr.mxu0 0.0
    %1730 = vmatpush2.msra.mxu0 0.0
    %1731 = vmatprep.subr.mxu0 0.0
    %1732 = vmatpush2.msra.mxu0 0.0
    %1733 = vmatprep.subr.mxu0 0.0
    %1734 = vmatpush2.msra.mxu0 0.0
    %1735 = vmatprep.subr.mxu0 0.0
    %1736 = vmatpush2.msra.mxu0 0.0
    %1737 = vmatprep.subr.mxu0 0.0
    %1738 = vmatpush2.msra.mxu0 0.0
    %1739 = vmatprep.subr.mxu0 0.0
    %1740 = vmatpush2.msra.mxu0 0.0
    %1741 = vmatprep.subr.mxu0 0.0
    %1742 = vmatpush2.msra.mxu0 0.0
    %1743 = vmatprep.subr.mxu0 0.0
    %1744 = vmatpush2.msra.mxu0 0.0
    %1745 = vmatprep.subr.mxu0 0.0
    %1746 = vmatpush2.msra.mxu0 0.0
    %1747 = vmatprep.subr.mxu0 0.0
    %1748 = vmatpush2.msra.mxu0 0.0
    %1749 = vmatprep.subr.mxu0 0.0
    %1750 = vmatpush2.msra.mxu0 0.0
    %1751 = vmatprep.subr.mxu0 0.0
    %1752 = vmatpush2.msra.mxu0 0.0
    %1753 = vmatprep.subr.mxu0 0.0
    %1754 = vmatpush2.msra.mxu0 0.0
    %1755 = vmatprep.subr.mxu0 0.0
    %1756 = vmatpush2.msra.mxu0 0.0
    %1757 = vmatprep.subr.mxu0 0.0
    %1758 = vmatpush2.msra.mxu0 0.0
    %1759 = vmatprep.mubr.f32.mxu0 0.0
    %1760 = vmatmul.mubr.f32.gmra.mxu0 %v1693
    %v1761 = vpop.f32.mrf.mxu0
    %v1762 = vadd.f32 0.0, %v1761
    %v1763 = vpop.f32.mrf.mxu0
    %1764 = vdwg.mxu0
    %v1765 = vadd.f32 %v312, %v1762
    %v1766 = vadd.f32 %v1765, %v705
    %v1767 = vxor.u32 %v1766, 2147483648
    %v1768 = vmul.f32 %v1767, 1.442695
    %v1769 = vpow.pop %v1768
    %v1770 = vadd.f32 %v1769, 1.0
    %v1771 = vrcp.pop %v1770
    %v1772 = vmul.f32 1.0, %v1771
    %1773 = vmatprep.subr.mxu0 0.0
    %1774 = vmatpush1.msra.mxu0 0.0
    %1775 = vmatprep.subr.mxu0 0.0
    %1776 = vmatpush1.msra.mxu0 0.0
    %1777 = vmatprep.subr.mxu0 0.0
    %1778 = vmatpush1.msra.mxu0 0.0
    %1779 = vmatprep.subr.mxu0 0.0
    %1780 = vmatpush1.msra.mxu0 0.0
    %1781 = vmatprep.subr.mxu0 0.0
    %1782 = vmatpush1.msra.mxu0 0.0
    %1783 = vmatprep.subr.mxu0 0.0
    %1784 = vmatpush1.msra.mxu0 0.0
    %1785 = vmatprep.subr.mxu0 0.0
    %1786 = vmatpush1.msra.mxu0 0.0
    %1787 = vmatprep.subr.mxu0 0.0
    %1788 = vmatpush1.msra.mxu0 0.0
    %1789 = vmatprep.subr.mxu0 0.0
    %1790 = vmatpush1.msra.mxu0 0.0
    %1791 = vmatprep.subr.mxu0 0.0
    %1792 = vmatpush1.msra.mxu0 0.0
    %1793 = vmatprep.subr.mxu0 0.0
    %1794 = vmatpush1.msra.mxu0 0.0
    %1795 = vmatprep.subr.mxu0 0.0
    %1796 = vmatpush1.msra.mxu0 0.0
    %1797 = vmatprep.subr.mxu0 0.0
    %1798 = vmatpush1.msra.mxu0 %v725
    %1799 = vmatprep.subr.mxu0 0.0
    %1800 = vmatpush1.msra.mxu0 %v723
    %1801 = vmatprep.subr.mxu0 0.0
    %1802 = vmatpush1.msra.mxu0 %v721
    %1803 = vmatprep.subr.mxu0 0.0
    %1804 = vmatpush1.msra.mxu0 %v719
    %1805 = vmatprep.subr.mxu0 0.0
    %1806 = vmatpush2.msra.mxu0 0.0
    %1807 = vmatprep.subr.mxu0 0.0
    %1808 = vmatpush2.msra.mxu0 0.0
    %1809 = vmatprep.subr.mxu0 0.0
    %1810 = vmatpush2.msra.mxu0 0.0
    %1811 = vmatprep.subr.mxu0 0.0
    %1812 = vmatpush2.msra.mxu0 0.0
    %1813 = vmatprep.subr.mxu0 0.0
    %1814 = vmatpush2.msra.mxu0 0.0
    %1815 = vmatprep.subr.mxu0 0.0
    %1816 = vmatpush2.msra.mxu0 0.0
    %1817 = vmatprep.subr.mxu0 0.0
    %1818 = vmatpush2.msra.mxu0 0.0
    %1819 = vmatprep.subr.mxu0 0.0
    %1820 = vmatpush2.msra.mxu0 0.0
    %1821 = vmatprep.subr.mxu0 0.0
    %1822 = vmatpush2.msra.mxu0 0.0
    %1823 = vmatprep.subr.mxu0 0.0
    %1824 = vmatpush2.msra.mxu0 0.0
    %1825 = vmatprep.subr.mxu0 0.0
    %1826 = vmatpush2.msra.mxu0 0.0
    %1827 = vmatprep.subr.mxu0 0.0
    %1828 = vmatpush2.msra.mxu0 0.0
    %1829 = vmatprep.subr.mxu0 0.0
    %1830 = vmatpush2.msra.mxu0 0.0
    %1831 = vmatprep.subr.mxu0 0.0
    %1832 = vmatpush2.msra.mxu0 0.0
    %1833 = vmatprep.subr.mxu0 0.0
    %1834 = vmatpush2.msra.mxu0 0.0
    %1835 = vmatprep.subr.mxu0 0.0
    %1836 = vmatpush2.msra.mxu0 0.0
    %1837 = vmatprep.mubr.f32.mxu0 0.0
    %1838 = vmatmul.mubr.f32.gmra.mxu0 %v1693
    %v1839 = vpop.f32.mrf.mxu0
    %v1840 = vadd.f32 0.0, %v1839
    %v1841 = vpop.f32.mrf.mxu0
    %1842 = vdwg.mxu0
    %1844 = vrot.lane.b32.xlu0 %v1840, 32
    %v1845 = vpop.permute.xlu0 %1844
    %v1847 = vadd.f32 %v312, %v1845
    %v1848 = vadd.f32 %v1847, %v705
    %v1849 = vxor.u32 %v1848, 2147483648
    %v1850 = vmul.f32 %v1849, 1.442695
    %v1851 = vpow.pop %v1850
    %v1852 = vadd.f32 %v1851, 1.0
    %v1853 = vrcp.pop %v1852
    %v1854 = vmul.f32 1.0, %v1853
    %1855 = vmatprep.subr.mxu0 0.0
    %1856 = vmatpush1.msra.mxu0 0.0
    %1857 = vmatprep.subr.mxu0 0.0
    %1858 = vmatpush1.msra.mxu0 0.0
    %1859 = vmatprep.subr.mxu0 0.0
    %1860 = vmatpush1.msra.mxu0 0.0
    %1861 = vmatprep.subr.mxu0 0.0
    %1862 = vmatpush1.msra.mxu0 0.0
    %1863 = vmatprep.subr.mxu0 0.0
    %1864 = vmatpush1.msra.mxu0 0.0
    %1865 = vmatprep.subr.mxu0 0.0
    %1866 = vmatpush1.msra.mxu0 0.0
    %1867 = vmatprep.subr.mxu0 0.0
    %1868 = vmatpush1.msra.mxu0 0.0
    %1869 = vmatprep.subr.mxu0 0.0
    %1870 = vmatpush1.msra.mxu0 0.0
    %1871 = vmatprep.subr.mxu0 0.0
    %1872 = vmatpush1.msra.mxu0 0.0
    %1873 = vmatprep.subr.mxu0 0.0
    %1874 = vmatpush1.msra.mxu0 0.0
    %1875 = vmatprep.subr.mxu0 0.0
    %1876 = vmatpush1.msra.mxu0 0.0
    %1877 = vmatprep.subr.mxu0 0.0
    %1878 = vmatpush1.msra.mxu0 0.0
    %1879 = vmatprep.subr.mxu0 0.0
    %1880 = vmatpush1.msra.mxu0 %v819
    %1881 = vmatprep.subr.mxu0 0.0
    %1882 = vmatpush1.msra.mxu0 %v817
    %1883 = vmatprep.subr.mxu0 0.0
    %1884 = vmatpush1.msra.mxu0 %v815
    %1885 = vmatprep.subr.mxu0 0.0
    %1886 = vmatpush1.msra.mxu0 %v813
    %1887 = vmatprep.subr.mxu0 0.0
    %1888 = vmatpush2.msra.mxu0 0.0
    %1889 = vmatprep.subr.mxu0 0.0
    %1890 = vmatpush2.msra.mxu0 0.0
    %1891 = vmatprep.subr.mxu0 0.0
    %1892 = vmatpush2.msra.mxu0 0.0
    %1893 = vmatprep.subr.mxu0 0.0
    %1894 = vmatpush2.msra.mxu0 0.0
    %1895 = vmatprep.subr.mxu0 0.0
    %1896 = vmatpush2.msra.mxu0 0.0
    %1897 = vmatprep.subr.mxu0 0.0
    %1898 = vmatpush2.msra.mxu0 0.0
    %1899 = vmatprep.subr.mxu0 0.0
    %1900 = vmatpush2.msra.mxu0 0.0
    %1901 = vmatprep.subr.mxu0 0.0
    %1902 = vmatpush2.msra.mxu0 0.0
    %1903 = vmatprep.subr.mxu0 0.0
    %1904 = vmatpush2.msra.mxu0 0.0
    %1905 = vmatprep.subr.mxu0 0.0
    %1906 = vmatpush2.msra.mxu0 0.0
    %1907 = vmatprep.subr.mxu0 0.0
    %1908 = vmatpush2.msra.mxu0 0.0
    %1909 = vmatprep.subr.mxu0 0.0
    %1910 = vmatpush2.msra.mxu0 0.0
    %1911 = vmatprep.subr.mxu0 0.0
    %1912 = vmatpush2.msra.mxu0 0.0
    %1913 = vmatprep.subr.mxu0 0.0
    %1914 = vmatpush2.msra.mxu0 0.0
    %1915 = vmatprep.subr.mxu0 0.0
    %1916 = vmatpush2.msra.mxu0 0.0
    %1917 = vmatprep.subr.mxu0 0.0
    %1918 = vmatpush2.msra.mxu0 0.0
    %1919 = vmatprep.mubr.f32.mxu0 0.0
    %1920 = vmatmul.mubr.f32.gmra.mxu0 %v1693
    %v1921 = vpop.f32.mrf.mxu0
    %v1922 = vadd.f32 %v825, %v1921
    %v1923 = vpop.f32.mrf.mxu0
    %1924 = vdwg.mxu0
    %v1925 = vmul.f32 %v1772, %v1922
    %1927 = vrot.lane.b32.xlu0 %v1925, 64
    %v1928 = vpop.permute.xlu0 %1927
    %v1930 = vadd.f32 %v312, %v1928
    %v1931 = vtanh.pop %v1930
    %v1932 = vsub.f32 1.0, %v1854
    %1934 = vrot.lane.b32.xlu0 %v1931, 96
    %v1935 = vpop.permute.xlu0 %1934
    %v1937 = vmul.f32 %v1932, %v1935
    %v1938 = vmul.f32 %v1854, %v1431
    %v1939 = vadd.f32 %v1937, %v1938
    %v1940 = vsel %vm1689, 1, 0
    %1941 = vset.pattern.permute.xlu0 0
    %1942 = vperm.xlu0 %1941, %v1940
    %v1943 = vpop.permute.xlu0 %1942
    %vm1944 = vcmp.eq.s32.totalorder %v1943, 1
    %v1945 = vsel %vm1944, %v1939, %v1431
    %vm1946 = vcmp.gt.s32.totalorder %v57, 3
    %1948 = vrot.lane.b32.xlu0 %v1688, 96
    %v1949 = vpop.permute.xlu0 %1948
    %v1950 = vsel %vm77, %v1949, 0
    %1952 = vmatprep.subr.mxu0 0.0
    %1953 = vmatpush1.msra.mxu0 0.0
    %1954 = vmatprep.subr.mxu0 0.0
    %1955 = vmatpush1.msra.mxu0 0.0
    %1956 = vmatprep.subr.mxu0 0.0
    %1957 = vmatpush1.msra.mxu0 0.0
    %1958 = vmatprep.subr.mxu0 0.0
    %1959 = vmatpush1.msra.mxu0 0.0
    %1960 = vmatprep.subr.mxu0 0.0
    %1961 = vmatpush1.msra.mxu0 0.0
    %1962 = vmatprep.subr.mxu0 0.0
    %1963 = vmatpush1.msra.mxu0 0.0
    %1964 = vmatprep.subr.mxu0 0.0
    %1965 = vmatpush1.msra.mxu0 0.0
    %1966 = vmatprep.subr.mxu0 0.0
    %1967 = vmatpush1.msra.mxu0 0.0
    %1968 = vmatprep.subr.mxu0 0.0
    %1969 = vmatpush1.msra.mxu0 0.0
    %1970 = vmatprep.subr.mxu0 0.0
    %1971 = vmatpush1.msra.mxu0 0.0
    %1972 = vmatprep.subr.mxu0 0.0
    %1973 = vmatpush1.msra.mxu0 0.0
    %1974 = vmatprep.subr.mxu0 0.0
    %1975 = vmatpush1.msra.mxu0 0.0
    %1976 = vmatprep.subr.mxu0 0.0
    %1977 = vmatpush1.msra.mxu0 %v328
    %1978 = vmatprep.subr.mxu0 0.0
    %1979 = vmatpush1.msra.mxu0 %v327
    %1980 = vmatprep.subr.mxu0 0.0
    %1981 = vmatpush1.msra.mxu0 %v326
    %1982 = vmatprep.subr.mxu0 0.0
    %1983 = vmatpush1.msra.mxu0 %v325
    %1984 = vmatprep.subr.mxu0 0.0
    %1985 = vmatpush2.msra.mxu0 0.0
    %1986 = vmatprep.subr.mxu0 0.0
    %1987 = vmatpush2.msra.mxu0 0.0
    %1988 = vmatprep.subr.mxu0 0.0
    %1989 = vmatpush2.msra.mxu0 0.0
    %1990 = vmatprep.subr.mxu0 0.0
    %1991 = vmatpush2.msra.mxu0 0.0
    %1992 = vmatprep.subr.mxu0 0.0
    %1993 = vmatpush2.msra.mxu0 0.0
    %1994 = vmatprep.subr.mxu0 0.0
    %1995 = vmatpush2.msra.mxu0 0.0
    %1996 = vmatprep.subr.mxu0 0.0
    %1997 = vmatpush2.msra.mxu0 0.0
    %1998 = vmatprep.subr.mxu0 0.0
    %1999 = vmatpush2.msra.mxu0 0.0
    %2000 = vmatprep.subr.mxu0 0.0
    %2001 = vmatpush2.msra.mxu0 0.0
    %2002 = vmatprep.subr.mxu0 0.0
    %2003 = vmatpush2.msra.mxu0 0.0
    %2004 = vmatprep.subr.mxu0 0.0
    %2005 = vmatpush2.msra.mxu0 0.0
    %2006 = vmatprep.subr.mxu0 0.0
    %2007 = vmatpush2.msra.mxu0 0.0
    %2008 = vmatprep.subr.mxu0 0.0
    %2009 = vmatpush2.msra.mxu0 0.0
    %2010 = vmatprep.subr.mxu0 0.0
    %2011 = vmatpush2.msra.mxu0 0.0
    %2012 = vmatprep.subr.mxu0 0.0
    %2013 = vmatpush2.msra.mxu0 0.0
    %2014 = vmatprep.subr.mxu0 0.0
    %2015 = vmatpush2.msra.mxu0 0.0
    %2016 = vmatprep.mubr.f32.mxu0 0.0
    %2017 = vmatmul.mubr.f32.gmra.mxu0 %v1950
    %v2018 = vpop.f32.mrf.mxu0
    %v2019 = vadd.f32 0.0, %v2018
    %v2020 = vpop.f32.mrf.mxu0
    %2021 = vdwg.mxu0
    %v2022 = vadd.f32 %v184, %v2019
    %v2023 = vadd.f32 %v2022, %v416
    %v2024 = vxor.u32 %v2023, 2147483648
    %v2025 = vmul.f32 %v2024, 1.442695
    %v2026 = vpow.pop %v2025
    %v2027 = vadd.f32 %v2026, 1.0
    %v2028 = vrcp.pop %v2027
    %v2029 = vmul.f32 1.0, %v2028
    %2030 = vmatprep.subr.mxu0 0.0
    %2031 = vmatpush1.msra.mxu0 0.0
    %2032 = vmatprep.subr.mxu0 0.0
    %2033 = vmatpush1.msra.mxu0 0.0
    %2034 = vmatprep.subr.mxu0 0.0
    %2035 = vmatpush1.msra.mxu0 0.0
    %2036 = vmatprep.subr.mxu0 0.0
    %2037 = vmatpush1.msra.mxu0 0.0
    %2038 = vmatprep.subr.mxu0 0.0
    %2039 = vmatpush1.msra.mxu0 0.0
    %2040 = vmatprep.subr.mxu0 0.0
    %2041 = vmatpush1.msra.mxu0 0.0
    %2042 = vmatprep.subr.mxu0 0.0
    %2043 = vmatpush1.msra.mxu0 0.0
    %2044 = vmatprep.subr.mxu0 0.0
    %2045 = vmatpush1.msra.mxu0 0.0
    %2046 = vmatprep.subr.mxu0 0.0
    %2047 = vmatpush1.msra.mxu0 0.0
    %2048 = vmatprep.subr.mxu0 0.0
    %2049 = vmatpush1.msra.mxu0 0.0
    %2050 = vmatprep.subr.mxu0 0.0
    %2051 = vmatpush1.msra.mxu0 0.0
    %2052 = vmatprep.subr.mxu0 0.0
    %2053 = vmatpush1.msra.mxu0 0.0
    %2054 = vmatprep.subr.mxu0 0.0
    %2055 = vmatpush1.msra.mxu0 %v436
    %2056 = vmatprep.subr.mxu0 0.0
    %2057 = vmatpush1.msra.mxu0 %v434
    %2058 = vmatprep.subr.mxu0 0.0
    %2059 = vmatpush1.msra.mxu0 %v432
    %2060 = vmatprep.subr.mxu0 0.0
    %2061 = vmatpush1.msra.mxu0 %v430
    %2062 = vmatprep.subr.mxu0 0.0
    %2063 = vmatpush2.msra.mxu0 0.0
    %2064 = vmatprep.subr.mxu0 0.0
    %2065 = vmatpush2.msra.mxu0 0.0
    %2066 = vmatprep.subr.mxu0 0.0
    %2067 = vmatpush2.msra.mxu0 0.0
    %2068 = vmatprep.subr.mxu0 0.0
    %2069 = vmatpush2.msra.mxu0 0.0
    %2070 = vmatprep.subr.mxu0 0.0
    %2071 = vmatpush2.msra.mxu0 0.0
    %2072 = vmatprep.subr.mxu0 0.0
    %2073 = vmatpush2.msra.mxu0 0.0
    %2074 = vmatprep.subr.mxu0 0.0
    %2075 = vmatpush2.msra.mxu0 0.0
    %2076 = vmatprep.subr.mxu0 0.0
    %2077 = vmatpush2.msra.mxu0 0.0
    %2078 = vmatprep.subr.mxu0 0.0
    %2079 = vmatpush2.msra.mxu0 0.0
    %2080 = vmatprep.subr.mxu0 0.0
    %2081 = vmatpush2.msra.mxu0 0.0
    %2082 = vmatprep.subr.mxu0 0.0
    %2083 = vmatpush2.msra.mxu0 0.0
    %2084 = vmatprep.subr.mxu0 0.0
    %2085 = vmatpush2.msra.mxu0 0.0
    %2086 = vmatprep.subr.mxu0 0.0
    %2087 = vmatpush2.msra.mxu0 0.0
    %2088 = vmatprep.subr.mxu0 0.0
    %2089 = vmatpush2.msra.mxu0 0.0
    %2090 = vmatprep.subr.mxu0 0.0
    %2091 = vmatpush2.msra.mxu0 0.0
    %2092 = vmatprep.subr.mxu0 0.0
    %2093 = vmatpush2.msra.mxu0 0.0
    %2094 = vmatprep.mubr.f32.mxu0 0.0
    %2095 = vmatmul.mubr.f32.gmra.mxu0 %v1950
    %v2096 = vpop.f32.mrf.mxu0
    %v2097 = vadd.f32 0.0, %v2096
    %v2098 = vpop.f32.mrf.mxu0
    %2099 = vdwg.mxu0
    %2101 = vrot.lane.b32.xlu0 %v2097, 32
    %v2102 = vpop.permute.xlu0 %2101
    %v2104 = vadd.f32 %v184, %v2102
    %v2105 = vadd.f32 %v2104, %v416
    %v2106 = vxor.u32 %v2105, 2147483648
    %v2107 = vmul.f32 %v2106, 1.442695
    %v2108 = vpow.pop %v2107
    %v2109 = vadd.f32 %v2108, 1.0
    %v2110 = vrcp.pop %v2109
    %v2111 = vmul.f32 1.0, %v2110
    %2112 = vmatprep.subr.mxu0 0.0
    %2113 = vmatpush1.msra.mxu0 0.0
    %2114 = vmatprep.subr.mxu0 0.0
    %2115 = vmatpush1.msra.mxu0 0.0
    %2116 = vmatprep.subr.mxu0 0.0
    %2117 = vmatpush1.msra.mxu0 0.0
    %2118 = vmatprep.subr.mxu0 0.0
    %2119 = vmatpush1.msra.mxu0 0.0
    %2120 = vmatprep.subr.mxu0 0.0
    %2121 = vmatpush1.msra.mxu0 0.0
    %2122 = vmatprep.subr.mxu0 0.0
    %2123 = vmatpush1.msra.mxu0 0.0
    %2124 = vmatprep.subr.mxu0 0.0
    %2125 = vmatpush1.msra.mxu0 0.0
    %2126 = vmatprep.subr.mxu0 0.0
    %2127 = vmatpush1.msra.mxu0 0.0
    %2128 = vmatprep.subr.mxu0 0.0
    %2129 = vmatpush1.msra.mxu0 0.0
    %2130 = vmatprep.subr.mxu0 0.0
    %2131 = vmatpush1.msra.mxu0 0.0
    %2132 = vmatprep.subr.mxu0 0.0
    %2133 = vmatpush1.msra.mxu0 0.0
    %2134 = vmatprep.subr.mxu0 0.0
    %2135 = vmatpush1.msra.mxu0 0.0
    %2136 = vmatprep.subr.mxu0 0.0
    %2137 = vmatpush1.msra.mxu0 %v530
    %2138 = vmatprep.subr.mxu0 0.0
    %2139 = vmatpush1.msra.mxu0 %v528
    %2140 = vmatprep.subr.mxu0 0.0
    %2141 = vmatpush1.msra.mxu0 %v526
    %2142 = vmatprep.subr.mxu0 0.0
    %2143 = vmatpush1.msra.mxu0 %v524
    %2144 = vmatprep.subr.mxu0 0.0
    %2145 = vmatpush2.msra.mxu0 0.0
    %2146 = vmatprep.subr.mxu0 0.0
    %2147 = vmatpush2.msra.mxu0 0.0
    %2148 = vmatprep.subr.mxu0 0.0
    %2149 = vmatpush2.msra.mxu0 0.0
    %2150 = vmatprep.subr.mxu0 0.0
    %2151 = vmatpush2.msra.mxu0 0.0
    %2152 = vmatprep.subr.mxu0 0.0
    %2153 = vmatpush2.msra.mxu0 0.0
    %2154 = vmatprep.subr.mxu0 0.0
    %2155 = vmatpush2.msra.mxu0 0.0
    %2156 = vmatprep.subr.mxu0 0.0
    %2157 = vmatpush2.msra.mxu0 0.0
    %2158 = vmatprep.subr.mxu0 0.0
    %2159 = vmatpush2.msra.mxu0 0.0
    %2160 = vmatprep.subr.mxu0 0.0
    %2161 = vmatpush2.msra.mxu0 0.0
    %2162 = vmatprep.subr.mxu0 0.0
    %2163 = vmatpush2.msra.mxu0 0.0
    %2164 = vmatprep.subr.mxu0 0.0
    %2165 = vmatpush2.msra.mxu0 0.0
    %2166 = vmatprep.subr.mxu0 0.0
    %2167 = vmatpush2.msra.mxu0 0.0
    %2168 = vmatprep.subr.mxu0 0.0
    %2169 = vmatpush2.msra.mxu0 0.0
    %2170 = vmatprep.subr.mxu0 0.0
    %2171 = vmatpush2.msra.mxu0 0.0
    %2172 = vmatprep.subr.mxu0 0.0
    %2173 = vmatpush2.msra.mxu0 0.0
    %2174 = vmatprep.subr.mxu0 0.0
    %2175 = vmatpush2.msra.mxu0 0.0
    %2176 = vmatprep.mubr.f32.mxu0 0.0
    %2177 = vmatmul.mubr.f32.gmra.mxu0 %v1950
    %v2178 = vpop.f32.mrf.mxu0
    %v2179 = vadd.f32 %v536, %v2178
    %v2180 = vpop.f32.mrf.mxu0
    %2181 = vdwg.mxu0
    %v2182 = vmul.f32 %v2029, %v2179
    %2184 = vrot.lane.b32.xlu0 %v2182, 64
    %v2185 = vpop.permute.xlu0 %2184
    %v2187 = vadd.f32 %v184, %v2185
    %v2188 = vtanh.pop %v2187
    %v2189 = vsub.f32 1.0, %v2111
    %2191 = vrot.lane.b32.xlu0 %v2188, 96
    %v2192 = vpop.permute.xlu0 %2191
    %v2194 = vmul.f32 %v2189, %v2192
    %v2195 = vmul.f32 %v2111, %v1688
    %v2196 = vadd.f32 %v2194, %v2195
    %v2197 = vsel %vm1946, 1, 0
    %2198 = vset.pattern.permute.xlu0 0
    %2199 = vperm.xlu0 %2198, %v2197
    %v2200 = vpop.permute.xlu0 %2199
    %vm2201 = vcmp.eq.s32.totalorder %v2200, 1
    %v2202 = vsel %vm2201, %v2196, %v1688
    %vm2203 = vcmp.gt.s32.totalorder %v57, 4
    %2205 = vrot.lane.b32.xlu0 %v1945, 96
    %v2206 = vpop.permute.xlu0 %2205
    %v2207 = vsel %vm77, %v2206, 0
    %2209 = vmatprep.subr.mxu0 0.0
    %2210 = vmatpush1.msra.mxu0 0.0
    %2211 = vmatprep.subr.mxu0 0.0
    %2212 = vmatpush1.msra.mxu0 0.0
    %2213 = vmatprep.subr.mxu0 0.0
    %2214 = vmatpush1.msra.mxu0 0.0
    %2215 = vmatprep.subr.mxu0 0.0
    %2216 = vmatpush1.msra.mxu0 0.0
    %2217 = vmatprep.subr.mxu0 0.0
    %2218 = vmatpush1.msra.mxu0 0.0
    %2219 = vmatprep.subr.mxu0 0.0
    %2220 = vmatpush1.msra.mxu0 0.0
    %2221 = vmatprep.subr.mxu0 0.0
    %2222 = vmatpush1.msra.mxu0 0.0
    %2223 = vmatprep.subr.mxu0 0.0
    %2224 = vmatpush1.msra.mxu0 0.0
    %2225 = vmatprep.subr.mxu0 0.0
    %2226 = vmatpush1.msra.mxu0 0.0
    %2227 = vmatprep.subr.mxu0 0.0
    %2228 = vmatpush1.msra.mxu0 0.0
    %2229 = vmatprep.subr.mxu0 0.0
    %2230 = vmatpush1.msra.mxu0 0.0
    %2231 = vmatprep.subr.mxu0 0.0
    %2232 = vmatpush1.msra.mxu0 0.0
    %2233 = vmatprep.subr.mxu0 0.0
    %2234 = vmatpush1.msra.mxu0 %v334
    %2235 = vmatprep.subr.mxu0 0.0
    %2236 = vmatpush1.msra.mxu0 %v333
    %2237 = vmatprep.subr.mxu0 0.0
    %2238 = vmatpush1.msra.mxu0 %v332
    %2239 = vmatprep.subr.mxu0 0.0
    %2240 = vmatpush1.msra.mxu0 %v331
    %2241 = vmatprep.subr.mxu0 0.0
    %2242 = vmatpush2.msra.mxu0 0.0
    %2243 = vmatprep.subr.mxu0 0.0
    %2244 = vmatpush2.msra.mxu0 0.0
    %2245 = vmatprep.subr.mxu0 0.0
    %2246 = vmatpush2.msra.mxu0 0.0
    %2247 = vmatprep.subr.mxu0 0.0
    %2248 = vmatpush2.msra.mxu0 0.0
    %2249 = vmatprep.subr.mxu0 0.0
    %2250 = vmatpush2.msra.mxu0 0.0
    %2251 = vmatprep.subr.mxu0 0.0
    %2252 = vmatpush2.msra.mxu0 0.0
    %2253 = vmatprep.subr.mxu0 0.0
    %2254 = vmatpush2.msra.mxu0 0.0
    %2255 = vmatprep.subr.mxu0 0.0
    %2256 = vmatpush2.msra.mxu0 0.0
    %2257 = vmatprep.subr.mxu0 0.0
    %2258 = vmatpush2.msra.mxu0 0.0
    %2259 = vmatprep.subr.mxu0 0.0
    %2260 = vmatpush2.msra.mxu0 0.0
    %2261 = vmatprep.subr.mxu0 0.0
    %2262 = vmatpush2.msra.mxu0 0.0
    %2263 = vmatprep.subr.mxu0 0.0
    %2264 = vmatpush2.msra.mxu0 0.0
    %2265 = vmatprep.subr.mxu0 0.0
    %2266 = vmatpush2.msra.mxu0 0.0
    %2267 = vmatprep.subr.mxu0 0.0
    %2268 = vmatpush2.msra.mxu0 0.0
    %2269 = vmatprep.subr.mxu0 0.0
    %2270 = vmatpush2.msra.mxu0 0.0
    %2271 = vmatprep.subr.mxu0 0.0
    %2272 = vmatpush2.msra.mxu0 0.0
    %2273 = vmatprep.mubr.f32.mxu0 0.0
    %2274 = vmatmul.mubr.f32.gmra.mxu0 %v2207
    %v2275 = vpop.f32.mrf.mxu0
    %v2276 = vadd.f32 0.0, %v2275
    %v2277 = vpop.f32.mrf.mxu0
    %2278 = vdwg.mxu0
    %v2279 = vadd.f32 %v307, %v2276
    %v2280 = vadd.f32 %v2279, %v705
    %v2281 = vxor.u32 %v2280, 2147483648
    %v2282 = vmul.f32 %v2281, 1.442695
    %v2283 = vpow.pop %v2282
    %v2284 = vadd.f32 %v2283, 1.0
    %v2285 = vrcp.pop %v2284
    %v2286 = vmul.f32 1.0, %v2285
    %2287 = vmatprep.subr.mxu0 0.0
    %2288 = vmatpush1.msra.mxu0 0.0
    %2289 = vmatprep.subr.mxu0 0.0
    %2290 = vmatpush1.msra.mxu0 0.0
    %2291 = vmatprep.subr.mxu0 0.0
    %2292 = vmatpush1.msra.mxu0 0.0
    %2293 = vmatprep.subr.mxu0 0.0
    %2294 = vmatpush1.msra.mxu0 0.0
    %2295 = vmatprep.subr.mxu0 0.0
    %2296 = vmatpush1.msra.mxu0 0.0
    %2297 = vmatprep.subr.mxu0 0.0
    %2298 = vmatpush1.msra.mxu0 0.0
    %2299 = vmatprep.subr.mxu0 0.0
    %2300 = vmatpush1.msra.mxu0 0.0
    %2301 = vmatprep.subr.mxu0 0.0
    %2302 = vmatpush1.msra.mxu0 0.0
    %2303 = vmatprep.subr.mxu0 0.0
    %2304 = vmatpush1.msra.mxu0 0.0
    %2305 = vmatprep.subr.mxu0 0.0
    %2306 = vmatpush1.msra.mxu0 0.0
    %2307 = vmatprep.subr.mxu0 0.0
    %2308 = vmatpush1.msra.mxu0 0.0
    %2309 = vmatprep.subr.mxu0 0.0
    %2310 = vmatpush1.msra.mxu0 0.0
    %2311 = vmatprep.subr.mxu0 0.0
    %2312 = vmatpush1.msra.mxu0 %v725
    %2313 = vmatprep.subr.mxu0 0.0
    %2314 = vmatpush1.msra.mxu0 %v723
    %2315 = vmatprep.subr.mxu0 0.0
    %2316 = vmatpush1.msra.mxu0 %v721
    %2317 = vmatprep.subr.mxu0 0.0
    %2318 = vmatpush1.msra.mxu0 %v719
    %2319 = vmatprep.subr.mxu0 0.0
    %2320 = vmatpush2.msra.mxu0 0.0
    %2321 = vmatprep.subr.mxu0 0.0
    %2322 = vmatpush2.msra.mxu0 0.0
    %2323 = vmatprep.subr.mxu0 0.0
    %2324 = vmatpush2.msra.mxu0 0.0
    %2325 = vmatprep.subr.mxu0 0.0
    %2326 = vmatpush2.msra.mxu0 0.0
    %2327 = vmatprep.subr.mxu0 0.0
    %2328 = vmatpush2.msra.mxu0 0.0
    %2329 = vmatprep.subr.mxu0 0.0
    %2330 = vmatpush2.msra.mxu0 0.0
    %2331 = vmatprep.subr.mxu0 0.0
    %2332 = vmatpush2.msra.mxu0 0.0
    %2333 = vmatprep.subr.mxu0 0.0
    %2334 = vmatpush2.msra.mxu0 0.0
    %2335 = vmatprep.subr.mxu0 0.0
    %2336 = vmatpush2.msra.mxu0 0.0
    %2337 = vmatprep.subr.mxu0 0.0
    %2338 = vmatpush2.msra.mxu0 0.0
    %2339 = vmatprep.subr.mxu0 0.0
    %2340 = vmatpush2.msra.mxu0 0.0
    %2341 = vmatprep.subr.mxu0 0.0
    %2342 = vmatpush2.msra.mxu0 0.0
    %2343 = vmatprep.subr.mxu0 0.0
    %2344 = vmatpush2.msra.mxu0 0.0
    %2345 = vmatprep.subr.mxu0 0.0
    %2346 = vmatpush2.msra.mxu0 0.0
    %2347 = vmatprep.subr.mxu0 0.0
    %2348 = vmatpush2.msra.mxu0 0.0
    %2349 = vmatprep.subr.mxu0 0.0
    %2350 = vmatpush2.msra.mxu0 0.0
    %2351 = vmatprep.mubr.f32.mxu0 0.0
    %2352 = vmatmul.mubr.f32.gmra.mxu0 %v2207
    %v2353 = vpop.f32.mrf.mxu0
    %v2354 = vadd.f32 0.0, %v2353
    %v2355 = vpop.f32.mrf.mxu0
    %2356 = vdwg.mxu0
    %2358 = vrot.lane.b32.xlu0 %v2354, 32
    %v2359 = vpop.permute.xlu0 %2358
    %v2361 = vadd.f32 %v307, %v2359
    %v2362 = vadd.f32 %v2361, %v705
    %v2363 = vxor.u32 %v2362, 2147483648
    %v2364 = vmul.f32 %v2363, 1.442695
    %v2365 = vpow.pop %v2364
    %v2366 = vadd.f32 %v2365, 1.0
    %v2367 = vrcp.pop %v2366
    %v2368 = vmul.f32 1.0, %v2367
    %2369 = vmatprep.subr.mxu0 0.0
    %2370 = vmatpush1.msra.mxu0 0.0
    %2371 = vmatprep.subr.mxu0 0.0
    %2372 = vmatpush1.msra.mxu0 0.0
    %2373 = vmatprep.subr.mxu0 0.0
    %2374 = vmatpush1.msra.mxu0 0.0
    %2375 = vmatprep.subr.mxu0 0.0
    %2376 = vmatpush1.msra.mxu0 0.0
    %2377 = vmatprep.subr.mxu0 0.0
    %2378 = vmatpush1.msra.mxu0 0.0
    %2379 = vmatprep.subr.mxu0 0.0
    %2380 = vmatpush1.msra.mxu0 0.0
    %2381 = vmatprep.subr.mxu0 0.0
    %2382 = vmatpush1.msra.mxu0 0.0
    %2383 = vmatprep.subr.mxu0 0.0
    %2384 = vmatpush1.msra.mxu0 0.0
    %2385 = vmatprep.subr.mxu0 0.0
    %2386 = vmatpush1.msra.mxu0 0.0
    %2387 = vmatprep.subr.mxu0 0.0
    %2388 = vmatpush1.msra.mxu0 0.0
    %2389 = vmatprep.subr.mxu0 0.0
    %2390 = vmatpush1.msra.mxu0 0.0
    %2391 = vmatprep.subr.mxu0 0.0
    %2392 = vmatpush1.msra.mxu0 0.0
    %2393 = vmatprep.subr.mxu0 0.0
    %2394 = vmatpush1.msra.mxu0 %v819
    %2395 = vmatprep.subr.mxu0 0.0
    %2396 = vmatpush1.msra.mxu0 %v817
    %2397 = vmatprep.subr.mxu0 0.0
    %2398 = vmatpush1.msra.mxu0 %v815
    %2399 = vmatprep.subr.mxu0 0.0
    %2400 = vmatpush1.msra.mxu0 %v813
    %2401 = vmatprep.subr.mxu0 0.0
    %2402 = vmatpush2.msra.mxu0 0.0
    %2403 = vmatprep.subr.mxu0 0.0
    %2404 = vmatpush2.msra.mxu0 0.0
    %2405 = vmatprep.subr.mxu0 0.0
    %2406 = vmatpush2.msra.mxu0 0.0
    %2407 = vmatprep.subr.mxu0 0.0
    %2408 = vmatpush2.msra.mxu0 0.0
    %2409 = vmatprep.subr.mxu0 0.0
    %2410 = vmatpush2.msra.mxu0 0.0
    %2411 = vmatprep.subr.mxu0 0.0
    %2412 = vmatpush2.msra.mxu0 0.0
    %2413 = vmatprep.subr.mxu0 0.0
    %2414 = vmatpush2.msra.mxu0 0.0
    %2415 = vmatprep.subr.mxu0 0.0
    %2416 = vmatpush2.msra.mxu0 0.0
    %2417 = vmatprep.subr.mxu0 0.0
    %2418 = vmatpush2.msra.mxu0 0.0
    %2419 = vmatprep.subr.mxu0 0.0
    %2420 = vmatpush2.msra.mxu0 0.0
    %2421 = vmatprep.subr.mxu0 0.0
    %2422 = vmatpush2.msra.mxu0 0.0
    %2423 = vmatprep.subr.mxu0 0.0
    %2424 = vmatpush2.msra.mxu0 0.0
    %2425 = vmatprep.subr.mxu0 0.0
    %2426 = vmatpush2.msra.mxu0 0.0
    %2427 = vmatprep.subr.mxu0 0.0
    %2428 = vmatpush2.msra.mxu0 0.0
    %2429 = vmatprep.subr.mxu0 0.0
    %2430 = vmatpush2.msra.mxu0 0.0
    %2431 = vmatprep.subr.mxu0 0.0
    %2432 = vmatpush2.msra.mxu0 0.0
    %2433 = vmatprep.mubr.f32.mxu0 0.0
    %2434 = vmatmul.mubr.f32.gmra.mxu0 %v2207
    %v2435 = vpop.f32.mrf.mxu0
    %v2436 = vadd.f32 %v825, %v2435
    %v2437 = vpop.f32.mrf.mxu0
    %2438 = vdwg.mxu0
    %v2439 = vmul.f32 %v2286, %v2436
    %2441 = vrot.lane.b32.xlu0 %v2439, 64
    %v2442 = vpop.permute.xlu0 %2441
    %v2444 = vadd.f32 %v307, %v2442
    %v2445 = vtanh.pop %v2444
    %v2446 = vsub.f32 1.0, %v2368
    %2448 = vrot.lane.b32.xlu0 %v2445, 96
    %v2449 = vpop.permute.xlu0 %2448
    %v2451 = vmul.f32 %v2446, %v2449
    %v2452 = vmul.f32 %v2368, %v1945
    %v2453 = vadd.f32 %v2451, %v2452
    %v2454 = vsel %vm2203, 1, 0
    %2455 = vset.pattern.permute.xlu0 0
    %2456 = vperm.xlu0 %2455, %v2454
    %v2457 = vpop.permute.xlu0 %2456
    %vm2458 = vcmp.eq.s32.totalorder %v2457, 1
    %v2459 = vsel %vm2458, %v2453, %v1945
    %2461 = vrot.lane.b32.xlu0 %v2202, 96
    %v2462 = vpop.permute.xlu0 %2461
    %v2463 = vsel %vm77, %v2462, 0
    %2465 = vmatprep.subr.mxu0 0.0
    %2466 = vmatpush1.msra.mxu0 0.0
    %2467 = vmatprep.subr.mxu0 0.0
    %2468 = vmatpush1.msra.mxu0 0.0
    %2469 = vmatprep.subr.mxu0 0.0
    %2470 = vmatpush1.msra.mxu0 0.0
    %2471 = vmatprep.subr.mxu0 0.0
    %2472 = vmatpush1.msra.mxu0 0.0
    %2473 = vmatprep.subr.mxu0 0.0
    %2474 = vmatpush1.msra.mxu0 0.0
    %2475 = vmatprep.subr.mxu0 0.0
    %2476 = vmatpush1.msra.mxu0 0.0
    %2477 = vmatprep.subr.mxu0 0.0
    %2478 = vmatpush1.msra.mxu0 0.0
    %2479 = vmatprep.subr.mxu0 0.0
    %2480 = vmatpush1.msra.mxu0 0.0
    %2481 = vmatprep.subr.mxu0 0.0
    %2482 = vmatpush1.msra.mxu0 0.0
    %2483 = vmatprep.subr.mxu0 0.0
    %2484 = vmatpush1.msra.mxu0 0.0
    %2485 = vmatprep.subr.mxu0 0.0
    %2486 = vmatpush1.msra.mxu0 0.0
    %2487 = vmatprep.subr.mxu0 0.0
    %2488 = vmatpush1.msra.mxu0 0.0
    %2489 = vmatprep.subr.mxu0 0.0
    %2490 = vmatpush1.msra.mxu0 %v328
    %2491 = vmatprep.subr.mxu0 0.0
    %2492 = vmatpush1.msra.mxu0 %v327
    %2493 = vmatprep.subr.mxu0 0.0
    %2494 = vmatpush1.msra.mxu0 %v326
    %2495 = vmatprep.subr.mxu0 0.0
    %2496 = vmatpush1.msra.mxu0 %v325
    %2497 = vmatprep.subr.mxu0 0.0
    %2498 = vmatpush2.msra.mxu0 0.0
    %2499 = vmatprep.subr.mxu0 0.0
    %2500 = vmatpush2.msra.mxu0 0.0
    %2501 = vmatprep.subr.mxu0 0.0
    %2502 = vmatpush2.msra.mxu0 0.0
    %2503 = vmatprep.subr.mxu0 0.0
    %2504 = vmatpush2.msra.mxu0 0.0
    %2505 = vmatprep.subr.mxu0 0.0
    %2506 = vmatpush2.msra.mxu0 0.0
    %2507 = vmatprep.subr.mxu0 0.0
    %2508 = vmatpush2.msra.mxu0 0.0
    %2509 = vmatprep.subr.mxu0 0.0
    %2510 = vmatpush2.msra.mxu0 0.0
    %2511 = vmatprep.subr.mxu0 0.0
    %2512 = vmatpush2.msra.mxu0 0.0
    %2513 = vmatprep.subr.mxu0 0.0
    %2514 = vmatpush2.msra.mxu0 0.0
    %2515 = vmatprep.subr.mxu0 0.0
    %2516 = vmatpush2.msra.mxu0 0.0
    %2517 = vmatprep.subr.mxu0 0.0
    %2518 = vmatpush2.msra.mxu0 0.0
    %2519 = vmatprep.subr.mxu0 0.0
    %2520 = vmatpush2.msra.mxu0 0.0
    %2521 = vmatprep.subr.mxu0 0.0
    %2522 = vmatpush2.msra.mxu0 0.0
    %2523 = vmatprep.subr.mxu0 0.0
    %2524 = vmatpush2.msra.mxu0 0.0
    %2525 = vmatprep.subr.mxu0 0.0
    %2526 = vmatpush2.msra.mxu0 0.0
    %2527 = vmatprep.subr.mxu0 0.0
    %2528 = vmatpush2.msra.mxu0 0.0
    %2529 = vmatprep.mubr.f32.mxu0 0.0
    %2530 = vmatmul.mubr.f32.gmra.mxu0 %v2463
    %v2531 = vpop.f32.mrf.mxu0
    %v2532 = vadd.f32 0.0, %v2531
    %v2533 = vpop.f32.mrf.mxu0
    %2534 = vdwg.mxu0
    %v2535 = vadd.f32 %v189, %v2532
    %v2536 = vadd.f32 %v2535, %v416
    %v2537 = vxor.u32 %v2536, 2147483648
    %v2538 = vmul.f32 %v2537, 1.442695
    %v2539 = vpow.pop %v2538
    %v2540 = vadd.f32 %v2539, 1.0
    %v2541 = vrcp.pop %v2540
    %v2542 = vmul.f32 1.0, %v2541
    %2543 = vmatprep.subr.mxu0 0.0
    %2544 = vmatpush1.msra.mxu0 0.0
    %2545 = vmatprep.subr.mxu0 0.0
    %2546 = vmatpush1.msra.mxu0 0.0
    %2547 = vmatprep.subr.mxu0 0.0
    %2548 = vmatpush1.msra.mxu0 0.0
    %2549 = vmatprep.subr.mxu0 0.0
    %2550 = vmatpush1.msra.mxu0 0.0
    %2551 = vmatprep.subr.mxu0 0.0
    %2552 = vmatpush1.msra.mxu0 0.0
    %2553 = vmatprep.subr.mxu0 0.0
    %2554 = vmatpush1.msra.mxu0 0.0
    %2555 = vmatprep.subr.mxu0 0.0
    %2556 = vmatpush1.msra.mxu0 0.0
    %2557 = vmatprep.subr.mxu0 0.0
    %2558 = vmatpush1.msra.mxu0 0.0
    %2559 = vmatprep.subr.mxu0 0.0
    %2560 = vmatpush1.msra.mxu0 0.0
    %2561 = vmatprep.subr.mxu0 0.0
    %2562 = vmatpush1.msra.mxu0 0.0
    %2563 = vmatprep.subr.mxu0 0.0
    %2564 = vmatpush1.msra.mxu0 0.0
    %2565 = vmatprep.subr.mxu0 0.0
    %2566 = vmatpush1.msra.mxu0 0.0
    %2567 = vmatprep.subr.mxu0 0.0
    %2568 = vmatpush1.msra.mxu0 %v436
    %2569 = vmatprep.subr.mxu0 0.0
    %2570 = vmatpush1.msra.mxu0 %v434
    %2571 = vmatprep.subr.mxu0 0.0
    %2572 = vmatpush1.msra.mxu0 %v432
    %2573 = vmatprep.subr.mxu0 0.0
    %2574 = vmatpush1.msra.mxu0 %v430
    %2575 = vmatprep.subr.mxu0 0.0
    %2576 = vmatpush2.msra.mxu0 0.0
    %2577 = vmatprep.subr.mxu0 0.0
    %2578 = vmatpush2.msra.mxu0 0.0
    %2579 = vmatprep.subr.mxu0 0.0
    %2580 = vmatpush2.msra.mxu0 0.0
    %2581 = vmatprep.subr.mxu0 0.0
    %2582 = vmatpush2.msra.mxu0 0.0
    %2583 = vmatprep.subr.mxu0 0.0
    %2584 = vmatpush2.msra.mxu0 0.0
    %2585 = vmatprep.subr.mxu0 0.0
    %2586 = vmatpush2.msra.mxu0 0.0
    %2587 = vmatprep.subr.mxu0 0.0
    %2588 = vmatpush2.msra.mxu0 0.0
    %2589 = vmatprep.subr.mxu0 0.0
    %2590 = vmatpush2.msra.mxu0 0.0
    %2591 = vmatprep.subr.mxu0 0.0
    %2592 = vmatpush2.msra.mxu0 0.0
    %2593 = vmatprep.subr.mxu0 0.0
    %2594 = vmatpush2.msra.mxu0 0.0
    %2595 = vmatprep.subr.mxu0 0.0
    %2596 = vmatpush2.msra.mxu0 0.0
    %2597 = vmatprep.subr.mxu0 0.0
    %2598 = vmatpush2.msra.mxu0 0.0
    %2599 = vmatprep.subr.mxu0 0.0
    %2600 = vmatpush2.msra.mxu0 0.0
    %2601 = vmatprep.subr.mxu0 0.0
    %2602 = vmatpush2.msra.mxu0 0.0
    %2603 = vmatprep.subr.mxu0 0.0
    %2604 = vmatpush2.msra.mxu0 0.0
    %2605 = vmatprep.subr.mxu0 0.0
    %2606 = vmatpush2.msra.mxu0 0.0
    %2607 = vmatprep.mubr.f32.mxu0 0.0
    %2608 = vmatmul.mubr.f32.gmra.mxu0 %v2463
    %v2609 = vpop.f32.mrf.mxu0
    %v2610 = vadd.f32 0.0, %v2609
    %v2611 = vpop.f32.mrf.mxu0
    %2612 = vdwg.mxu0
    %2614 = vrot.lane.b32.xlu0 %v2610, 32
    %v2615 = vpop.permute.xlu0 %2614
    %v2617 = vadd.f32 %v189, %v2615
    %v2618 = vadd.f32 %v2617, %v416
    %v2619 = vxor.u32 %v2618, 2147483648
    %v2620 = vmul.f32 %v2619, 1.442695
    %v2621 = vpow.pop %v2620
    %v2622 = vadd.f32 %v2621, 1.0
    %v2623 = vrcp.pop %v2622
    %v2624 = vmul.f32 1.0, %v2623
    %2625 = vmatprep.subr.mxu0 0.0
    %2626 = vmatpush1.msra.mxu0 0.0
    %2627 = vmatprep.subr.mxu0 0.0
    %2628 = vmatpush1.msra.mxu0 0.0
    %2629 = vmatprep.subr.mxu0 0.0
    %2630 = vmatpush1.msra.mxu0 0.0
    %2631 = vmatprep.subr.mxu0 0.0
    %2632 = vmatpush1.msra.mxu0 0.0
    %2633 = vmatprep.subr.mxu0 0.0
    %2634 = vmatpush1.msra.mxu0 0.0
    %2635 = vmatprep.subr.mxu0 0.0
    %2636 = vmatpush1.msra.mxu0 0.0
    %2637 = vmatprep.subr.mxu0 0.0
    %2638 = vmatpush1.msra.mxu0 0.0
    %2639 = vmatprep.subr.mxu0 0.0
    %2640 = vmatpush1.msra.mxu0 0.0
    %2641 = vmatprep.subr.mxu0 0.0
    %2642 = vmatpush1.msra.mxu0 0.0
    %2643 = vmatprep.subr.mxu0 0.0
    %2644 = vmatpush1.msra.mxu0 0.0
    %2645 = vmatprep.subr.mxu0 0.0
    %2646 = vmatpush1.msra.mxu0 0.0
    %2647 = vmatprep.subr.mxu0 0.0
    %2648 = vmatpush1.msra.mxu0 0.0
    %2649 = vmatprep.subr.mxu0 0.0
    %2650 = vmatpush1.msra.mxu0 %v530
    %2651 = vmatprep.subr.mxu0 0.0
    %2652 = vmatpush1.msra.mxu0 %v528
    %2653 = vmatprep.subr.mxu0 0.0
    %2654 = vmatpush1.msra.mxu0 %v526
    %2655 = vmatprep.subr.mxu0 0.0
    %2656 = vmatpush1.msra.mxu0 %v524
    %2657 = vmatprep.subr.mxu0 0.0
    %2658 = vmatpush2.msra.mxu0 0.0
    %2659 = vmatprep.subr.mxu0 0.0
    %2660 = vmatpush2.msra.mxu0 0.0
    %2661 = vmatprep.subr.mxu0 0.0
    %2662 = vmatpush2.msra.mxu0 0.0
    %2663 = vmatprep.subr.mxu0 0.0
    %2664 = vmatpush2.msra.mxu0 0.0
    %2665 = vmatprep.subr.mxu0 0.0
    %2666 = vmatpush2.msra.mxu0 0.0
    %2667 = vmatprep.subr.mxu0 0.0
    %2668 = vmatpush2.msra.mxu0 0.0
    %2669 = vmatprep.subr.mxu0 0.0
    %2670 = vmatpush2.msra.mxu0 0.0
    %2671 = vmatprep.subr.mxu0 0.0
    %2672 = vmatpush2.msra.mxu0 0.0
    %2673 = vmatprep.subr.mxu0 0.0
    %2674 = vmatpush2.msra.mxu0 0.0
    %2675 = vmatprep.subr.mxu0 0.0
    %2676 = vmatpush2.msra.mxu0 0.0
    %2677 = vmatprep.subr.mxu0 0.0
    %2678 = vmatpush2.msra.mxu0 0.0
    %2679 = vmatprep.subr.mxu0 0.0
    %2680 = vmatpush2.msra.mxu0 0.0
    %2681 = vmatprep.subr.mxu0 0.0
    %2682 = vmatpush2.msra.mxu0 0.0
    %2683 = vmatprep.subr.mxu0 0.0
    %2684 = vmatpush2.msra.mxu0 0.0
    %2685 = vmatprep.subr.mxu0 0.0
    %2686 = vmatpush2.msra.mxu0 0.0
    %2687 = vmatprep.subr.mxu0 0.0
    %2688 = vmatpush2.msra.mxu0 0.0
    %2689 = vmatprep.mubr.f32.mxu0 0.0
    %2690 = vmatmul.mubr.f32.gmra.mxu0 %v2463
    %v2691 = vpop.f32.mrf.mxu0
    %v2692 = vadd.f32 %v536, %v2691
    %v2693 = vpop.f32.mrf.mxu0
    %2694 = vdwg.mxu0
    %v2695 = vmul.f32 %v2542, %v2692
    %2697 = vrot.lane.b32.xlu0 %v2695, 64
    %v2698 = vpop.permute.xlu0 %2697
    %v2700 = vadd.f32 %v189, %v2698
    %v2701 = vtanh.pop %v2700
    %v2702 = vsub.f32 1.0, %v2624
    %2704 = vrot.lane.b32.xlu0 %v2701, 96
    %v2705 = vpop.permute.xlu0 %2704
    %v2707 = vmul.f32 %v2702, %v2705
    %v2708 = vmul.f32 %v2624, %v2202
    %v2709 = vadd.f32 %v2707, %v2708
    %v2710 = vsel %vm2458, %v2709, %v2202
    %2712 = vrot.lane.b32.xlu0 %v2459, 96
    %v2713 = vpop.permute.xlu0 %2712
    %v2714 = vsel %vm77, %v2713, 0
    %2716 = vmatprep.subr.mxu0 0.0
    %2717 = vmatpush1.msra.mxu0 0.0
    %2718 = vmatprep.subr.mxu0 0.0
    %2719 = vmatpush1.msra.mxu0 0.0
    %2720 = vmatprep.subr.mxu0 0.0
    %2721 = vmatpush1.msra.mxu0 0.0
    %2722 = vmatprep.subr.mxu0 0.0
    %2723 = vmatpush1.msra.mxu0 0.0
    %2724 = vmatprep.subr.mxu0 0.0
    %2725 = vmatpush1.msra.mxu0 0.0
    %2726 = vmatprep.subr.mxu0 0.0
    %2727 = vmatpush1.msra.mxu0 0.0
    %2728 = vmatprep.subr.mxu0 0.0
    %2729 = vmatpush1.msra.mxu0 0.0
    %2730 = vmatprep.subr.mxu0 0.0
    %2731 = vmatpush1.msra.mxu0 0.0
    %2732 = vmatprep.subr.mxu0 0.0
    %2733 = vmatpush1.msra.mxu0 0.0
    %2734 = vmatprep.subr.mxu0 0.0
    %2735 = vmatpush1.msra.mxu0 0.0
    %2736 = vmatprep.subr.mxu0 0.0
    %2737 = vmatpush1.msra.mxu0 0.0
    %2738 = vmatprep.subr.mxu0 0.0
    %2739 = vmatpush1.msra.mxu0 0.0
    %2740 = vmatprep.subr.mxu0 0.0
    %2741 = vmatpush1.msra.mxu0 %v334
    %2742 = vmatprep.subr.mxu0 0.0
    %2743 = vmatpush1.msra.mxu0 %v333
    %2744 = vmatprep.subr.mxu0 0.0
    %2745 = vmatpush1.msra.mxu0 %v332
    %2746 = vmatprep.subr.mxu0 0.0
    %2747 = vmatpush1.msra.mxu0 %v331
    %2748 = vmatprep.subr.mxu0 0.0
    %2749 = vmatpush2.msra.mxu0 0.0
    %2750 = vmatprep.subr.mxu0 0.0
    %2751 = vmatpush2.msra.mxu0 0.0
    %2752 = vmatprep.subr.mxu0 0.0
    %2753 = vmatpush2.msra.mxu0 0.0
    %2754 = vmatprep.subr.mxu0 0.0
    %2755 = vmatpush2.msra.mxu0 0.0
    %2756 = vmatprep.subr.mxu0 0.0
    %2757 = vmatpush2.msra.mxu0 0.0
    %2758 = vmatprep.subr.mxu0 0.0
    %2759 = vmatpush2.msra.mxu0 0.0
    %2760 = vmatprep.subr.mxu0 0.0
    %2761 = vmatpush2.msra.mxu0 0.0
    %2762 = vmatprep.subr.mxu0 0.0
    %2763 = vmatpush2.msra.mxu0 0.0
    %2764 = vmatprep.subr.mxu0 0.0
    %2765 = vmatpush2.msra.mxu0 0.0
    %2766 = vmatprep.subr.mxu0 0.0
    %2767 = vmatpush2.msra.mxu0 0.0
    %2768 = vmatprep.subr.mxu0 0.0
    %2769 = vmatpush2.msra.mxu0 0.0
    %2770 = vmatprep.subr.mxu0 0.0
    %2771 = vmatpush2.msra.mxu0 0.0
    %2772 = vmatprep.subr.mxu0 0.0
    %2773 = vmatpush2.msra.mxu0 0.0
    %2774 = vmatprep.subr.mxu0 0.0
    %2775 = vmatpush2.msra.mxu0 0.0
    %2776 = vmatprep.subr.mxu0 0.0
    %2777 = vmatpush2.msra.mxu0 0.0
    %2778 = vmatprep.subr.mxu0 0.0
    %2779 = vmatpush2.msra.mxu0 0.0
    %2780 = vmatprep.mubr.f32.mxu0 0.0
    %2781 = vmatmul.mubr.f32.gmra.mxu0 %v2714
    %v2782 = vpop.f32.mrf.mxu0
    %v2783 = vadd.f32 0.0, %v2782
    %v2784 = vpop.f32.mrf.mxu0
    %2785 = vdwg.mxu0
    %v2786 = vadd.f32 %v302, %v2783
    %v2787 = vadd.f32 %v2786, %v705
    %v2788 = vxor.u32 %v2787, 2147483648
    %v2789 = vmul.f32 %v2788, 1.442695
    %v2790 = vpow.pop %v2789
    %v2791 = vadd.f32 %v2790, 1.0
    %v2792 = vrcp.pop %v2791
    %v2793 = vmul.f32 1.0, %v2792
    %2794 = vmatprep.subr.mxu0 0.0
    %2795 = vmatpush1.msra.mxu0 0.0
    %2796 = vmatprep.subr.mxu0 0.0
    %2797 = vmatpush1.msra.mxu0 0.0
    %2798 = vmatprep.subr.mxu0 0.0
    %2799 = vmatpush1.msra.mxu0 0.0
    %2800 = vmatprep.subr.mxu0 0.0
    %2801 = vmatpush1.msra.mxu0 0.0
    %2802 = vmatprep.subr.mxu0 0.0
    %2803 = vmatpush1.msra.mxu0 0.0
    %2804 = vmatprep.subr.mxu0 0.0
    %2805 = vmatpush1.msra.mxu0 0.0
    %2806 = vmatprep.subr.mxu0 0.0
    %2807 = vmatpush1.msra.mxu0 0.0
    %2808 = vmatprep.subr.mxu0 0.0
    %2809 = vmatpush1.msra.mxu0 0.0
    %2810 = vmatprep.subr.mxu0 0.0
    %2811 = vmatpush1.msra.mxu0 0.0
    %2812 = vmatprep.subr.mxu0 0.0
    %2813 = vmatpush1.msra.mxu0 0.0
    %2814 = vmatprep.subr.mxu0 0.0
    %2815 = vmatpush1.msra.mxu0 0.0
    %2816 = vmatprep.subr.mxu0 0.0
    %2817 = vmatpush1.msra.mxu0 0.0
    %2818 = vmatprep.subr.mxu0 0.0
    %2819 = vmatpush1.msra.mxu0 %v725
    %2820 = vmatprep.subr.mxu0 0.0
    %2821 = vmatpush1.msra.mxu0 %v723
    %2822 = vmatprep.subr.mxu0 0.0
    %2823 = vmatpush1.msra.mxu0 %v721
    %2824 = vmatprep.subr.mxu0 0.0
    %2825 = vmatpush1.msra.mxu0 %v719
    %2826 = vmatprep.subr.mxu0 0.0
    %2827 = vmatpush2.msra.mxu0 0.0
    %2828 = vmatprep.subr.mxu0 0.0
    %2829 = vmatpush2.msra.mxu0 0.0
    %2830 = vmatprep.subr.mxu0 0.0
    %2831 = vmatpush2.msra.mxu0 0.0
    %2832 = vmatprep.subr.mxu0 0.0
    %2833 = vmatpush2.msra.mxu0 0.0
    %2834 = vmatprep.subr.mxu0 0.0
    %2835 = vmatpush2.msra.mxu0 0.0
    %2836 = vmatprep.subr.mxu0 0.0
    %2837 = vmatpush2.msra.mxu0 0.0
    %2838 = vmatprep.subr.mxu0 0.0
    %2839 = vmatpush2.msra.mxu0 0.0
    %2840 = vmatprep.subr.mxu0 0.0
    %2841 = vmatpush2.msra.mxu0 0.0
    %2842 = vmatprep.subr.mxu0 0.0
    %2843 = vmatpush2.msra.mxu0 0.0
    %2844 = vmatprep.subr.mxu0 0.0
    %2845 = vmatpush2.msra.mxu0 0.0
    %2846 = vmatprep.subr.mxu0 0.0
    %2847 = vmatpush2.msra.mxu0 0.0
    %2848 = vmatprep.subr.mxu0 0.0
    %2849 = vmatpush2.msra.mxu0 0.0
    %2850 = vmatprep.subr.mxu0 0.0
    %2851 = vmatpush2.msra.mxu0 0.0
    %2852 = vmatprep.subr.mxu0 0.0
    %2853 = vmatpush2.msra.mxu0 0.0
    %2854 = vmatprep.subr.mxu0 0.0
    %2855 = vmatpush2.msra.mxu0 0.0
    %2856 = vmatprep.subr.mxu0 0.0
    %2857 = vmatpush2.msra.mxu0 0.0
    %2858 = vmatprep.mubr.f32.mxu0 0.0
    %2859 = vmatmul.mubr.f32.gmra.mxu0 %v2714
    %v2860 = vpop.f32.mrf.mxu0
    %v2861 = vadd.f32 0.0, %v2860
    %v2862 = vpop.f32.mrf.mxu0
    %2863 = vdwg.mxu0
    %2865 = vrot.lane.b32.xlu0 %v2861, 32
    %v2866 = vpop.permute.xlu0 %2865
    %v2868 = vadd.f32 %v302, %v2866
    %v2869 = vadd.f32 %v2868, %v705
    %v2870 = vxor.u32 %v2869, 2147483648
    %v2871 = vmul.f32 %v2870, 1.442695
    %v2872 = vpow.pop %v2871
    %v2873 = vadd.f32 %v2872, 1.0
    %v2874 = vrcp.pop %v2873
    %v2875 = vmul.f32 1.0, %v2874
    %2876 = vmatprep.subr.mxu0 0.0
    %2877 = vmatpush1.msra.mxu0 0.0
    %2878 = vmatprep.subr.mxu0 0.0
    %2879 = vmatpush1.msra.mxu0 0.0
    %2880 = vmatprep.subr.mxu0 0.0
    %2881 = vmatpush1.msra.mxu0 0.0
    %2882 = vmatprep.subr.mxu0 0.0
    %2883 = vmatpush1.msra.mxu0 0.0
    %2884 = vmatprep.subr.mxu0 0.0
    %2885 = vmatpush1.msra.mxu0 0.0
    %2886 = vmatprep.subr.mxu0 0.0
    %2887 = vmatpush1.msra.mxu0 0.0
    %2888 = vmatprep.subr.mxu0 0.0
    %2889 = vmatpush1.msra.mxu0 0.0
    %2890 = vmatprep.subr.mxu0 0.0
    %2891 = vmatpush1.msra.mxu0 0.0
    %2892 = vmatprep.subr.mxu0 0.0
    %2893 = vmatpush1.msra.mxu0 0.0
    %2894 = vmatprep.subr.mxu0 0.0
    %2895 = vmatpush1.msra.mxu0 0.0
    %2896 = vmatprep.subr.mxu0 0.0
    %2897 = vmatpush1.msra.mxu0 0.0
    %2898 = vmatprep.subr.mxu0 0.0
    %2899 = vmatpush1.msra.mxu0 0.0
    %2900 = vmatprep.subr.mxu0 0.0
    %2901 = vmatpush1.msra.mxu0 %v819
    %2902 = vmatprep.subr.mxu0 0.0
    %2903 = vmatpush1.msra.mxu0 %v817
    %2904 = vmatprep.subr.mxu0 0.0
    %2905 = vmatpush1.msra.mxu0 %v815
    %2906 = vmatprep.subr.mxu0 0.0
    %2907 = vmatpush1.msra.mxu0 %v813
    %2908 = vmatprep.subr.mxu0 0.0
    %2909 = vmatpush2.msra.mxu0 0.0
    %2910 = vmatprep.subr.mxu0 0.0
    %2911 = vmatpush2.msra.mxu0 0.0
    %2912 = vmatprep.subr.mxu0 0.0
    %2913 = vmatpush2.msra.mxu0 0.0
    %2914 = vmatprep.subr.mxu0 0.0
    %2915 = vmatpush2.msra.mxu0 0.0
    %2916 = vmatprep.subr.mxu0 0.0
    %2917 = vmatpush2.msra.mxu0 0.0
    %2918 = vmatprep.subr.mxu0 0.0
    %2919 = vmatpush2.msra.mxu0 0.0
    %2920 = vmatprep.subr.mxu0 0.0
    %2921 = vmatpush2.msra.mxu0 0.0
    %2922 = vmatprep.subr.mxu0 0.0
    %2923 = vmatpush2.msra.mxu0 0.0
    %2924 = vmatprep.subr.mxu0 0.0
    %2925 = vmatpush2.msra.mxu0 0.0
    %2926 = vmatprep.subr.mxu0 0.0
    %2927 = vmatpush2.msra.mxu0 0.0
    %2928 = vmatprep.subr.mxu0 0.0
    %2929 = vmatpush2.msra.mxu0 0.0
    %2930 = vmatprep.subr.mxu0 0.0
    %2931 = vmatpush2.msra.mxu0 0.0
    %2932 = vmatprep.subr.mxu0 0.0
    %2933 = vmatpush2.msra.mxu0 0.0
    %2934 = vmatprep.subr.mxu0 0.0
    %2935 = vmatpush2.msra.mxu0 0.0
    %2936 = vmatprep.subr.mxu0 0.0
    %2937 = vmatpush2.msra.mxu0 0.0
    %2938 = vmatprep.subr.mxu0 0.0
    %2939 = vmatpush2.msra.mxu0 0.0
    %2940 = vmatprep.mubr.f32.mxu0 0.0
    %2941 = vmatmul.mubr.f32.gmra.mxu0 %v2714
    %v2942 = vpop.f32.mrf.mxu0
    %v2943 = vadd.f32 %v825, %v2942
    %v2944 = vpop.f32.mrf.mxu0
    %2945 = vdwg.mxu0
    %v2946 = vmul.f32 %v2793, %v2943
    %2948 = vrot.lane.b32.xlu0 %v2946, 64
    %v2949 = vpop.permute.xlu0 %2948
    %v2951 = vadd.f32 %v302, %v2949
    %v2952 = vtanh.pop %v2951
    %v2953 = vsub.f32 1.0, %v2875
    %2955 = vrot.lane.b32.xlu0 %v2952, 96
    %v2956 = vpop.permute.xlu0 %2955
    %v2958 = vmul.f32 %v2953, %v2956
    %v2959 = vmul.f32 %v2875, %v2459
    %v2960 = vadd.f32 %v2958, %v2959
    %v2961 = vsel %vm2201, %v2960, %v2459
    %2963 = vrot.lane.b32.xlu0 %v2710, 96
    %v2964 = vpop.permute.xlu0 %2963
    %v2965 = vsel %vm77, %v2964, 0
    %2967 = vmatprep.subr.mxu0 0.0
    %2968 = vmatpush1.msra.mxu0 0.0
    %2969 = vmatprep.subr.mxu0 0.0
    %2970 = vmatpush1.msra.mxu0 0.0
    %2971 = vmatprep.subr.mxu0 0.0
    %2972 = vmatpush1.msra.mxu0 0.0
    %2973 = vmatprep.subr.mxu0 0.0
    %2974 = vmatpush1.msra.mxu0 0.0
    %2975 = vmatprep.subr.mxu0 0.0
    %2976 = vmatpush1.msra.mxu0 0.0
    %2977 = vmatprep.subr.mxu0 0.0
    %2978 = vmatpush1.msra.mxu0 0.0
    %2979 = vmatprep.subr.mxu0 0.0
    %2980 = vmatpush1.msra.mxu0 0.0
    %2981 = vmatprep.subr.mxu0 0.0
    %2982 = vmatpush1.msra.mxu0 0.0
    %2983 = vmatprep.subr.mxu0 0.0
    %2984 = vmatpush1.msra.mxu0 0.0
    %2985 = vmatprep.subr.mxu0 0.0
    %2986 = vmatpush1.msra.mxu0 0.0
    %2987 = vmatprep.subr.mxu0 0.0
    %2988 = vmatpush1.msra.mxu0 0.0
    %2989 = vmatprep.subr.mxu0 0.0
    %2990 = vmatpush1.msra.mxu0 0.0
    %2991 = vmatprep.subr.mxu0 0.0
    %2992 = vmatpush1.msra.mxu0 %v328
    %2993 = vmatprep.subr.mxu0 0.0
    %2994 = vmatpush1.msra.mxu0 %v327
    %2995 = vmatprep.subr.mxu0 0.0
    %2996 = vmatpush1.msra.mxu0 %v326
    %2997 = vmatprep.subr.mxu0 0.0
    %2998 = vmatpush1.msra.mxu0 %v325
    %2999 = vmatprep.subr.mxu0 0.0
    %3000 = vmatpush2.msra.mxu0 0.0
    %3001 = vmatprep.subr.mxu0 0.0
    %3002 = vmatpush2.msra.mxu0 0.0
    %3003 = vmatprep.subr.mxu0 0.0
    %3004 = vmatpush2.msra.mxu0 0.0
    %3005 = vmatprep.subr.mxu0 0.0
    %3006 = vmatpush2.msra.mxu0 0.0
    %3007 = vmatprep.subr.mxu0 0.0
    %3008 = vmatpush2.msra.mxu0 0.0
    %3009 = vmatprep.subr.mxu0 0.0
    %3010 = vmatpush2.msra.mxu0 0.0
    %3011 = vmatprep.subr.mxu0 0.0
    %3012 = vmatpush2.msra.mxu0 0.0
    %3013 = vmatprep.subr.mxu0 0.0
    %3014 = vmatpush2.msra.mxu0 0.0
    %3015 = vmatprep.subr.mxu0 0.0
    %3016 = vmatpush2.msra.mxu0 0.0
    %3017 = vmatprep.subr.mxu0 0.0
    %3018 = vmatpush2.msra.mxu0 0.0
    %3019 = vmatprep.subr.mxu0 0.0
    %3020 = vmatpush2.msra.mxu0 0.0
    %3021 = vmatprep.subr.mxu0 0.0
    %3022 = vmatpush2.msra.mxu0 0.0
    %3023 = vmatprep.subr.mxu0 0.0
    %3024 = vmatpush2.msra.mxu0 0.0
    %3025 = vmatprep.subr.mxu0 0.0
    %3026 = vmatpush2.msra.mxu0 0.0
    %3027 = vmatprep.subr.mxu0 0.0
    %3028 = vmatpush2.msra.mxu0 0.0
    %3029 = vmatprep.subr.mxu0 0.0
    %3030 = vmatpush2.msra.mxu0 0.0
    %3031 = vmatprep.mubr.f32.mxu0 0.0
    %3032 = vmatmul.mubr.f32.gmra.mxu0 %v2965
    %v3033 = vpop.f32.mrf.mxu0
    %v3034 = vadd.f32 0.0, %v3033
    %v3035 = vpop.f32.mrf.mxu0
    %3036 = vdwg.mxu0
    %v3037 = vadd.f32 %v194, %v3034
    %v3038 = vadd.f32 %v3037, %v416
    %v3039 = vxor.u32 %v3038, 2147483648
    %v3040 = vmul.f32 %v3039, 1.442695
    %v3041 = vpow.pop %v3040
    %v3042 = vadd.f32 %v3041, 1.0
    %v3043 = vrcp.pop %v3042
    %v3044 = vmul.f32 1.0, %v3043
    %3045 = vmatprep.subr.mxu0 0.0
    %3046 = vmatpush1.msra.mxu0 0.0
    %3047 = vmatprep.subr.mxu0 0.0
    %3048 = vmatpush1.msra.mxu0 0.0
    %3049 = vmatprep.subr.mxu0 0.0
    %3050 = vmatpush1.msra.mxu0 0.0
    %3051 = vmatprep.subr.mxu0 0.0
    %3052 = vmatpush1.msra.mxu0 0.0
    %3053 = vmatprep.subr.mxu0 0.0
    %3054 = vmatpush1.msra.mxu0 0.0
    %3055 = vmatprep.subr.mxu0 0.0
    %3056 = vmatpush1.msra.mxu0 0.0
    %3057 = vmatprep.subr.mxu0 0.0
    %3058 = vmatpush1.msra.mxu0 0.0
    %3059 = vmatprep.subr.mxu0 0.0
    %3060 = vmatpush1.msra.mxu0 0.0
    %3061 = vmatprep.subr.mxu0 0.0
    %3062 = vmatpush1.msra.mxu0 0.0
    %3063 = vmatprep.subr.mxu0 0.0
    %3064 = vmatpush1.msra.mxu0 0.0
    %3065 = vmatprep.subr.mxu0 0.0
    %3066 = vmatpush1.msra.mxu0 0.0
    %3067 = vmatprep.subr.mxu0 0.0
    %3068 = vmatpush1.msra.mxu0 0.0
    %3069 = vmatprep.subr.mxu0 0.0
    %3070 = vmatpush1.msra.mxu0 %v436
    %3071 = vmatprep.subr.mxu0 0.0
    %3072 = vmatpush1.msra.mxu0 %v434
    %3073 = vmatprep.subr.mxu0 0.0
    %3074 = vmatpush1.msra.mxu0 %v432
    %3075 = vmatprep.subr.mxu0 0.0
    %3076 = vmatpush1.msra.mxu0 %v430
    %3077 = vmatprep.subr.mxu0 0.0
    %3078 = vmatpush2.msra.mxu0 0.0
    %3079 = vmatprep.subr.mxu0 0.0
    %3080 = vmatpush2.msra.mxu0 0.0
    %3081 = vmatprep.subr.mxu0 0.0
    %3082 = vmatpush2.msra.mxu0 0.0
    %3083 = vmatprep.subr.mxu0 0.0
    %3084 = vmatpush2.msra.mxu0 0.0
    %3085 = vmatprep.subr.mxu0 0.0
    %3086 = vmatpush2.msra.mxu0 0.0
    %3087 = vmatprep.subr.mxu0 0.0
    %3088 = vmatpush2.msra.mxu0 0.0
    %3089 = vmatprep.subr.mxu0 0.0
    %3090 = vmatpush2.msra.mxu0 0.0
    %3091 = vmatprep.subr.mxu0 0.0
    %3092 = vmatpush2.msra.mxu0 0.0
    %3093 = vmatprep.subr.mxu0 0.0
    %3094 = vmatpush2.msra.mxu0 0.0
    %3095 = vmatprep.subr.mxu0 0.0
    %3096 = vmatpush2.msra.mxu0 0.0
    %3097 = vmatprep.subr.mxu0 0.0
    %3098 = vmatpush2.msra.mxu0 0.0
    %3099 = vmatprep.subr.mxu0 0.0
    %3100 = vmatpush2.msra.mxu0 0.0
    %3101 = vmatprep.subr.mxu0 0.0
    %3102 = vmatpush2.msra.mxu0 0.0
    %3103 = vmatprep.subr.mxu0 0.0
    %3104 = vmatpush2.msra.mxu0 0.0
    %3105 = vmatprep.subr.mxu0 0.0
    %3106 = vmatpush2.msra.mxu0 0.0
    %3107 = vmatprep.subr.mxu0 0.0
    %3108 = vmatpush2.msra.mxu0 0.0
    %3109 = vmatprep.mubr.f32.mxu0 0.0
    %3110 = vmatmul.mubr.f32.gmra.mxu0 %v2965
    %v3111 = vpop.f32.mrf.mxu0
    %v3112 = vadd.f32 0.0, %v3111
    %v3113 = vpop.f32.mrf.mxu0
    %3114 = vdwg.mxu0
    %3116 = vrot.lane.b32.xlu0 %v3112, 32
    %v3117 = vpop.permute.xlu0 %3116
    %v3119 = vadd.f32 %v194, %v3117
    %v3120 = vadd.f32 %v3119, %v416
    %v3121 = vxor.u32 %v3120, 2147483648
    %v3122 = vmul.f32 %v3121, 1.442695
    %v3123 = vpow.pop %v3122
    %v3124 = vadd.f32 %v3123, 1.0
    %v3125 = vrcp.pop %v3124
    %v3126 = vmul.f32 1.0, %v3125
    %3127 = vmatprep.subr.mxu0 0.0
    %3128 = vmatpush1.msra.mxu0 0.0
    %3129 = vmatprep.subr.mxu0 0.0
    %3130 = vmatpush1.msra.mxu0 0.0
    %3131 = vmatprep.subr.mxu0 0.0
    %3132 = vmatpush1.msra.mxu0 0.0
    %3133 = vmatprep.subr.mxu0 0.0
    %3134 = vmatpush1.msra.mxu0 0.0
    %3135 = vmatprep.subr.mxu0 0.0
    %3136 = vmatpush1.msra.mxu0 0.0
    %3137 = vmatprep.subr.mxu0 0.0
    %3138 = vmatpush1.msra.mxu0 0.0
    %3139 = vmatprep.subr.mxu0 0.0
    %3140 = vmatpush1.msra.mxu0 0.0
    %3141 = vmatprep.subr.mxu0 0.0
    %3142 = vmatpush1.msra.mxu0 0.0
    %3143 = vmatprep.subr.mxu0 0.0
    %3144 = vmatpush1.msra.mxu0 0.0
    %3145 = vmatprep.subr.mxu0 0.0
    %3146 = vmatpush1.msra.mxu0 0.0
    %3147 = vmatprep.subr.mxu0 0.0
    %3148 = vmatpush1.msra.mxu0 0.0
    %3149 = vmatprep.subr.mxu0 0.0
    %3150 = vmatpush1.msra.mxu0 0.0
    %3151 = vmatprep.subr.mxu0 0.0
    %3152 = vmatpush1.msra.mxu0 %v530
    %3153 = vmatprep.subr.mxu0 0.0
    %3154 = vmatpush1.msra.mxu0 %v528
    %3155 = vmatprep.subr.mxu0 0.0
    %3156 = vmatpush1.msra.mxu0 %v526
    %3157 = vmatprep.subr.mxu0 0.0
    %3158 = vmatpush1.msra.mxu0 %v524
    %3159 = vmatprep.subr.mxu0 0.0
    %3160 = vmatpush2.msra.mxu0 0.0
    %3161 = vmatprep.subr.mxu0 0.0
    %3162 = vmatpush2.msra.mxu0 0.0
    %3163 = vmatprep.subr.mxu0 0.0
    %3164 = vmatpush2.msra.mxu0 0.0
    %3165 = vmatprep.subr.mxu0 0.0
    %3166 = vmatpush2.msra.mxu0 0.0
    %3167 = vmatprep.subr.mxu0 0.0
    %3168 = vmatpush2.msra.mxu0 0.0
    %3169 = vmatprep.subr.mxu0 0.0
    %3170 = vmatpush2.msra.mxu0 0.0
    %3171 = vmatprep.subr.mxu0 0.0
    %3172 = vmatpush2.msra.mxu0 0.0
    %3173 = vmatprep.subr.mxu0 0.0
    %3174 = vmatpush2.msra.mxu0 0.0
    %3175 = vmatprep.subr.mxu0 0.0
    %3176 = vmatpush2.msra.mxu0 0.0
    %3177 = vmatprep.subr.mxu0 0.0
    %3178 = vmatpush2.msra.mxu0 0.0
    %3179 = vmatprep.subr.mxu0 0.0
    %3180 = vmatpush2.msra.mxu0 0.0
    %3181 = vmatprep.subr.mxu0 0.0
    %3182 = vmatpush2.msra.mxu0 0.0
    %3183 = vmatprep.subr.mxu0 0.0
    %3184 = vmatpush2.msra.mxu0 0.0
    %3185 = vmatprep.subr.mxu0 0.0
    %3186 = vmatpush2.msra.mxu0 0.0
    %3187 = vmatprep.subr.mxu0 0.0
    %3188 = vmatpush2.msra.mxu0 0.0
    %3189 = vmatprep.subr.mxu0 0.0
    %3190 = vmatpush2.msra.mxu0 0.0
    %3191 = vmatprep.mubr.f32.mxu0 0.0
    %3192 = vmatmul.mubr.f32.gmra.mxu0 %v2965
    %v3193 = vpop.f32.mrf.mxu0
    %v3194 = vadd.f32 %v536, %v3193
    %v3195 = vpop.f32.mrf.mxu0
    %3196 = vdwg.mxu0
    %v3197 = vmul.f32 %v3044, %v3194
    %3199 = vrot.lane.b32.xlu0 %v3197, 64
    %v3200 = vpop.permute.xlu0 %3199
    %v3202 = vadd.f32 %v194, %v3200
    %v3203 = vtanh.pop %v3202
    %v3204 = vsub.f32 1.0, %v3126
    %3206 = vrot.lane.b32.xlu0 %v3203, 96
    %v3207 = vpop.permute.xlu0 %3206
    %v3209 = vmul.f32 %v3204, %v3207
    %v3210 = vmul.f32 %v3126, %v2710
    %v3211 = vadd.f32 %v3209, %v3210
    %v3212 = vsel %vm1944, %v3211, %v2710
    %3214 = vrot.lane.b32.xlu0 %v2961, 96
    %v3215 = vpop.permute.xlu0 %3214
    %v3216 = vsel %vm77, %v3215, 0
    %3218 = vmatprep.subr.mxu0 0.0
    %3219 = vmatpush1.msra.mxu0 0.0
    %3220 = vmatprep.subr.mxu0 0.0
    %3221 = vmatpush1.msra.mxu0 0.0
    %3222 = vmatprep.subr.mxu0 0.0
    %3223 = vmatpush1.msra.mxu0 0.0
    %3224 = vmatprep.subr.mxu0 0.0
    %3225 = vmatpush1.msra.mxu0 0.0
    %3226 = vmatprep.subr.mxu0 0.0
    %3227 = vmatpush1.msra.mxu0 0.0
    %3228 = vmatprep.subr.mxu0 0.0
    %3229 = vmatpush1.msra.mxu0 0.0
    %3230 = vmatprep.subr.mxu0 0.0
    %3231 = vmatpush1.msra.mxu0 0.0
    %3232 = vmatprep.subr.mxu0 0.0
    %3233 = vmatpush1.msra.mxu0 0.0
    %3234 = vmatprep.subr.mxu0 0.0
    %3235 = vmatpush1.msra.mxu0 0.0
    %3236 = vmatprep.subr.mxu0 0.0
    %3237 = vmatpush1.msra.mxu0 0.0
    %3238 = vmatprep.subr.mxu0 0.0
    %3239 = vmatpush1.msra.mxu0 0.0
    %3240 = vmatprep.subr.mxu0 0.0
    %3241 = vmatpush1.msra.mxu0 0.0
    %3242 = vmatprep.subr.mxu0 0.0
    %3243 = vmatpush1.msra.mxu0 %v334
    %3244 = vmatprep.subr.mxu0 0.0
    %3245 = vmatpush1.msra.mxu0 %v333
    %3246 = vmatprep.subr.mxu0 0.0
    %3247 = vmatpush1.msra.mxu0 %v332
    %3248 = vmatprep.subr.mxu0 0.0
    %3249 = vmatpush1.msra.mxu0 %v331
    %3250 = vmatprep.subr.mxu0 0.0
    %3251 = vmatpush2.msra.mxu0 0.0
    %3252 = vmatprep.subr.mxu0 0.0
    %3253 = vmatpush2.msra.mxu0 0.0
    %3254 = vmatprep.subr.mxu0 0.0
    %3255 = vmatpush2.msra.mxu0 0.0
    %3256 = vmatprep.subr.mxu0 0.0
    %3257 = vmatpush2.msra.mxu0 0.0
    %3258 = vmatprep.subr.mxu0 0.0
    %3259 = vmatpush2.msra.mxu0 0.0
    %3260 = vmatprep.subr.mxu0 0.0
    %3261 = vmatpush2.msra.mxu0 0.0
    %3262 = vmatprep.subr.mxu0 0.0
    %3263 = vmatpush2.msra.mxu0 0.0
    %3264 = vmatprep.subr.mxu0 0.0
    %3265 = vmatpush2.msra.mxu0 0.0
    %3266 = vmatprep.subr.mxu0 0.0
    %3267 = vmatpush2.msra.mxu0 0.0
    %3268 = vmatprep.subr.mxu0 0.0
    %3269 = vmatpush2.msra.mxu0 0.0
    %3270 = vmatprep.subr.mxu0 0.0
    %3271 = vmatpush2.msra.mxu0 0.0
    %3272 = vmatprep.subr.mxu0 0.0
    %3273 = vmatpush2.msra.mxu0 0.0
    %3274 = vmatprep.subr.mxu0 0.0
    %3275 = vmatpush2.msra.mxu0 0.0
    %3276 = vmatprep.subr.mxu0 0.0
    %3277 = vmatpush2.msra.mxu0 0.0
    %3278 = vmatprep.subr.mxu0 0.0
    %3279 = vmatpush2.msra.mxu0 0.0
    %3280 = vmatprep.subr.mxu0 0.0
    %3281 = vmatpush2.msra.mxu0 0.0
    %3282 = vmatprep.mubr.f32.mxu0 0.0
    %3283 = vmatmul.mubr.f32.gmra.mxu0 %v3216
    %v3284 = vpop.f32.mrf.mxu0
    %v3285 = vadd.f32 0.0, %v3284
    %v3286 = vpop.f32.mrf.mxu0
    %3287 = vdwg.mxu0
    %v3288 = vadd.f32 %v297, %v3285
    %v3289 = vadd.f32 %v3288, %v705
    %v3290 = vxor.u32 %v3289, 2147483648
    %v3291 = vmul.f32 %v3290, 1.442695
    %v3292 = vpow.pop %v3291
    %v3293 = vadd.f32 %v3292, 1.0
    %v3294 = vrcp.pop %v3293
    %v3295 = vmul.f32 1.0, %v3294
    %3296 = vmatprep.subr.mxu0 0.0
    %3297 = vmatpush1.msra.mxu0 0.0
    %3298 = vmatprep.subr.mxu0 0.0
    %3299 = vmatpush1.msra.mxu0 0.0
    %3300 = vmatprep.subr.mxu0 0.0
    %3301 = vmatpush1.msra.mxu0 0.0
    %3302 = vmatprep.subr.mxu0 0.0
    %3303 = vmatpush1.msra.mxu0 0.0
    %3304 = vmatprep.subr.mxu0 0.0
    %3305 = vmatpush1.msra.mxu0 0.0
    %3306 = vmatprep.subr.mxu0 0.0
    %3307 = vmatpush1.msra.mxu0 0.0
    %3308 = vmatprep.subr.mxu0 0.0
    %3309 = vmatpush1.msra.mxu0 0.0
    %3310 = vmatprep.subr.mxu0 0.0
    %3311 = vmatpush1.msra.mxu0 0.0
    %3312 = vmatprep.subr.mxu0 0.0
    %3313 = vmatpush1.msra.mxu0 0.0
    %3314 = vmatprep.subr.mxu0 0.0
    %3315 = vmatpush1.msra.mxu0 0.0
    %3316 = vmatprep.subr.mxu0 0.0
    %3317 = vmatpush1.msra.mxu0 0.0
    %3318 = vmatprep.subr.mxu0 0.0
    %3319 = vmatpush1.msra.mxu0 0.0
    %3320 = vmatprep.subr.mxu0 0.0
    %3321 = vmatpush1.msra.mxu0 %v725
    %3322 = vmatprep.subr.mxu0 0.0
    %3323 = vmatpush1.msra.mxu0 %v723
    %3324 = vmatprep.subr.mxu0 0.0
    %3325 = vmatpush1.msra.mxu0 %v721
    %3326 = vmatprep.subr.mxu0 0.0
    %3327 = vmatpush1.msra.mxu0 %v719
    %3328 = vmatprep.subr.mxu0 0.0
    %3329 = vmatpush2.msra.mxu0 0.0
    %3330 = vmatprep.subr.mxu0 0.0
    %3331 = vmatpush2.msra.mxu0 0.0
    %3332 = vmatprep.subr.mxu0 0.0
    %3333 = vmatpush2.msra.mxu0 0.0
    %3334 = vmatprep.subr.mxu0 0.0
    %3335 = vmatpush2.msra.mxu0 0.0
    %3336 = vmatprep.subr.mxu0 0.0
    %3337 = vmatpush2.msra.mxu0 0.0
    %3338 = vmatprep.subr.mxu0 0.0
    %3339 = vmatpush2.msra.mxu0 0.0
    %3340 = vmatprep.subr.mxu0 0.0
    %3341 = vmatpush2.msra.mxu0 0.0
    %3342 = vmatprep.subr.mxu0 0.0
    %3343 = vmatpush2.msra.mxu0 0.0
    %3344 = vmatprep.subr.mxu0 0.0
    %3345 = vmatpush2.msra.mxu0 0.0
    %3346 = vmatprep.subr.mxu0 0.0
    %3347 = vmatpush2.msra.mxu0 0.0
    %3348 = vmatprep.subr.mxu0 0.0
    %3349 = vmatpush2.msra.mxu0 0.0
    %3350 = vmatprep.subr.mxu0 0.0
    %3351 = vmatpush2.msra.mxu0 0.0
    %3352 = vmatprep.subr.mxu0 0.0
    %3353 = vmatpush2.msra.mxu0 0.0
    %3354 = vmatprep.subr.mxu0 0.0
    %3355 = vmatpush2.msra.mxu0 0.0
    %3356 = vmatprep.subr.mxu0 0.0
    %3357 = vmatpush2.msra.mxu0 0.0
    %3358 = vmatprep.subr.mxu0 0.0
    %3359 = vmatpush2.msra.mxu0 0.0
    %3360 = vmatprep.mubr.f32.mxu0 0.0
    %3361 = vmatmul.mubr.f32.gmra.mxu0 %v3216
    %v3362 = vpop.f32.mrf.mxu0
    %v3363 = vadd.f32 0.0, %v3362
    %v3364 = vpop.f32.mrf.mxu0
    %3365 = vdwg.mxu0
    %3367 = vrot.lane.b32.xlu0 %v3363, 32
    %v3368 = vpop.permute.xlu0 %3367
    %v3370 = vadd.f32 %v297, %v3368
    %v3371 = vadd.f32 %v3370, %v705
    %v3372 = vxor.u32 %v3371, 2147483648
    %v3373 = vmul.f32 %v3372, 1.442695
    %v3374 = vpow.pop %v3373
    %v3375 = vadd.f32 %v3374, 1.0
    %v3376 = vrcp.pop %v3375
    %v3377 = vmul.f32 1.0, %v3376
    %3378 = vmatprep.subr.mxu0 0.0
    %3379 = vmatpush1.msra.mxu0 0.0
    %3380 = vmatprep.subr.mxu0 0.0
    %3381 = vmatpush1.msra.mxu0 0.0
    %3382 = vmatprep.subr.mxu0 0.0
    %3383 = vmatpush1.msra.mxu0 0.0
    %3384 = vmatprep.subr.mxu0 0.0
    %3385 = vmatpush1.msra.mxu0 0.0
    %3386 = vmatprep.subr.mxu0 0.0
    %3387 = vmatpush1.msra.mxu0 0.0
    %3388 = vmatprep.subr.mxu0 0.0
    %3389 = vmatpush1.msra.mxu0 0.0
    %3390 = vmatprep.subr.mxu0 0.0
    %3391 = vmatpush1.msra.mxu0 0.0
    %3392 = vmatprep.subr.mxu0 0.0
    %3393 = vmatpush1.msra.mxu0 0.0
    %3394 = vmatprep.subr.mxu0 0.0
    %3395 = vmatpush1.msra.mxu0 0.0
    %3396 = vmatprep.subr.mxu0 0.0
    %3397 = vmatpush1.msra.mxu0 0.0
    %3398 = vmatprep.subr.mxu0 0.0
    %3399 = vmatpush1.msra.mxu0 0.0
    %3400 = vmatprep.subr.mxu0 0.0
    %3401 = vmatpush1.msra.mxu0 0.0
    %3402 = vmatprep.subr.mxu0 0.0
    %3403 = vmatpush1.msra.mxu0 %v819
    %3404 = vmatprep.subr.mxu0 0.0
    %3405 = vmatpush1.msra.mxu0 %v817
    %3406 = vmatprep.subr.mxu0 0.0
    %3407 = vmatpush1.msra.mxu0 %v815
    %3408 = vmatprep.subr.mxu0 0.0
    %3409 = vmatpush1.msra.mxu0 %v813
    %3410 = vmatprep.subr.mxu0 0.0
    %3411 = vmatpush2.msra.mxu0 0.0
    %3412 = vmatprep.subr.mxu0 0.0
    %3413 = vmatpush2.msra.mxu0 0.0
    %3414 = vmatprep.subr.mxu0 0.0
    %3415 = vmatpush2.msra.mxu0 0.0
    %3416 = vmatprep.subr.mxu0 0.0
    %3417 = vmatpush2.msra.mxu0 0.0
    %3418 = vmatprep.subr.mxu0 0.0
    %3419 = vmatpush2.msra.mxu0 0.0
    %3420 = vmatprep.subr.mxu0 0.0
    %3421 = vmatpush2.msra.mxu0 0.0
    %3422 = vmatprep.subr.mxu0 0.0
    %3423 = vmatpush2.msra.mxu0 0.0
    %3424 = vmatprep.subr.mxu0 0.0
    %3425 = vmatpush2.msra.mxu0 0.0
    %3426 = vmatprep.subr.mxu0 0.0
    %3427 = vmatpush2.msra.mxu0 0.0
    %3428 = vmatprep.subr.mxu0 0.0
    %3429 = vmatpush2.msra.mxu0 0.0
    %3430 = vmatprep.subr.mxu0 0.0
    %3431 = vmatpush2.msra.mxu0 0.0
    %3432 = vmatprep.subr.mxu0 0.0
    %3433 = vmatpush2.msra.mxu0 0.0
    %3434 = vmatprep.subr.mxu0 0.0
    %3435 = vmatpush2.msra.mxu0 0.0
    %3436 = vmatprep.subr.mxu0 0.0
    %3437 = vmatpush2.msra.mxu0 0.0
    %3438 = vmatprep.subr.mxu0 0.0
    %3439 = vmatpush2.msra.mxu0 0.0
    %3440 = vmatprep.subr.mxu0 0.0
    %3441 = vmatpush2.msra.mxu0 0.0
    %3442 = vmatprep.mubr.f32.mxu0 0.0
    %3443 = vmatmul.mubr.f32.gmra.mxu0 %v3216
    %v3444 = vpop.f32.mrf.mxu0
    %v3445 = vadd.f32 %v825, %v3444
    %v3446 = vpop.f32.mrf.mxu0
    %3447 = vdwg.mxu0
    %v3448 = vmul.f32 %v3295, %v3445
    %3450 = vrot.lane.b32.xlu0 %v3448, 64
    %v3451 = vpop.permute.xlu0 %3450
    %v3453 = vadd.f32 %v297, %v3451
    %v3454 = vtanh.pop %v3453
    %v3455 = vsub.f32 1.0, %v3377
    %3457 = vrot.lane.b32.xlu0 %v3454, 96
    %v3458 = vpop.permute.xlu0 %3457
    %v3460 = vmul.f32 %v3455, %v3458
    %v3461 = vmul.f32 %v3377, %v2961
    %v3462 = vadd.f32 %v3460, %v3461
    %v3463 = vsel %vm1687, %v3462, %v2961
    %3465 = vrot.lane.b32.xlu0 %v3212, 96
    %v3466 = vpop.permute.xlu0 %3465
    %v3467 = vsel %vm77, %v3466, 0
    %3469 = vmatprep.subr.mxu0 0.0
    %3470 = vmatpush1.msra.mxu0 0.0
    %3471 = vmatprep.subr.mxu0 0.0
    %3472 = vmatpush1.msra.mxu0 0.0
    %3473 = vmatprep.subr.mxu0 0.0
    %3474 = vmatpush1.msra.mxu0 0.0
    %3475 = vmatprep.subr.mxu0 0.0
    %3476 = vmatpush1.msra.mxu0 0.0
    %3477 = vmatprep.subr.mxu0 0.0
    %3478 = vmatpush1.msra.mxu0 0.0
    %3479 = vmatprep.subr.mxu0 0.0
    %3480 = vmatpush1.msra.mxu0 0.0
    %3481 = vmatprep.subr.mxu0 0.0
    %3482 = vmatpush1.msra.mxu0 0.0
    %3483 = vmatprep.subr.mxu0 0.0
    %3484 = vmatpush1.msra.mxu0 0.0
    %3485 = vmatprep.subr.mxu0 0.0
    %3486 = vmatpush1.msra.mxu0 0.0
    %3487 = vmatprep.subr.mxu0 0.0
    %3488 = vmatpush1.msra.mxu0 0.0
    %3489 = vmatprep.subr.mxu0 0.0
    %3490 = vmatpush1.msra.mxu0 0.0
    %3491 = vmatprep.subr.mxu0 0.0
    %3492 = vmatpush1.msra.mxu0 0.0
    %3493 = vmatprep.subr.mxu0 0.0
    %3494 = vmatpush1.msra.mxu0 %v328
    %3495 = vmatprep.subr.mxu0 0.0
    %3496 = vmatpush1.msra.mxu0 %v327
    %3497 = vmatprep.subr.mxu0 0.0
    %3498 = vmatpush1.msra.mxu0 %v326
    %3499 = vmatprep.subr.mxu0 0.0
    %3500 = vmatpush1.msra.mxu0 %v325
    %3501 = vmatprep.subr.mxu0 0.0
    %3502 = vmatpush2.msra.mxu0 0.0
    %3503 = vmatprep.subr.mxu0 0.0
    %3504 = vmatpush2.msra.mxu0 0.0
    %3505 = vmatprep.subr.mxu0 0.0
    %3506 = vmatpush2.msra.mxu0 0.0
    %3507 = vmatprep.subr.mxu0 0.0
    %3508 = vmatpush2.msra.mxu0 0.0
    %3509 = vmatprep.subr.mxu0 0.0
    %3510 = vmatpush2.msra.mxu0 0.0
    %3511 = vmatprep.subr.mxu0 0.0
    %3512 = vmatpush2.msra.mxu0 0.0
    %3513 = vmatprep.subr.mxu0 0.0
    %3514 = vmatpush2.msra.mxu0 0.0
    %3515 = vmatprep.subr.mxu0 0.0
    %3516 = vmatpush2.msra.mxu0 0.0
    %3517 = vmatprep.subr.mxu0 0.0
    %3518 = vmatpush2.msra.mxu0 0.0
    %3519 = vmatprep.subr.mxu0 0.0
    %3520 = vmatpush2.msra.mxu0 0.0
    %3521 = vmatprep.subr.mxu0 0.0
    %3522 = vmatpush2.msra.mxu0 0.0
    %3523 = vmatprep.subr.mxu0 0.0
    %3524 = vmatpush2.msra.mxu0 0.0
    %3525 = vmatprep.subr.mxu0 0.0
    %3526 = vmatpush2.msra.mxu0 0.0
    %3527 = vmatprep.subr.mxu0 0.0
    %3528 = vmatpush2.msra.mxu0 0.0
    %3529 = vmatprep.subr.mxu0 0.0
    %3530 = vmatpush2.msra.mxu0 0.0
    %3531 = vmatprep.subr.mxu0 0.0
    %3532 = vmatpush2.msra.mxu0 0.0
    %3533 = vmatprep.mubr.f32.mxu0 0.0
    %3534 = vmatmul.mubr.f32.gmra.mxu0 %v3467
    %v3535 = vpop.f32.mrf.mxu0
    %v3536 = vadd.f32 0.0, %v3535
    %v3537 = vpop.f32.mrf.mxu0
    %3538 = vdwg.mxu0
    %v3539 = vadd.f32 %v199, %v3536
    %v3540 = vadd.f32 %v3539, %v416
    %v3541 = vxor.u32 %v3540, 2147483648
    %v3542 = vmul.f32 %v3541, 1.442695
    %v3543 = vpow.pop %v3542
    %v3544 = vadd.f32 %v3543, 1.0
    %v3545 = vrcp.pop %v3544
    %v3546 = vmul.f32 1.0, %v3545
    %3547 = vmatprep.subr.mxu0 0.0
    %3548 = vmatpush1.msra.mxu0 0.0
    %3549 = vmatprep.subr.mxu0 0.0
    %3550 = vmatpush1.msra.mxu0 0.0
    %3551 = vmatprep.subr.mxu0 0.0
    %3552 = vmatpush1.msra.mxu0 0.0
    %3553 = vmatprep.subr.mxu0 0.0
    %3554 = vmatpush1.msra.mxu0 0.0
    %3555 = vmatprep.subr.mxu0 0.0
    %3556 = vmatpush1.msra.mxu0 0.0
    %3557 = vmatprep.subr.mxu0 0.0
    %3558 = vmatpush1.msra.mxu0 0.0
    %3559 = vmatprep.subr.mxu0 0.0
    %3560 = vmatpush1.msra.mxu0 0.0
    %3561 = vmatprep.subr.mxu0 0.0
    %3562 = vmatpush1.msra.mxu0 0.0
    %3563 = vmatprep.subr.mxu0 0.0
    %3564 = vmatpush1.msra.mxu0 0.0
    %3565 = vmatprep.subr.mxu0 0.0
    %3566 = vmatpush1.msra.mxu0 0.0
    %3567 = vmatprep.subr.mxu0 0.0
    %3568 = vmatpush1.msra.mxu0 0.0
    %3569 = vmatprep.subr.mxu0 0.0
    %3570 = vmatpush1.msra.mxu0 0.0
    %3571 = vmatprep.subr.mxu0 0.0
    %3572 = vmatpush1.msra.mxu0 %v436
    %3573 = vmatprep.subr.mxu0 0.0
    %3574 = vmatpush1.msra.mxu0 %v434
    %3575 = vmatprep.subr.mxu0 0.0
    %3576 = vmatpush1.msra.mxu0 %v432
    %3577 = vmatprep.subr.mxu0 0.0
    %3578 = vmatpush1.msra.mxu0 %v430
    %3579 = vmatprep.subr.mxu0 0.0
    %3580 = vmatpush2.msra.mxu0 0.0
    %3581 = vmatprep.subr.mxu0 0.0
    %3582 = vmatpush2.msra.mxu0 0.0
    %3583 = vmatprep.subr.mxu0 0.0
    %3584 = vmatpush2.msra.mxu0 0.0
    %3585 = vmatprep.subr.mxu0 0.0
    %3586 = vmatpush2.msra.mxu0 0.0
    %3587 = vmatprep.subr.mxu0 0.0
    %3588 = vmatpush2.msra.mxu0 0.0
    %3589 = vmatprep.subr.mxu0 0.0
    %3590 = vmatpush2.msra.mxu0 0.0
    %3591 = vmatprep.subr.mxu0 0.0
    %3592 = vmatpush2.msra.mxu0 0.0
    %3593 = vmatprep.subr.mxu0 0.0
    %3594 = vmatpush2.msra.mxu0 0.0
    %3595 = vmatprep.subr.mxu0 0.0
    %3596 = vmatpush2.msra.mxu0 0.0
    %3597 = vmatprep.subr.mxu0 0.0
    %3598 = vmatpush2.msra.mxu0 0.0
    %3599 = vmatprep.subr.mxu0 0.0
    %3600 = vmatpush2.msra.mxu0 0.0
    %3601 = vmatprep.subr.mxu0 0.0
    %3602 = vmatpush2.msra.mxu0 0.0
    %3603 = vmatprep.subr.mxu0 0.0
    %3604 = vmatpush2.msra.mxu0 0.0
    %3605 = vmatprep.subr.mxu0 0.0
    %3606 = vmatpush2.msra.mxu0 0.0
    %3607 = vmatprep.subr.mxu0 0.0
    %3608 = vmatpush2.msra.mxu0 0.0
    %3609 = vmatprep.subr.mxu0 0.0
    %3610 = vmatpush2.msra.mxu0 0.0
    %3611 = vmatprep.mubr.f32.mxu0 0.0
    %3612 = vmatmul.mubr.f32.gmra.mxu0 %v3467
    %v3613 = vpop.f32.mrf.mxu0
    %v3614 = vadd.f32 0.0, %v3613
    %v3615 = vpop.f32.mrf.mxu0
    %3616 = vdwg.mxu0
    %3618 = vrot.lane.b32.xlu0 %v3614, 32
    %v3619 = vpop.permute.xlu0 %3618
    %v3621 = vadd.f32 %v199, %v3619
    %v3622 = vadd.f32 %v3621, %v416
    %v3623 = vxor.u32 %v3622, 2147483648
    %v3624 = vmul.f32 %v3623, 1.442695
    %v3625 = vpow.pop %v3624
    %v3626 = vadd.f32 %v3625, 1.0
    %v3627 = vrcp.pop %v3626
    %v3628 = vmul.f32 1.0, %v3627
    %3629 = vmatprep.subr.mxu0 0.0
    %3630 = vmatpush1.msra.mxu0 0.0
    %3631 = vmatprep.subr.mxu0 0.0
    %3632 = vmatpush1.msra.mxu0 0.0
    %3633 = vmatprep.subr.mxu0 0.0
    %3634 = vmatpush1.msra.mxu0 0.0
    %3635 = vmatprep.subr.mxu0 0.0
    %3636 = vmatpush1.msra.mxu0 0.0
    %3637 = vmatprep.subr.mxu0 0.0
    %3638 = vmatpush1.msra.mxu0 0.0
    %3639 = vmatprep.subr.mxu0 0.0
    %3640 = vmatpush1.msra.mxu0 0.0
    %3641 = vmatprep.subr.mxu0 0.0
    %3642 = vmatpush1.msra.mxu0 0.0
    %3643 = vmatprep.subr.mxu0 0.0
    %3644 = vmatpush1.msra.mxu0 0.0
    %3645 = vmatprep.subr.mxu0 0.0
    %3646 = vmatpush1.msra.mxu0 0.0
    %3647 = vmatprep.subr.mxu0 0.0
    %3648 = vmatpush1.msra.mxu0 0.0
    %3649 = vmatprep.subr.mxu0 0.0
    %3650 = vmatpush1.msra.mxu0 0.0
    %3651 = vmatprep.subr.mxu0 0.0
    %3652 = vmatpush1.msra.mxu0 0.0
    %3653 = vmatprep.subr.mxu0 0.0
    %3654 = vmatpush1.msra.mxu0 %v530
    %3655 = vmatprep.subr.mxu0 0.0
    %3656 = vmatpush1.msra.mxu0 %v528
    %3657 = vmatprep.subr.mxu0 0.0
    %3658 = vmatpush1.msra.mxu0 %v526
    %3659 = vmatprep.subr.mxu0 0.0
    %3660 = vmatpush1.msra.mxu0 %v524
    %3661 = vmatprep.subr.mxu0 0.0
    %3662 = vmatpush2.msra.mxu0 0.0
    %3663 = vmatprep.subr.mxu0 0.0
    %3664 = vmatpush2.msra.mxu0 0.0
    %3665 = vmatprep.subr.mxu0 0.0
    %3666 = vmatpush2.msra.mxu0 0.0
    %3667 = vmatprep.subr.mxu0 0.0
    %3668 = vmatpush2.msra.mxu0 0.0
    %3669 = vmatprep.subr.mxu0 0.0
    %3670 = vmatpush2.msra.mxu0 0.0
    %3671 = vmatprep.subr.mxu0 0.0
    %3672 = vmatpush2.msra.mxu0 0.0
    %3673 = vmatprep.subr.mxu0 0.0
    %3674 = vmatpush2.msra.mxu0 0.0
    %3675 = vmatprep.subr.mxu0 0.0
    %3676 = vmatpush2.msra.mxu0 0.0
    %3677 = vmatprep.subr.mxu0 0.0
    %3678 = vmatpush2.msra.mxu0 0.0
    %3679 = vmatprep.subr.mxu0 0.0
    %3680 = vmatpush2.msra.mxu0 0.0
    %3681 = vmatprep.subr.mxu0 0.0
    %3682 = vmatpush2.msra.mxu0 0.0
    %3683 = vmatprep.subr.mxu0 0.0
    %3684 = vmatpush2.msra.mxu0 0.0
    %3685 = vmatprep.subr.mxu0 0.0
    %3686 = vmatpush2.msra.mxu0 0.0
    %3687 = vmatprep.subr.mxu0 0.0
    %3688 = vmatpush2.msra.mxu0 0.0
    %3689 = vmatprep.subr.mxu0 0.0
    %3690 = vmatpush2.msra.mxu0 0.0
    %3691 = vmatprep.subr.mxu0 0.0
    %3692 = vmatpush2.msra.mxu0 0.0
    %3693 = vmatprep.mubr.f32.mxu0 0.0
    %3694 = vmatmul.mubr.f32.gmra.mxu0 %v3467
    %v3695 = vpop.f32.mrf.mxu0
    %v3696 = vadd.f32 %v536, %v3695
    %v3697 = vpop.f32.mrf.mxu0
    %3698 = vdwg.mxu0
    %v3699 = vmul.f32 %v3546, %v3696
    %3701 = vrot.lane.b32.xlu0 %v3699, 64
    %v3702 = vpop.permute.xlu0 %3701
    %v3704 = vadd.f32 %v199, %v3702
    %v3705 = vtanh.pop %v3704
    %v3706 = vsub.f32 1.0, %v3628
    %3708 = vrot.lane.b32.xlu0 %v3705, 96
    %v3709 = vpop.permute.xlu0 %3708
    %v3711 = vmul.f32 %v3706, %v3709
    %v3712 = vmul.f32 %v3628, %v3212
    %v3713 = vadd.f32 %v3711, %v3712
    %v3714 = vsel %vm1430, %v3713, %v3212
    %3716 = vrot.lane.b32.xlu0 %v3463, 96
    %v3717 = vpop.permute.xlu0 %3716
    %v3718 = vsel %vm77, %v3717, 0
    %3720 = vmatprep.subr.mxu0 0.0
    %3721 = vmatpush1.msra.mxu0 0.0
    %3722 = vmatprep.subr.mxu0 0.0
    %3723 = vmatpush1.msra.mxu0 0.0
    %3724 = vmatprep.subr.mxu0 0.0
    %3725 = vmatpush1.msra.mxu0 0.0
    %3726 = vmatprep.subr.mxu0 0.0
    %3727 = vmatpush1.msra.mxu0 0.0
    %3728 = vmatprep.subr.mxu0 0.0
    %3729 = vmatpush1.msra.mxu0 0.0
    %3730 = vmatprep.subr.mxu0 0.0
    %3731 = vmatpush1.msra.mxu0 0.0
    %3732 = vmatprep.subr.mxu0 0.0
    %3733 = vmatpush1.msra.mxu0 0.0
    %3734 = vmatprep.subr.mxu0 0.0
    %3735 = vmatpush1.msra.mxu0 0.0
    %3736 = vmatprep.subr.mxu0 0.0
    %3737 = vmatpush1.msra.mxu0 0.0
    %3738 = vmatprep.subr.mxu0 0.0
    %3739 = vmatpush1.msra.mxu0 0.0
    %3740 = vmatprep.subr.mxu0 0.0
    %3741 = vmatpush1.msra.mxu0 0.0
    %3742 = vmatprep.subr.mxu0 0.0
    %3743 = vmatpush1.msra.mxu0 0.0
    %3744 = vmatprep.subr.mxu0 0.0
    %3745 = vmatpush1.msra.mxu0 %v334
    %3746 = vmatprep.subr.mxu0 0.0
    %3747 = vmatpush1.msra.mxu0 %v333
    %3748 = vmatprep.subr.mxu0 0.0
    %3749 = vmatpush1.msra.mxu0 %v332
    %3750 = vmatprep.subr.mxu0 0.0
    %3751 = vmatpush1.msra.mxu0 %v331
    %3752 = vmatprep.subr.mxu0 0.0
    %3753 = vmatpush2.msra.mxu0 0.0
    %3754 = vmatprep.subr.mxu0 0.0
    %3755 = vmatpush2.msra.mxu0 0.0
    %3756 = vmatprep.subr.mxu0 0.0
    %3757 = vmatpush2.msra.mxu0 0.0
    %3758 = vmatprep.subr.mxu0 0.0
    %3759 = vmatpush2.msra.mxu0 0.0
    %3760 = vmatprep.subr.mxu0 0.0
    %3761 = vmatpush2.msra.mxu0 0.0
    %3762 = vmatprep.subr.mxu0 0.0
    %3763 = vmatpush2.msra.mxu0 0.0
    %3764 = vmatprep.subr.mxu0 0.0
    %3765 = vmatpush2.msra.mxu0 0.0
    %3766 = vmatprep.subr.mxu0 0.0
    %3767 = vmatpush2.msra.mxu0 0.0
    %3768 = vmatprep.subr.mxu0 0.0
    %3769 = vmatpush2.msra.mxu0 0.0
    %3770 = vmatprep.subr.mxu0 0.0
    %3771 = vmatpush2.msra.mxu0 0.0
    %3772 = vmatprep.subr.mxu0 0.0
    %3773 = vmatpush2.msra.mxu0 0.0
    %3774 = vmatprep.subr.mxu0 0.0
    %3775 = vmatpush2.msra.mxu0 0.0
    %3776 = vmatprep.subr.mxu0 0.0
    %3777 = vmatpush2.msra.mxu0 0.0
    %3778 = vmatprep.subr.mxu0 0.0
    %3779 = vmatpush2.msra.mxu0 0.0
    %3780 = vmatprep.subr.mxu0 0.0
    %3781 = vmatpush2.msra.mxu0 0.0
    %3782 = vmatprep.subr.mxu0 0.0
    %3783 = vmatpush2.msra.mxu0 0.0
    %3784 = vmatprep.mubr.f32.mxu0 0.0
    %3785 = vmatmul.mubr.f32.gmra.mxu0 %v3718
    %v3786 = vpop.f32.mrf.mxu0
    %v3787 = vadd.f32 0.0, %v3786
    %v3788 = vpop.f32.mrf.mxu0
    %3789 = vdwg.mxu0
    %v3790 = vadd.f32 %v292, %v3787
    %v3791 = vadd.f32 %v3790, %v705
    %v3792 = vxor.u32 %v3791, 2147483648
    %v3793 = vmul.f32 %v3792, 1.442695
    %v3794 = vpow.pop %v3793
    %v3795 = vadd.f32 %v3794, 1.0
    %v3796 = vrcp.pop %v3795
    %v3797 = vmul.f32 1.0, %v3796
    %3798 = vmatprep.subr.mxu0 0.0
    %3799 = vmatpush1.msra.mxu0 0.0
    %3800 = vmatprep.subr.mxu0 0.0
    %3801 = vmatpush1.msra.mxu0 0.0
    %3802 = vmatprep.subr.mxu0 0.0
    %3803 = vmatpush1.msra.mxu0 0.0
    %3804 = vmatprep.subr.mxu0 0.0
    %3805 = vmatpush1.msra.mxu0 0.0
    %3806 = vmatprep.subr.mxu0 0.0
    %3807 = vmatpush1.msra.mxu0 0.0
    %3808 = vmatprep.subr.mxu0 0.0
    %3809 = vmatpush1.msra.mxu0 0.0
    %3810 = vmatprep.subr.mxu0 0.0
    %3811 = vmatpush1.msra.mxu0 0.0
    %3812 = vmatprep.subr.mxu0 0.0
    %3813 = vmatpush1.msra.mxu0 0.0
    %3814 = vmatprep.subr.mxu0 0.0
    %3815 = vmatpush1.msra.mxu0 0.0
    %3816 = vmatprep.subr.mxu0 0.0
    %3817 = vmatpush1.msra.mxu0 0.0
    %3818 = vmatprep.subr.mxu0 0.0
    %3819 = vmatpush1.msra.mxu0 0.0
    %3820 = vmatprep.subr.mxu0 0.0
    %3821 = vmatpush1.msra.mxu0 0.0
    %3822 = vmatprep.subr.mxu0 0.0
    %3823 = vmatpush1.msra.mxu0 %v725
    %3824 = vmatprep.subr.mxu0 0.0
    %3825 = vmatpush1.msra.mxu0 %v723
    %3826 = vmatprep.subr.mxu0 0.0
    %3827 = vmatpush1.msra.mxu0 %v721
    %3828 = vmatprep.subr.mxu0 0.0
    %3829 = vmatpush1.msra.mxu0 %v719
    %3830 = vmatprep.subr.mxu0 0.0
    %3831 = vmatpush2.msra.mxu0 0.0
    %3832 = vmatprep.subr.mxu0 0.0
    %3833 = vmatpush2.msra.mxu0 0.0
    %3834 = vmatprep.subr.mxu0 0.0
    %3835 = vmatpush2.msra.mxu0 0.0
    %3836 = vmatprep.subr.mxu0 0.0
    %3837 = vmatpush2.msra.mxu0 0.0
    %3838 = vmatprep.subr.mxu0 0.0
    %3839 = vmatpush2.msra.mxu0 0.0
    %3840 = vmatprep.subr.mxu0 0.0
    %3841 = vmatpush2.msra.mxu0 0.0
    %3842 = vmatprep.subr.mxu0 0.0
    %3843 = vmatpush2.msra.mxu0 0.0
    %3844 = vmatprep.subr.mxu0 0.0
    %3845 = vmatpush2.msra.mxu0 0.0
    %3846 = vmatprep.subr.mxu0 0.0
    %3847 = vmatpush2.msra.mxu0 0.0
    %3848 = vmatprep.subr.mxu0 0.0
    %3849 = vmatpush2.msra.mxu0 0.0
    %3850 = vmatprep.subr.mxu0 0.0
    %3851 = vmatpush2.msra.mxu0 0.0
    %3852 = vmatprep.subr.mxu0 0.0
    %3853 = vmatpush2.msra.mxu0 0.0
    %3854 = vmatprep.subr.mxu0 0.0
    %3855 = vmatpush2.msra.mxu0 0.0
    %3856 = vmatprep.subr.mxu0 0.0
    %3857 = vmatpush2.msra.mxu0 0.0
    %3858 = vmatprep.subr.mxu0 0.0
    %3859 = vmatpush2.msra.mxu0 0.0
    %3860 = vmatprep.subr.mxu0 0.0
    %3861 = vmatpush2.msra.mxu0 0.0
    %3862 = vmatprep.mubr.f32.mxu0 0.0
    %3863 = vmatmul.mubr.f32.gmra.mxu0 %v3718
    %v3864 = vpop.f32.mrf.mxu0
    %v3865 = vadd.f32 0.0, %v3864
    %v3866 = vpop.f32.mrf.mxu0
    %3867 = vdwg.mxu0
    %3869 = vrot.lane.b32.xlu0 %v3865, 32
    %v3870 = vpop.permute.xlu0 %3869
    %v3872 = vadd.f32 %v292, %v3870
    %v3873 = vadd.f32 %v3872, %v705
    %v3874 = vxor.u32 %v3873, 2147483648
    %v3875 = vmul.f32 %v3874, 1.442695
    %v3876 = vpow.pop %v3875
    %v3877 = vadd.f32 %v3876, 1.0
    %v3878 = vrcp.pop %v3877
    %v3879 = vmul.f32 1.0, %v3878
    %3880 = vmatprep.subr.mxu0 0.0
    %3881 = vmatpush1.msra.mxu0 0.0
    %3882 = vmatprep.subr.mxu0 0.0
    %3883 = vmatpush1.msra.mxu0 0.0
    %3884 = vmatprep.subr.mxu0 0.0
    %3885 = vmatpush1.msra.mxu0 0.0
    %3886 = vmatprep.subr.mxu0 0.0
    %3887 = vmatpush1.msra.mxu0 0.0
    %3888 = vmatprep.subr.mxu0 0.0
    %3889 = vmatpush1.msra.mxu0 0.0
    %3890 = vmatprep.subr.mxu0 0.0
    %3891 = vmatpush1.msra.mxu0 0.0
    %3892 = vmatprep.subr.mxu0 0.0
    %3893 = vmatpush1.msra.mxu0 0.0
    %3894 = vmatprep.subr.mxu0 0.0
    %3895 = vmatpush1.msra.mxu0 0.0
    %3896 = vmatprep.subr.mxu0 0.0
    %3897 = vmatpush1.msra.mxu0 0.0
    %3898 = vmatprep.subr.mxu0 0.0
    %3899 = vmatpush1.msra.mxu0 0.0
    %3900 = vmatprep.subr.mxu0 0.0
    %3901 = vmatpush1.msra.mxu0 0.0
    %3902 = vmatprep.subr.mxu0 0.0
    %3903 = vmatpush1.msra.mxu0 0.0
    %3904 = vmatprep.subr.mxu0 0.0
    %3905 = vmatpush1.msra.mxu0 %v819
    %3906 = vmatprep.subr.mxu0 0.0
    %3907 = vmatpush1.msra.mxu0 %v817
    %3908 = vmatprep.subr.mxu0 0.0
    %3909 = vmatpush1.msra.mxu0 %v815
    %3910 = vmatprep.subr.mxu0 0.0
    %3911 = vmatpush1.msra.mxu0 %v813
    %3912 = vmatprep.subr.mxu0 0.0
    %3913 = vmatpush2.msra.mxu0 0.0
    %3914 = vmatprep.subr.mxu0 0.0
    %3915 = vmatpush2.msra.mxu0 0.0
    %3916 = vmatprep.subr.mxu0 0.0
    %3917 = vmatpush2.msra.mxu0 0.0
    %3918 = vmatprep.subr.mxu0 0.0
    %3919 = vmatpush2.msra.mxu0 0.0
    %3920 = vmatprep.subr.mxu0 0.0
    %3921 = vmatpush2.msra.mxu0 0.0
    %3922 = vmatprep.subr.mxu0 0.0
    %3923 = vmatpush2.msra.mxu0 0.0
    %3924 = vmatprep.subr.mxu0 0.0
    %3925 = vmatpush2.msra.mxu0 0.0
    %3926 = vmatprep.subr.mxu0 0.0
    %3927 = vmatpush2.msra.mxu0 0.0
    %3928 = vmatprep.subr.mxu0 0.0
    %3929 = vmatpush2.msra.mxu0 0.0
    %3930 = vmatprep.subr.mxu0 0.0
    %3931 = vmatpush2.msra.mxu0 0.0
    %3932 = vmatprep.subr.mxu0 0.0
    %3933 = vmatpush2.msra.mxu0 0.0
    %3934 = vmatprep.subr.mxu0 0.0
    %3935 = vmatpush2.msra.mxu0 0.0
    %3936 = vmatprep.subr.mxu0 0.0
    %3937 = vmatpush2.msra.mxu0 0.0
    %3938 = vmatprep.subr.mxu0 0.0
    %3939 = vmatpush2.msra.mxu0 0.0
    %3940 = vmatprep.subr.mxu0 0.0
    %3941 = vmatpush2.msra.mxu0 0.0
    %3942 = vmatprep.subr.mxu0 0.0
    %3943 = vmatpush2.msra.mxu0 0.0
    %3944 = vmatprep.mubr.f32.mxu0 0.0
    %3945 = vmatmul.mubr.f32.gmra.mxu0 %v3718
    %v3946 = vpop.f32.mrf.mxu0
    %v3947 = vadd.f32 %v825, %v3946
    %v3948 = vpop.f32.mrf.mxu0
    %3949 = vdwg.mxu0
    %v3950 = vmul.f32 %v3797, %v3947
    %3952 = vrot.lane.b32.xlu0 %v3950, 64
    %v3953 = vpop.permute.xlu0 %3952
    %v3955 = vadd.f32 %v292, %v3953
    %v3956 = vtanh.pop %v3955
    %v3957 = vsub.f32 1.0, %v3879
    %3959 = vrot.lane.b32.xlu0 %v3956, 96
    %v3960 = vpop.permute.xlu0 %3959
    %v3962 = vmul.f32 %v3957, %v3960
    %v3963 = vmul.f32 %v3879, %v3463
    %v3964 = vadd.f32 %v3962, %v3963
    %v3965 = vsel %vm1173, %v3964, %v3463
    %3967 = vrot.lane.b32.xlu0 %v3714, 96
    %v3968 = vpop.permute.xlu0 %3967
    %v3969 = vsel %vm77, %v3968, 0
    %3971 = vmatprep.subr.mxu0 0.0
    %3972 = vmatpush1.msra.mxu0 0.0
    %3973 = vmatprep.subr.mxu0 0.0
    %3974 = vmatpush1.msra.mxu0 0.0
    %3975 = vmatprep.subr.mxu0 0.0
    %3976 = vmatpush1.msra.mxu0 0.0
    %3977 = vmatprep.subr.mxu0 0.0
    %3978 = vmatpush1.msra.mxu0 0.0
    %3979 = vmatprep.subr.mxu0 0.0
    %3980 = vmatpush1.msra.mxu0 0.0
    %3981 = vmatprep.subr.mxu0 0.0
    %3982 = vmatpush1.msra.mxu0 0.0
    %3983 = vmatprep.subr.mxu0 0.0
    %3984 = vmatpush1.msra.mxu0 0.0
    %3985 = vmatprep.subr.mxu0 0.0
    %3986 = vmatpush1.msra.mxu0 0.0
    %3987 = vmatprep.subr.mxu0 0.0
    %3988 = vmatpush1.msra.mxu0 0.0
    %3989 = vmatprep.subr.mxu0 0.0
    %3990 = vmatpush1.msra.mxu0 0.0
    %3991 = vmatprep.subr.mxu0 0.0
    %3992 = vmatpush1.msra.mxu0 0.0
    %3993 = vmatprep.subr.mxu0 0.0
    %3994 = vmatpush1.msra.mxu0 0.0
    %3995 = vmatprep.subr.mxu0 0.0
    %3996 = vmatpush1.msra.mxu0 %v328
    %3997 = vmatprep.subr.mxu0 0.0
    %3998 = vmatpush1.msra.mxu0 %v327
    %3999 = vmatprep.subr.mxu0 0.0
    %4000 = vmatpush1.msra.mxu0 %v326
    %4001 = vmatprep.subr.mxu0 0.0
    %4002 = vmatpush1.msra.mxu0 %v325
    %4003 = vmatprep.subr.mxu0 0.0
    %4004 = vmatpush2.msra.mxu0 0.0
    %4005 = vmatprep.subr.mxu0 0.0
    %4006 = vmatpush2.msra.mxu0 0.0
    %4007 = vmatprep.subr.mxu0 0.0
    %4008 = vmatpush2.msra.mxu0 0.0
    %4009 = vmatprep.subr.mxu0 0.0
    %4010 = vmatpush2.msra.mxu0 0.0
    %4011 = vmatprep.subr.mxu0 0.0
    %4012 = vmatpush2.msra.mxu0 0.0
    %4013 = vmatprep.subr.mxu0 0.0
    %4014 = vmatpush2.msra.mxu0 0.0
    %4015 = vmatprep.subr.mxu0 0.0
    %4016 = vmatpush2.msra.mxu0 0.0
    %4017 = vmatprep.subr.mxu0 0.0
    %4018 = vmatpush2.msra.mxu0 0.0
    %4019 = vmatprep.subr.mxu0 0.0
    %4020 = vmatpush2.msra.mxu0 0.0
    %4021 = vmatprep.subr.mxu0 0.0
    %4022 = vmatpush2.msra.mxu0 0.0
    %4023 = vmatprep.subr.mxu0 0.0
    %4024 = vmatpush2.msra.mxu0 0.0
    %4025 = vmatprep.subr.mxu0 0.0
    %4026 = vmatpush2.msra.mxu0 0.0
    %4027 = vmatprep.subr.mxu0 0.0
    %4028 = vmatpush2.msra.mxu0 0.0
    %4029 = vmatprep.subr.mxu0 0.0
    %4030 = vmatpush2.msra.mxu0 0.0
    %4031 = vmatprep.subr.mxu0 0.0
    %4032 = vmatpush2.msra.mxu0 0.0
    %4033 = vmatprep.subr.mxu0 0.0
    %4034 = vmatpush2.msra.mxu0 0.0
    %4035 = vmatprep.mubr.f32.mxu0 0.0
    %4036 = vmatmul.mubr.f32.gmra.mxu0 %v3969
    %v4037 = vpop.f32.mrf.mxu0
    %v4038 = vadd.f32 0.0, %v4037
    %v4039 = vpop.f32.mrf.mxu0
    %4040 = vdwg.mxu0
    %v4041 = vadd.f32 %v204, %v4038
    %v4042 = vadd.f32 %v4041, %v416
    %v4043 = vxor.u32 %v4042, 2147483648
    %v4044 = vmul.f32 %v4043, 1.442695
    %v4045 = vpow.pop %v4044
    %v4046 = vadd.f32 %v4045, 1.0
    %v4047 = vrcp.pop %v4046
    %v4048 = vmul.f32 1.0, %v4047
    %4049 = vmatprep.subr.mxu0 0.0
    %4050 = vmatpush1.msra.mxu0 0.0
    %4051 = vmatprep.subr.mxu0 0.0
    %4052 = vmatpush1.msra.mxu0 0.0
    %4053 = vmatprep.subr.mxu0 0.0
    %4054 = vmatpush1.msra.mxu0 0.0
    %4055 = vmatprep.subr.mxu0 0.0
    %4056 = vmatpush1.msra.mxu0 0.0
    %4057 = vmatprep.subr.mxu0 0.0
    %4058 = vmatpush1.msra.mxu0 0.0
    %4059 = vmatprep.subr.mxu0 0.0
    %4060 = vmatpush1.msra.mxu0 0.0
    %4061 = vmatprep.subr.mxu0 0.0
    %4062 = vmatpush1.msra.mxu0 0.0
    %4063 = vmatprep.subr.mxu0 0.0
    %4064 = vmatpush1.msra.mxu0 0.0
    %4065 = vmatprep.subr.mxu0 0.0
    %4066 = vmatpush1.msra.mxu0 0.0
    %4067 = vmatprep.subr.mxu0 0.0
    %4068 = vmatpush1.msra.mxu0 0.0
    %4069 = vmatprep.subr.mxu0 0.0
    %4070 = vmatpush1.msra.mxu0 0.0
    %4071 = vmatprep.subr.mxu0 0.0
    %4072 = vmatpush1.msra.mxu0 0.0
    %4073 = vmatprep.subr.mxu0 0.0
    %4074 = vmatpush1.msra.mxu0 %v436
    %4075 = vmatprep.subr.mxu0 0.0
    %4076 = vmatpush1.msra.mxu0 %v434
    %4077 = vmatprep.subr.mxu0 0.0
    %4078 = vmatpush1.msra.mxu0 %v432
    %4079 = vmatprep.subr.mxu0 0.0
    %4080 = vmatpush1.msra.mxu0 %v430
    %4081 = vmatprep.subr.mxu0 0.0
    %4082 = vmatpush2.msra.mxu0 0.0
    %4083 = vmatprep.subr.mxu0 0.0
    %4084 = vmatpush2.msra.mxu0 0.0
    %4085 = vmatprep.subr.mxu0 0.0
    %4086 = vmatpush2.msra.mxu0 0.0
    %4087 = vmatprep.subr.mxu0 0.0
    %4088 = vmatpush2.msra.mxu0 0.0
    %4089 = vmatprep.subr.mxu0 0.0
    %4090 = vmatpush2.msra.mxu0 0.0
    %4091 = vmatprep.subr.mxu0 0.0
    %4092 = vmatpush2.msra.mxu0 0.0
    %4093 = vmatprep.subr.mxu0 0.0
    %4094 = vmatpush2.msra.mxu0 0.0
    %4095 = vmatprep.subr.mxu0 0.0
    %4096 = vmatpush2.msra.mxu0 0.0
    %4097 = vmatprep.subr.mxu0 0.0
    %4098 = vmatpush2.msra.mxu0 0.0
    %4099 = vmatprep.subr.mxu0 0.0
    %4100 = vmatpush2.msra.mxu0 0.0
    %4101 = vmatprep.subr.mxu0 0.0
    %4102 = vmatpush2.msra.mxu0 0.0
    %4103 = vmatprep.subr.mxu0 0.0
    %4104 = vmatpush2.msra.mxu0 0.0
    %4105 = vmatprep.subr.mxu0 0.0
    %4106 = vmatpush2.msra.mxu0 0.0
    %4107 = vmatprep.subr.mxu0 0.0
    %4108 = vmatpush2.msra.mxu0 0.0
    %4109 = vmatprep.subr.mxu0 0.0
    %4110 = vmatpush2.msra.mxu0 0.0
    %4111 = vmatprep.subr.mxu0 0.0
    %4112 = vmatpush2.msra.mxu0 0.0
    %4113 = vmatprep.mubr.f32.mxu0 0.0
    %4114 = vmatmul.mubr.f32.gmra.mxu0 %v3969
    %v4115 = vpop.f32.mrf.mxu0
    %v4116 = vadd.f32 0.0, %v4115
    %v4117 = vpop.f32.mrf.mxu0
    %4118 = vdwg.mxu0
    %4120 = vrot.lane.b32.xlu0 %v4116, 32
    %v4121 = vpop.permute.xlu0 %4120
    %v4123 = vadd.f32 %v204, %v4121
    %v4124 = vadd.f32 %v4123, %v416
    %v4125 = vxor.u32 %v4124, 2147483648
    %v4126 = vmul.f32 %v4125, 1.442695
    %v4127 = vpow.pop %v4126
    %v4128 = vadd.f32 %v4127, 1.0
    %v4129 = vrcp.pop %v4128
    %v4130 = vmul.f32 1.0, %v4129
    %4131 = vmatprep.subr.mxu0 0.0
    %4132 = vmatpush1.msra.mxu0 0.0
    %4133 = vmatprep.subr.mxu0 0.0
    %4134 = vmatpush1.msra.mxu0 0.0
    %4135 = vmatprep.subr.mxu0 0.0
    %4136 = vmatpush1.msra.mxu0 0.0
    %4137 = vmatprep.subr.mxu0 0.0
    %4138 = vmatpush1.msra.mxu0 0.0
    %4139 = vmatprep.subr.mxu0 0.0
    %4140 = vmatpush1.msra.mxu0 0.0
    %4141 = vmatprep.subr.mxu0 0.0
    %4142 = vmatpush1.msra.mxu0 0.0
    %4143 = vmatprep.subr.mxu0 0.0
    %4144 = vmatpush1.msra.mxu0 0.0
    %4145 = vmatprep.subr.mxu0 0.0
    %4146 = vmatpush1.msra.mxu0 0.0
    %4147 = vmatprep.subr.mxu0 0.0
    %4148 = vmatpush1.msra.mxu0 0.0
    %4149 = vmatprep.subr.mxu0 0.0
    %4150 = vmatpush1.msra.mxu0 0.0
    %4151 = vmatprep.subr.mxu0 0.0
    %4152 = vmatpush1.msra.mxu0 0.0
    %4153 = vmatprep.subr.mxu0 0.0
    %4154 = vmatpush1.msra.mxu0 0.0
    %4155 = vmatprep.subr.mxu0 0.0
    %4156 = vmatpush1.msra.mxu0 %v530
    %4157 = vmatprep.subr.mxu0 0.0
    %4158 = vmatpush1.msra.mxu0 %v528
    %4159 = vmatprep.subr.mxu0 0.0
    %4160 = vmatpush1.msra.mxu0 %v526
    %4161 = vmatprep.subr.mxu0 0.0
    %4162 = vmatpush1.msra.mxu0 %v524
    %4163 = vmatprep.subr.mxu0 0.0
    %4164 = vmatpush2.msra.mxu0 0.0
    %4165 = vmatprep.subr.mxu0 0.0
    %4166 = vmatpush2.msra.mxu0 0.0
    %4167 = vmatprep.subr.mxu0 0.0
    %4168 = vmatpush2.msra.mxu0 0.0
    %4169 = vmatprep.subr.mxu0 0.0
    %4170 = vmatpush2.msra.mxu0 0.0
    %4171 = vmatprep.subr.mxu0 0.0
    %4172 = vmatpush2.msra.mxu0 0.0
    %4173 = vmatprep.subr.mxu0 0.0
    %4174 = vmatpush2.msra.mxu0 0.0
    %4175 = vmatprep.subr.mxu0 0.0
    %4176 = vmatpush2.msra.mxu0 0.0
    %4177 = vmatprep.subr.mxu0 0.0
    %4178 = vmatpush2.msra.mxu0 0.0
    %4179 = vmatprep.subr.mxu0 0.0
    %4180 = vmatpush2.msra.mxu0 0.0
    %4181 = vmatprep.subr.mxu0 0.0
    %4182 = vmatpush2.msra.mxu0 0.0
    %4183 = vmatprep.subr.mxu0 0.0
    %4184 = vmatpush2.msra.mxu0 0.0
    %4185 = vmatprep.subr.mxu0 0.0
    %4186 = vmatpush2.msra.mxu0 0.0
    %4187 = vmatprep.subr.mxu0 0.0
    %4188 = vmatpush2.msra.mxu0 0.0
    %4189 = vmatprep.subr.mxu0 0.0
    %4190 = vmatpush2.msra.mxu0 0.0
    %4191 = vmatprep.subr.mxu0 0.0
    %4192 = vmatpush2.msra.mxu0 0.0
    %4193 = vmatprep.subr.mxu0 0.0
    %4194 = vmatpush2.msra.mxu0 0.0
    %4195 = vmatprep.mubr.f32.mxu0 0.0
    %4196 = vmatmul.mubr.f32.gmra.mxu0 %v3969
    %v4197 = vpop.f32.mrf.mxu0
    %v4198 = vadd.f32 %v536, %v4197
    %v4199 = vpop.f32.mrf.mxu0
    %4200 = vdwg.mxu0
    %v4201 = vmul.f32 %v4048, %v4198
    %4203 = vrot.lane.b32.xlu0 %v4201, 64
    %v4204 = vpop.permute.xlu0 %4203
    %v4206 = vadd.f32 %v204, %v4204
    %v4207 = vtanh.pop %v4206
    %v4208 = vsub.f32 1.0, %v4130
    %4210 = vrot.lane.b32.xlu0 %v4207, 96
    %v4211 = vpop.permute.xlu0 %4210
    %v4213 = vmul.f32 %v4208, %v4211
    %v4214 = vmul.f32 %v4130, %v3714
    %v4215 = vadd.f32 %v4213, %v4214
    %v4216 = vsel %vm916, %v4215, %v3714
    %4218 = vrot.lane.b32.xlu0 %v3965, 96
    %v4219 = vpop.permute.xlu0 %4218
    %v4220 = vsel %vm77, %v4219, 0
    %4222 = vmatprep.subr.mxu0 0.0
    %4223 = vmatpush1.msra.mxu0 0.0
    %4224 = vmatprep.subr.mxu0 0.0
    %4225 = vmatpush1.msra.mxu0 0.0
    %4226 = vmatprep.subr.mxu0 0.0
    %4227 = vmatpush1.msra.mxu0 0.0
    %4228 = vmatprep.subr.mxu0 0.0
    %4229 = vmatpush1.msra.mxu0 0.0
    %4230 = vmatprep.subr.mxu0 0.0
    %4231 = vmatpush1.msra.mxu0 0.0
    %4232 = vmatprep.subr.mxu0 0.0
    %4233 = vmatpush1.msra.mxu0 0.0
    %4234 = vmatprep.subr.mxu0 0.0
    %4235 = vmatpush1.msra.mxu0 0.0
    %4236 = vmatprep.subr.mxu0 0.0
    %4237 = vmatpush1.msra.mxu0 0.0
    %4238 = vmatprep.subr.mxu0 0.0
    %4239 = vmatpush1.msra.mxu0 0.0
    %4240 = vmatprep.subr.mxu0 0.0
    %4241 = vmatpush1.msra.mxu0 0.0
    %4242 = vmatprep.subr.mxu0 0.0
    %4243 = vmatpush1.msra.mxu0 0.0
    %4244 = vmatprep.subr.mxu0 0.0
    %4245 = vmatpush1.msra.mxu0 0.0
    %4246 = vmatprep.subr.mxu0 0.0
    %4247 = vmatpush1.msra.mxu0 %v334
    %4248 = vmatprep.subr.mxu0 0.0
    %4249 = vmatpush1.msra.mxu0 %v333
    %4250 = vmatprep.subr.mxu0 0.0
    %4251 = vmatpush1.msra.mxu0 %v332
    %4252 = vmatprep.subr.mxu0 0.0
    %4253 = vmatpush1.msra.mxu0 %v331
    %4254 = vmatprep.subr.mxu0 0.0
    %4255 = vmatpush2.msra.mxu0 0.0
    %4256 = vmatprep.subr.mxu0 0.0
    %4257 = vmatpush2.msra.mxu0 0.0
    %4258 = vmatprep.subr.mxu0 0.0
    %4259 = vmatpush2.msra.mxu0 0.0
    %4260 = vmatprep.subr.mxu0 0.0
    %4261 = vmatpush2.msra.mxu0 0.0
    %4262 = vmatprep.subr.mxu0 0.0
    %4263 = vmatpush2.msra.mxu0 0.0
    %4264 = vmatprep.subr.mxu0 0.0
    %4265 = vmatpush2.msra.mxu0 0.0
    %4266 = vmatprep.subr.mxu0 0.0
    %4267 = vmatpush2.msra.mxu0 0.0
    %4268 = vmatprep.subr.mxu0 0.0
    %4269 = vmatpush2.msra.mxu0 0.0
    %4270 = vmatprep.subr.mxu0 0.0
    %4271 = vmatpush2.msra.mxu0 0.0
    %4272 = vmatprep.subr.mxu0 0.0
    %4273 = vmatpush2.msra.mxu0 0.0
    %4274 = vmatprep.subr.mxu0 0.0
    %4275 = vmatpush2.msra.mxu0 0.0
    %4276 = vmatprep.subr.mxu0 0.0
    %4277 = vmatpush2.msra.mxu0 0.0
    %4278 = vmatprep.subr.mxu0 0.0
    %4279 = vmatpush2.msra.mxu0 0.0
    %4280 = vmatprep.subr.mxu0 0.0
    %4281 = vmatpush2.msra.mxu0 0.0
    %4282 = vmatprep.subr.mxu0 0.0
    %4283 = vmatpush2.msra.mxu0 0.0
    %4284 = vmatprep.subr.mxu0 0.0
    %4285 = vmatpush2.msra.mxu0 0.0
    %4286 = vmatprep.mubr.f32.mxu0 0.0
    %4287 = vmatmul.mubr.f32.gmra.mxu0 %v4220
    %v4288 = vpop.f32.mrf.mxu0
    %v4289 = vadd.f32 0.0, %v4288
    %v4290 = vpop.f32.mrf.mxu0
    %4291 = vdwg.mxu0
    %v4292 = vadd.f32 %v287, %v4289
    %v4293 = vadd.f32 %v4292, %v705
    %v4294 = vxor.u32 %v4293, 2147483648
    %v4295 = vmul.f32 %v4294, 1.442695
    %v4296 = vpow.pop %v4295
    %v4297 = vadd.f32 %v4296, 1.0
    %v4298 = vrcp.pop %v4297
    %v4299 = vmul.f32 1.0, %v4298
    %4300 = vmatprep.subr.mxu0 0.0
    %4301 = vmatpush1.msra.mxu0 0.0
    %4302 = vmatprep.subr.mxu0 0.0
    %4303 = vmatpush1.msra.mxu0 0.0
    %4304 = vmatprep.subr.mxu0 0.0
    %4305 = vmatpush1.msra.mxu0 0.0
    %4306 = vmatprep.subr.mxu0 0.0
    %4307 = vmatpush1.msra.mxu0 0.0
    %4308 = vmatprep.subr.mxu0 0.0
    %4309 = vmatpush1.msra.mxu0 0.0
    %4310 = vmatprep.subr.mxu0 0.0
    %4311 = vmatpush1.msra.mxu0 0.0
    %4312 = vmatprep.subr.mxu0 0.0
    %4313 = vmatpush1.msra.mxu0 0.0
    %4314 = vmatprep.subr.mxu0 0.0
    %4315 = vmatpush1.msra.mxu0 0.0
    %4316 = vmatprep.subr.mxu0 0.0
    %4317 = vmatpush1.msra.mxu0 0.0
    %4318 = vmatprep.subr.mxu0 0.0
    %4319 = vmatpush1.msra.mxu0 0.0
    %4320 = vmatprep.subr.mxu0 0.0
    %4321 = vmatpush1.msra.mxu0 0.0
    %4322 = vmatprep.subr.mxu0 0.0
    %4323 = vmatpush1.msra.mxu0 0.0
    %4324 = vmatprep.subr.mxu0 0.0
    %4325 = vmatpush1.msra.mxu0 %v725
    %4326 = vmatprep.subr.mxu0 0.0
    %4327 = vmatpush1.msra.mxu0 %v723
    %4328 = vmatprep.subr.mxu0 0.0
    %4329 = vmatpush1.msra.mxu0 %v721
    %4330 = vmatprep.subr.mxu0 0.0
    %4331 = vmatpush1.msra.mxu0 %v719
    %4332 = vmatprep.subr.mxu0 0.0
    %4333 = vmatpush2.msra.mxu0 0.0
    %4334 = vmatprep.subr.mxu0 0.0
    %4335 = vmatpush2.msra.mxu0 0.0
    %4336 = vmatprep.subr.mxu0 0.0
    %4337 = vmatpush2.msra.mxu0 0.0
    %4338 = vmatprep.subr.mxu0 0.0
    %4339 = vmatpush2.msra.mxu0 0.0
    %4340 = vmatprep.subr.mxu0 0.0
    %4341 = vmatpush2.msra.mxu0 0.0
    %4342 = vmatprep.subr.mxu0 0.0
    %4343 = vmatpush2.msra.mxu0 0.0
    %4344 = vmatprep.subr.mxu0 0.0
    %4345 = vmatpush2.msra.mxu0 0.0
    %4346 = vmatprep.subr.mxu0 0.0
    %4347 = vmatpush2.msra.mxu0 0.0
    %4348 = vmatprep.subr.mxu0 0.0
    %4349 = vmatpush2.msra.mxu0 0.0
    %4350 = vmatprep.subr.mxu0 0.0
    %4351 = vmatpush2.msra.mxu0 0.0
    %4352 = vmatprep.subr.mxu0 0.0
    %4353 = vmatpush2.msra.mxu0 0.0
    %4354 = vmatprep.subr.mxu0 0.0
    %4355 = vmatpush2.msra.mxu0 0.0
    %4356 = vmatprep.subr.mxu0 0.0
    %4357 = vmatpush2.msra.mxu0 0.0
    %4358 = vmatprep.subr.mxu0 0.0
    %4359 = vmatpush2.msra.mxu0 0.0
    %4360 = vmatprep.subr.mxu0 0.0
    %4361 = vmatpush2.msra.mxu0 0.0
    %4362 = vmatprep.subr.mxu0 0.0
    %4363 = vmatpush2.msra.mxu0 0.0
    %4364 = vmatprep.mubr.f32.mxu0 0.0
    %4365 = vmatmul.mubr.f32.gmra.mxu0 %v4220
    %v4366 = vpop.f32.mrf.mxu0
    %v4367 = vadd.f32 0.0, %v4366
    %v4368 = vpop.f32.mrf.mxu0
    %4369 = vdwg.mxu0
    %4371 = vrot.lane.b32.xlu0 %v4367, 32
    %v4372 = vpop.permute.xlu0 %4371
    %v4374 = vadd.f32 %v287, %v4372
    %v4375 = vadd.f32 %v4374, %v705
    %v4376 = vxor.u32 %v4375, 2147483648
    %v4377 = vmul.f32 %v4376, 1.442695
    %v4378 = vpow.pop %v4377
    %v4379 = vadd.f32 %v4378, 1.0
    %v4380 = vrcp.pop %v4379
    %v4381 = vmul.f32 1.0, %v4380
    %4382 = vmatprep.subr.mxu0 0.0
    %4383 = vmatpush1.msra.mxu0 0.0
    %4384 = vmatprep.subr.mxu0 0.0
    %4385 = vmatpush1.msra.mxu0 0.0
    %4386 = vmatprep.subr.mxu0 0.0
    %4387 = vmatpush1.msra.mxu0 0.0
    %4388 = vmatprep.subr.mxu0 0.0
    %4389 = vmatpush1.msra.mxu0 0.0
    %4390 = vmatprep.subr.mxu0 0.0
    %4391 = vmatpush1.msra.mxu0 0.0
    %4392 = vmatprep.subr.mxu0 0.0
    %4393 = vmatpush1.msra.mxu0 0.0
    %4394 = vmatprep.subr.mxu0 0.0
    %4395 = vmatpush1.msra.mxu0 0.0
    %4396 = vmatprep.subr.mxu0 0.0
    %4397 = vmatpush1.msra.mxu0 0.0
    %4398 = vmatprep.subr.mxu0 0.0
    %4399 = vmatpush1.msra.mxu0 0.0
    %4400 = vmatprep.subr.mxu0 0.0
    %4401 = vmatpush1.msra.mxu0 0.0
    %4402 = vmatprep.subr.mxu0 0.0
    %4403 = vmatpush1.msra.mxu0 0.0
    %4404 = vmatprep.subr.mxu0 0.0
    %4405 = vmatpush1.msra.mxu0 0.0
    %4406 = vmatprep.subr.mxu0 0.0
    %4407 = vmatpush1.msra.mxu0 %v819
    %4408 = vmatprep.subr.mxu0 0.0
    %4409 = vmatpush1.msra.mxu0 %v817
    %4410 = vmatprep.subr.mxu0 0.0
    %4411 = vmatpush1.msra.mxu0 %v815
    %4412 = vmatprep.subr.mxu0 0.0
    %4413 = vmatpush1.msra.mxu0 %v813
    %4414 = vmatprep.subr.mxu0 0.0
    %4415 = vmatpush2.msra.mxu0 0.0
    %4416 = vmatprep.subr.mxu0 0.0
    %4417 = vmatpush2.msra.mxu0 0.0
    %4418 = vmatprep.subr.mxu0 0.0
    %4419 = vmatpush2.msra.mxu0 0.0
    %4420 = vmatprep.subr.mxu0 0.0
    %4421 = vmatpush2.msra.mxu0 0.0
    %4422 = vmatprep.subr.mxu0 0.0
    %4423 = vmatpush2.msra.mxu0 0.0
    %4424 = vmatprep.subr.mxu0 0.0
    %4425 = vmatpush2.msra.mxu0 0.0
    %4426 = vmatprep.subr.mxu0 0.0
    %4427 = vmatpush2.msra.mxu0 0.0
    %4428 = vmatprep.subr.mxu0 0.0
    %4429 = vmatpush2.msra.mxu0 0.0
    %4430 = vmatprep.subr.mxu0 0.0
    %4431 = vmatpush2.msra.mxu0 0.0
    %4432 = vmatprep.subr.mxu0 0.0
    %4433 = vmatpush2.msra.mxu0 0.0
    %4434 = vmatprep.subr.mxu0 0.0
    %4435 = vmatpush2.msra.mxu0 0.0
    %4436 = vmatprep.subr.mxu0 0.0
    %4437 = vmatpush2.msra.mxu0 0.0
    %4438 = vmatprep.subr.mxu0 0.0
    %4439 = vmatpush2.msra.mxu0 0.0
    %4440 = vmatprep.subr.mxu0 0.0
    %4441 = vmatpush2.msra.mxu0 0.0
    %4442 = vmatprep.subr.mxu0 0.0
    %4443 = vmatpush2.msra.mxu0 0.0
    %4444 = vmatprep.subr.mxu0 0.0
    %4445 = vmatpush2.msra.mxu0 0.0
    %4446 = vmatprep.mubr.f32.mxu0 0.0
    %4447 = vmatmul.mubr.f32.gmra.mxu0 %v4220
    %v4448 = vpop.f32.mrf.mxu0
    %v4449 = vadd.f32 %v825, %v4448
    %v4450 = vpop.f32.mrf.mxu0
    %4451 = vdwg.mxu0
    %v4452 = vmul.f32 %v4299, %v4449
    %4454 = vrot.lane.b32.xlu0 %v4452, 64
    %v4455 = vpop.permute.xlu0 %4454
    %v4457 = vadd.f32 %v287, %v4455
    %v4458 = vtanh.pop %v4457
    %v4459 = vsub.f32 1.0, %v4381
    %4461 = vrot.lane.b32.xlu0 %v4458, 96
    %v4462 = vpop.permute.xlu0 %4461
    %v4464 = vmul.f32 %v4459, %v4462
    %v4465 = vmul.f32 %v4381, %v3965
    %v4466 = vadd.f32 %v4464, %v4465
    %v4467 = vsel %vm627, %v4466, %v3965
    %4469 = vrot.lane.b32.xlu0 %v4467, 96
    %v4470 = vpop.permute.xlu0 %4469
    %v4472 = vsel %vm77, %v4470, %v4216
    %v4473 = vld [vmem:[%s6] sm:$0xff]
    %v4474 = vld [vmem:[%s6 + $0x8] sm:$0xff]
    %v4475 = vld [vmem:[%s6 + $0x10] sm:$0xff]
    %v4476 = vld [vmem:[%s6 + $0x18] sm:$0xff]
    %v4477 = vld [vmem:[%s6 + $0x20] sm:$0xff]
    %v4478 = vld [vmem:[%s6 + $0x28] sm:$0xff]
    %v4479 = vld [vmem:[%s6 + $0x30] sm:$0xff]
    %v4480 = vld [vmem:[%s6 + $0x38] sm:$0xff]
    %v4481 = vld [vmem:[%s7] sm:$0x1]
    %v4483 = vlaneseq
    %v4484 = vshrl.u32 %v4483, 7
    %v4485 = vsub.s32 0, %v4484
    %v4486 = vrot.slane %v4481, %v4485
    %vm4488 = vcmask 523264
    %v4490 = vsel %vm4488, %v4472, 0
    %4492 = vmatprep.subr.mxu0 0.0
    %4493 = vmatpush1.msra.mxu0 0.0
    %4494 = vmatprep.subr.mxu0 0.0
    %4495 = vmatpush1.msra.mxu0 0.0
    %4496 = vmatprep.subr.mxu0 0.0
    %4497 = vmatpush1.msra.mxu0 0.0
    %4498 = vmatprep.subr.mxu0 0.0
    %4499 = vmatpush1.msra.mxu0 0.0
    %4500 = vmatprep.subr.mxu0 0.0
    %4501 = vmatpush1.msra.mxu0 0.0
    %4502 = vmatprep.subr.mxu0 0.0
    %4503 = vmatpush1.msra.mxu0 0.0
    %4504 = vmatprep.subr.mxu0 0.0
    %4505 = vmatpush1.msra.mxu0 0.0
    %4506 = vmatprep.subr.mxu0 0.0
    %4507 = vmatpush1.msra.mxu0 0.0
    %4508 = vmatprep.subr.mxu0 0.0
    %4509 = vmatpush1.msra.mxu0 %v4480
    %4510 = vmatprep.subr.mxu0 0.0
    %4511 = vmatpush1.msra.mxu0 %v4479
    %4512 = vmatprep.subr.mxu0 0.0
    %4513 = vmatpush1.msra.mxu0 %v4478
    %4514 = vmatprep.subr.mxu0 0.0
    %4515 = vmatpush1.msra.mxu0 %v4477
    %4516 = vmatprep.subr.mxu0 0.0
    %4517 = vmatpush1.msra.mxu0 %v4476
    %4518 = vmatprep.subr.mxu0 0.0
    %4519 = vmatpush1.msra.mxu0 %v4475
    %4520 = vmatprep.subr.mxu0 0.0
    %4521 = vmatpush1.msra.mxu0 %v4474
    %4522 = vmatprep.subr.mxu0 0.0
    %4523 = vmatpush1.msra.mxu0 %v4473
    %4524 = vmatprep.subr.mxu0 0.0
    %4525 = vmatpush2.msra.mxu0 0.0
    %4526 = vmatprep.subr.mxu0 0.0
    %4527 = vmatpush2.msra.mxu0 0.0
    %4528 = vmatprep.subr.mxu0 0.0
    %4529 = vmatpush2.msra.mxu0 0.0
    %4530 = vmatprep.subr.mxu0 0.0
    %4531 = vmatpush2.msra.mxu0 0.0
    %4532 = vmatprep.subr.mxu0 0.0
    %4533 = vmatpush2.msra.mxu0 0.0
    %4534 = vmatprep.subr.mxu0 0.0
    %4535 = vmatpush2.msra.mxu0 0.0
    %4536 = vmatprep.subr.mxu0 0.0
    %4537 = vmatpush2.msra.mxu0 0.0
    %4538 = vmatprep.subr.mxu0 0.0
    %4539 = vmatpush2.msra.mxu0 0.0
    %4540 = vmatprep.subr.mxu0 0.0
    %4541 = vmatpush2.msra.mxu0 0.0
    %4542 = vmatprep.subr.mxu0 0.0
    %4543 = vmatpush2.msra.mxu0 0.0
    %4544 = vmatprep.subr.mxu0 0.0
    %4545 = vmatpush2.msra.mxu0 0.0
    %4546 = vmatprep.subr.mxu0 0.0
    %4547 = vmatpush2.msra.mxu0 0.0
    %4548 = vmatprep.subr.mxu0 0.0
    %4549 = vmatpush2.msra.mxu0 0.0
    %4550 = vmatprep.subr.mxu0 0.0
    %4551 = vmatpush2.msra.mxu0 0.0
    %4552 = vmatprep.subr.mxu0 0.0
    %4553 = vmatpush2.msra.mxu0 0.0
    %4554 = vmatprep.subr.mxu0 0.0
    %4555 = vmatpush2.msra.mxu0 0.0
    %4556 = vmatprep.mubr.f32.mxu0 0.0
    %4557 = vmatmul.mubr.f32.gmra.mxu0 %v4490
    %v4558 = vpop.f32.mrf.mxu0
    %v4559 = vadd.f32 %v4486, %v4558
    %v4560 = vpop.f32.mrf.mxu0
    %4561 = vdwg.mxu0
    %v4562 = vxor.u32 %v4559, 2147483648
    %v4563 = vmul.f32 %v4562, 1.442695
    %v4564 = vpow.pop %v4563
    %v4565 = vadd.f32 %v4564, 1.0
    %v4566 = vrcp.pop %v4565
    %v4567 = vmul.f32 1.0, %v4566
    %vm4568 = vcmask 31744
    %4569 = vst.msk [vmem:[%s8] sm:$0xff] %vm4568, %v4567
    // Predicated region
    $region42: #{tpu_custom_call.1} parent=1 // pred_check
      _
    $region43: #{tpu_custom_call.1} parent=1 // pred_check_branch
      %4571 = sbr.rel (0) target = $region45
    $region44: #{tpu_custom_call.1} parent=1 // pred_region
      _
    $region45: #{tpu_custom_call.1} parent=1 // pred_fallthru
      _
    // Predicated region
    $region46: #{tpu_custom_call.1} parent=1 // pred_check
      _
    $region47: #{tpu_custom_call.1} parent=1 // pred_check_branch
      %4573 = sbr.rel (0) target = $region49
    $region48: #{tpu_custom_call.1} parent=1 // pred_region
      _
    $region49: #{tpu_custom_call.1} parent=1 // pred_fallthru
      _
    %4574 = vsyncpa [#allocation3], 1
    %4575 = vsyncpa [#allocation5], 1

</llo_original>
